<compile_context>
chip_gen: v7x
topology: tpu7x:2x2x1
jax: 0.10.0
libtpu: 0.0.40
codegen_flags: <defaults>
</compile_context>

<pallas_src>
import functools

import jax
import jax.numpy as jnp
from jax import lax
from jax.experimental import pallas as pl
from jax.experimental.pallas import tpu as pltpu

N_STACKS = 2


def _cdiv(a, b):
    return -(-a // b)


def _round_up(x, m):
    return _cdiv(x, m) * m


def _use_bf16_activations():
    """bf16 EUP/VPU exists on v6e/v7x; keep f32 activations on v5e and older."""
    try:
        kind = jax.devices()[0].device_kind.lower()
    except Exception:
        return False
    return ("v6" in kind) or ("v7" in kind) or ("7x" in kind)


# ---------------------------------------------------------------------------
# Kernel bodies
# ---------------------------------------------------------------------------
def _san_core(xw, v, wh_ref, wv_ref, wqa_ref, ba_ref, wp_ref, bp_ref, att_ref,
              *, act_dtype):
    """Shared body: tanh-RNN question encoder + 2-stack stacked attention.

    xw : [TB, T, H] f32  RNN input projections (w @ wx + bh), hoisted out of
                         the recurrence (one big MXU matmul instead of T).
    v  : [TB, N, Dv] bf16 visual features.
    """
    TB, T, H = xw.shape
    _, N, Dv = v.shape

    # ---- q_emb: tanh RNN; only the h @ wh chain remains in the recurrence ----
    wh = wh_ref[...]                                               # bf16
    h = jnp.zeros((TB, H), jnp.float32)
    for t in range(T):                                             # static unroll
        pre = xw[:, t, :] + jnp.dot(h.astype(wh.dtype), wh,
                                    preferred_element_type=jnp.float32)
        h = jnp.tanh(pre)                                          # f32 (v5e-safe)

    # ---- v_att: stacked attention (static unroll over the 2 stacks) ----
    vI = jnp.dot(v.reshape(TB * N, Dv), wv_ref[...],
                 preferred_element_type=jnp.float32).reshape(TB, N, H)   # f32

    u = h
    for k in range(N_STACKS):
        qa = jnp.dot(u.astype(wqa_ref.dtype), wqa_ref[k],
                     preferred_element_type=jnp.float32) + ba_ref[k]     # [TB, H]
        # Dominant transcendental volume: bf16 tanh on v6e/v7x (bf16 EUP),
        # f32 on v5e (no bf16 EUP/VPU there).
        ha = jnp.tanh((vI + qa[:, None, :]).astype(act_dtype))           # [TB, N, H]
        # scores accumulate in f32 (bf16*f32 promotes); lane reduce on the XLU.
        scores = jnp.sum(ha * wp_ref[k], axis=-1) + bp_ref[k]            # [TB, N]
        # softmax over objects; reciprocal on the EUP slot.
        m = jnp.max(scores, axis=-1, keepdims=True)
        e = jnp.exp(scores - m)
        inv = pl.reciprocal(jnp.sum(e, axis=-1, keepdims=True), approx=True)
        p = e * inv                                                       # [TB, N]
        # Attention-weighted sum on the VPU (sublane reduce over N): avoids the
        # M=1 batched MXU matmul and the extra bf16 copy of vI.
        vtilde = jnp.sum(p[:, :, None] * vI, axis=1)                      # [TB, H]
        u = u + vtilde

    att_ref[...] = u.astype(att_ref.dtype)


def san_kernel_onehot(q_ref, emb_ref, v_ref, wx_ref, wh_ref, bh_ref, wv_ref,
                      wqa_ref, ba_ref, wp_ref, bp_ref, att_ref, *, act_dtype):
    """Small-vocab path: in-kernel embedding lookup (one-hot @ table on the
    otherwise-idle MXU; table stays VMEM-resident) — no [B,T,E] HBM round-trip."""
    TB, T = q_ref.shape
    V, E = emb_ref.shape
    H = wh_ref.shape[1]

    ids = q_ref[...]                                               # [TB, T] int32
    iota_v = lax.broadcasted_iota(jnp.int32, (TB, T, V), 2)
    onehot = jnp.where(ids[:, :, None] == iota_v, 1.0, 0.0).astype(emb_ref.dtype)
    # Exact table rows (one-hot is exact; bf16 values representable in f32).
    w = jnp.dot(onehot.reshape(TB * T, V), emb_ref[...],
                preferred_element_type=jnp.float32)                # [TB*T, E]
    xw = jnp.dot(w.astype(wx_ref.dtype), wx_ref[...],
                 preferred_element_type=jnp.float32).reshape(TB, T, H)
    xw = xw + bh_ref[...]
    _san_core(xw, v_ref[...], wh_ref, wv_ref, wqa_ref, ba_ref, wp_ref, bp_ref,
              att_ref, act_dtype=act_dtype)


def san_kernel_gathered(w_ref, v_ref, wx_ref, wh_ref, bh_ref, wv_ref,
                        wqa_ref, ba_ref, wp_ref, bp_ref, att_ref, *, act_dtype):
    """Large-vocab fallback: embeddings gathered (then cast) in the wrapper."""
    TB, T, E = w_ref.shape
    H = wh_ref.shape[1]
    xw = jnp.dot(w_ref[...].reshape(TB * T, E), wx_ref[...],
                 preferred_element_type=jnp.float32).reshape(TB, T, H)
    xw = xw + bh_ref[...]
    _san_core(xw, v_ref[...], wh_ref, wv_ref, wqa_ref, ba_ref, wp_ref, bp_ref,
              att_ref, act_dtype=act_dtype)


# ---------------------------------------------------------------------------
# Wrapper
# ---------------------------------------------------------------------------
def _pick_tiling(B, T, E, N, Dv, H, V, small_vocab):
    """Batch tile / grid / vmem-limit from VMEM arithmetic, not a hardcode."""
    # Streamed bytes per batch sample (double-buffered) + f32 working set.
    in_bytes = (T * 4 if small_vocab else T * E * 2) + N * Dv * 2
    out_bytes = H * 4
    work_bytes = T * H * 4 + 2 * N * H * 4 + 8 * H * 4     # xw, vI/ha, vectors
    per_sample = 2 * (in_bytes + out_bytes) + work_bytes
    resident = 2 * 2 * ((V * E if small_vocab else 0) + E * H + H * H + Dv * H
                        + N_STACKS * H * H) + (1 << 16)    # bf16 weights, 2-buf
    budget = 24 << 20                 # conservative: fits v5e/v6e/v7x scoped VMEM
    tb_cap = max(8, ((budget - resident) // per_sample) // 8 * 8)
    tb_cap = min(tb_cap, 256)         # M=256 fills MXU rows on v6e/v7x (128 v5e)

    steps = _cdiv(B, tb_cap)
    if B > 8:
        steps = max(2, steps)         # >=2 grid steps: DMA overlap + both TCs
    if steps > 1 and steps % 2:
        steps += 1                    # even grid for v7x's 2 TensorCores
    tb = max(8, _round_up(_cdiv(B, steps), 8))
    b_pad = tb * steps
    vmem_limit = int(min(48 << 20,
                         max(8 << 20, 2 * (resident + tb * per_sample))))
    return tb, steps, b_pad, vmem_limit


def san_forward(v, b, q, params, *, vocab_resident_bytes=2 << 20):
    """v: [B, N, Dv], b: [B, N, b_dim] (unused, as in the PyTorch forward),
    q: [B, T] int32 token ids.  Returns att: [B, H] (f32)."""
    del b  # unused in the reference forward
    B, N, Dv = v.shape
    T = q.shape[1]
    E = params["wx"].shape[0]
    H = params["wh"].shape[0]
    V = params["emb_table"].shape[0]

    act_dtype = jnp.bfloat16 if _use_bf16_activations() else jnp.float32
    small_vocab = V * E * 2 <= vocab_resident_bytes   # bf16 table VMEM-resident?

    TB, steps, B_pad, vmem_limit = _pick_tiling(B, T, E, N, Dv, H, V, small_vocab)

    # Pad the batch instead of collapsing to grid=1 for non-divisible sizes.
    v_bf = v.astype(jnp.bfloat16)
    q32 = q.astype(jnp.int32)
    if B_pad != B:
        v_bf = jnp.pad(v_bf, ((0, B_pad - B), (0, 0), (0, 0)))
        q32 = jnp.pad(q32, ((0, B_pad - B), (0, 0)))

    # bf16 MXU operands; biases stay f32.
    wx = params["wx"].astype(jnp.bfloat16)
    wh = params["wh"].astype(jnp.bfloat16)
    wv = params["wv"].astype(jnp.bfloat16)
    wqa = params["wqa"].astype(jnp.bfloat16)
    bh, ba, wp, bp = params["bh"], params["ba"], params["wp"], params["bp"]

    weight_specs = [
        pl.BlockSpec((E, H), lambda i: (0, 0)),                # wx  (resident)
        pl.BlockSpec((H, H), lambda i: (0, 0)),                # wh  (resident)
        pl.BlockSpec((1, H), lambda i: (0, 0)),                # bh  (resident)
        pl.BlockSpec((Dv, H), lambda i: (0, 0)),               # wv  (resident)
        pl.BlockSpec((N_STACKS, H, H), lambda i: (0, 0, 0)),   # wqa (resident)
        pl.BlockSpec((N_STACKS, 1, H), lambda i: (0, 0, 0)),   # ba  (resident)
        pl.BlockSpec((N_STACKS, 1, H), lambda i: (0, 0, 0)),   # wp  (resident)
        pl.BlockSpec((N_STACKS, 1, 1), lambda i: (0, 0, 0)),   # bp  (resident)
    ]
    v_spec = pl.BlockSpec((TB, N, Dv), lambda i: (i, 0, 0))
    out_spec = pl.BlockSpec((TB, H), lambda i: (i, 0))

    if small_vocab:
        kernel = functools.partial(san_kernel_onehot, act_dtype=act_dtype)
        emb_bf = params["emb_table"].astype(jnp.bfloat16)      # small, resident
        in_specs = [pl.BlockSpec((TB, T), lambda i: (i, 0)),   # q ids (tiled)
                    pl.BlockSpec((V, E), lambda i: (0, 0)),    # table (resident)
                    v_spec] + weight_specs
        args = (q32, emb_bf, v_bf, wx, wh, bh, wv, wqa, ba, wp, bp)
        emb_bytes = V * E * 2 + B_pad * T * 4
        gather_flops = B_pad * 2 * T * V * E
    else:
        # TODO(synk): for very large vocabularies an in-kernel pl.Element row
        # gather would avoid this [B,T,E] materialization; gather-before-cast
        # already avoids casting the whole table every call.
        kernel = functools.partial(san_kernel_gathered, act_dtype=act_dtype)
        w_emb = params["emb_table"][q32].astype(jnp.bfloat16)  # gather THEN cast
        in_specs = [pl.BlockSpec((TB, T, E), lambda i: (i, 0, 0)),
                    v_spec] + weight_specs
        args = (w_emb, v_bf, wx, wh, bh, wv, wqa, ba, wp, bp)
        emb_bytes = B_pad * T * E * 2
        gather_flops = 0

    flops = int(B_pad * (2 * T * (E * H + H * H)
                         + 2 * N * Dv * H
                         + N_STACKS * (2 * H * H + 4 * N * H)) + gather_flops)
    transcendentals = int(B_pad * (T * H + N_STACKS * (N * H + N)))
    bytes_accessed = int(emb_bytes + 2 * B_pad * N * Dv + 4 * B_pad * H
                         + 2 * (wx.size + wh.size + wv.size + wqa.size)
                         + 4 * (bh.size + ba.size + wp.size + bp.size))

    att = pl.pallas_call(
        kernel,
        out_shape=jax.ShapeDtypeStruct((B_pad, H), jnp.float32),
        grid_spec=pltpu.PrefetchScalarGridSpec(
            num_scalar_prefetch=0,
            grid=(steps,),
            in_specs=in_specs,
            out_specs=out_spec),
        compiler_params=pltpu.CompilerParams(
            dimension_semantics=("parallel",),
            vmem_limit_bytes=vmem_limit),
        cost_estimate=pl.CostEstimate(flops=flops,
                                      transcendentals=transcendentals,
                                      bytes_accessed=bytes_accessed),
    )(*args)
    return att[:B]


# ---------------------------------------------------------------------------
# Parameters / pure-JAX reference
# ---------------------------------------------------------------------------
def init_params(key, ntoken, emb_dim, hidden, obj_dim):
    ks = jax.random.split(key, 9)
    s = 0.1
    return {
        "emb_table": s * jax.random.normal(ks[0], (ntoken, emb_dim), jnp.float32),
        "wx": s * jax.random.normal(ks[1], (emb_dim, hidden), jnp.float32),
        "wh": s * jax.random.normal(ks[2], (hidden, hidden), jnp.float32),
        "bh": s * jax.random.normal(ks[3], (1, hidden), jnp.float32),
        "wv": s * jax.random.normal(ks[4], (obj_dim, hidden), jnp.float32),
        "wqa": s * jax.random.normal(ks[5], (N_STACKS, hidden, hidden), jnp.float32),
        "ba": s * jax.random.normal(ks[6], (N_STACKS, 1, hidden), jnp.float32),
        "wp": s * jax.random.normal(ks[7], (N_STACKS, 1, hidden), jnp.float32),
        "bp": s * jax.random.normal(ks[8], (N_STACKS, 1, 1), jnp.float32),
    }


def san_forward_ref(v, b, q, p):
    """Pure-JAX f32 reference for correctness checking."""
    del b
    w = p["emb_table"][q]
    B, T, _ = w.shape
    H = p["wh"].shape[0]
    h = jnp.zeros((B, H), jnp.float32)
    for t in range(T):
        h = jnp.tanh(w[:, t] @ p["wx"] + h @ p["wh"] + p["bh"])
    vI = jnp.einsum("bnd,dh->bnh", v, p["wv"])
    u = h
    for k in range(N_STACKS):
        qa = u @ p["wqa"][k] + p["ba"][k]
        ha = jnp.tanh(vI + qa[:, None, :])
        scores = jnp.sum(ha * p["wp"][k], axis=-1) + p["bp"][k]
        pr = jax.nn.softmax(scores, axis=-1)
        u = u + jnp.sum(pr[:, :, None] * vI, axis=1)
    return u


# TODO(synk): classifier / classify() is not part of forward(); not implemented.

if __name__ == "__main__":
    key = jax.random.PRNGKey(0)
    k_v, k_b, k_q, k_p = jax.random.split(key, 4)

    # Small, TPU-friendly shapes: feature dims lane-dense (multiples of 128),
    # seq / object counts multiples of 8.
    batch, num_objs, obj_dim, b_dim = 16, 16, 128, 8
    seq, ntoken, emb_dim, hidden = 8, 64, 128, 128

    v = jax.random.normal(k_v, (batch, num_objs, obj_dim), jnp.float32)
    b = jax.random.normal(k_b, (batch, num_objs, b_dim), jnp.float32)
    q = jax.random.randint(k_q, (batch, seq), 0, ntoken, jnp.int32)
    params = init_params(k_p, ntoken, emb_dim, hidden, obj_dim)

    att = san_forward(v, b, q, params)
    att = jax.block_until_ready(att)

    ref = san_forward_ref(v, b, q, params)
    assert att.shape == (batch, hidden)
    # bf16 MXU operands (+ bf16 tanh on v6e/v7x) + approx reciprocal vs f32 ref.
    assert jnp.allclose(att, ref, atol=5e-2, rtol=5e-2), "mismatch vs reference"

    print("KERNEL_OK")
</pallas_src>

<mosaic_0001>
module attributes {stable_mosaic.version = 11 : i64} {
  func.func @san_kernel_onehot(%arg0: i32, %arg1: memref<8x8xi32, #tpu.memory_space<vmem>>, %arg2: memref<64x128xbf16, #tpu.memory_space<vmem>>, %arg3: memref<8x16x128xbf16, #tpu.memory_space<vmem>>, %arg4: memref<128x128xbf16, #tpu.memory_space<vmem>>, %arg5: memref<128x128xbf16, #tpu.memory_space<vmem>>, %arg6: memref<1x128xf32, #tpu.memory_space<vmem>>, %arg7: memref<128x128xbf16, #tpu.memory_space<vmem>>, %arg8: memref<2x128x128xbf16, #tpu.memory_space<vmem>>, %arg9: memref<2x1x128xf32, #tpu.memory_space<vmem>>, %arg10: memref<2x1x128xf32, #tpu.memory_space<vmem>>, %arg11: memref<2x1x1xf32, #tpu.memory_space<vmem>>, %arg12: memref<8x128xf32, #tpu.memory_space<vmem>>) attributes {dimension_semantics = [#tpu.dimension_semantics<parallel>], iteration_bounds = array<i64: 2>, scalar_prefetch = 0 : i64, scratch_operands = 0 : i64, tpu.core_type = #tpu.core_type<tc>, window_params = [{transform_indices = @transform_0, window_bounds = array<i64: 8, 8>}, {pipeline_mode = #tpu.pipeline_mode<synchronous>, transform_indices = @transform_1, window_bounds = array<i64: 64, 128>}, {transform_indices = @transform_2, window_bounds = array<i64: 8, 16, 128>}, {pipeline_mode = #tpu.pipeline_mode<synchronous>, transform_indices = @transform_3, window_bounds = array<i64: 128, 128>}, {pipeline_mode = #tpu.pipeline_mode<synchronous>, transform_indices = @transform_4, window_bounds = array<i64: 128, 128>}, {pipeline_mode = #tpu.pipeline_mode<synchronous>, transform_indices = @transform_5, window_bounds = array<i64: 1, 128>}, {pipeline_mode = #tpu.pipeline_mode<synchronous>, transform_indices = @transform_6, window_bounds = array<i64: 128, 128>}, {pipeline_mode = #tpu.pipeline_mode<synchronous>, transform_indices = @transform_7, window_bounds = array<i64: 2, 128, 128>}, {pipeline_mode = #tpu.pipeline_mode<synchronous>, transform_indices = @transform_8, window_bounds = array<i64: 2, 1, 128>}, {pipeline_mode = #tpu.pipeline_mode<synchronous>, transform_indices = @transform_9, window_bounds = array<i64: 2, 1, 128>}, {pipeline_mode = #tpu.pipeline_mode<synchronous>, transform_indices = @transform_10, window_bounds = array<i64: 2, 1, 1>}, {transform_indices = @transform_11, window_bounds = array<i64: 8, 128>}]} {
    %c0 = arith.constant 0 : index
    %c0_0 = arith.constant 0 : index
    %0 = vector.load %arg1[%c0, %c0_0] : memref<8x8xi32, #tpu.memory_space<vmem>>, vector<8x8xi32>
    %1 = tpu.iota {dimensions = array<i32: 2>} : vector<8x8x64xi32>
    %2 = vector.shape_cast %0 : vector<8x8xi32> to vector<8x8x1xi32>
    %3 = vector.broadcast %2 : vector<8x8x1xi32> to vector<8x8x64xi32>
    %4 = arith.cmpi eq, %3, %1 : vector<8x8x64xi32>
    %cst = arith.constant 1.000000e+00 : f32
    %cst_1 = arith.constant 0.000000e+00 : f32
    %5 = vector.broadcast %cst : f32 to vector<8x8x64xf32>
    %6 = vector.broadcast %cst_1 : f32 to vector<8x8x64xf32>
    %7 = arith.select %4, %5, %6 : vector<8x8x64xi1>, vector<8x8x64xf32>
    %8 = arith.truncf %7 : vector<8x8x64xf32> to vector<8x8x64xbf16>
    %9 = vector.shape_cast %8 : vector<8x8x64xbf16> to vector<64x64xbf16>
    %c0_2 = arith.constant 0 : index
    %c0_3 = arith.constant 0 : index
    %10 = vector.load %arg2[%c0_2, %c0_3] : memref<64x128xbf16, #tpu.memory_space<vmem>>, vector<64x128xbf16>
    %cst_4 = arith.constant dense<0.000000e+00> : vector<64x128xf32>
    %11 = tpu.matmul %9, %10, %cst_4 {dimension_numbers = #tpu.dot_dimension_numbers<[1], [0], [0], [1], [0, 0, 1, 1], [], []>} : vector<64x64xbf16>, vector<64x128xbf16>, vector<64x128xf32> -> vector<64x128xf32>
    %12 = arith.truncf %11 : vector<64x128xf32> to vector<64x128xbf16>
    %c0_5 = arith.constant 0 : index
    %c0_6 = arith.constant 0 : index
    %13 = vector.load %arg4[%c0_5, %c0_6] : memref<128x128xbf16, #tpu.memory_space<vmem>>, vector<128x128xbf16>
    %cst_7 = arith.constant dense<0.000000e+00> : vector<64x128xf32>
    %14 = tpu.matmul %12, %13, %cst_7 {dimension_numbers = #tpu.dot_dimension_numbers<[1], [0], [0], [1], [0, 0, 1, 1], [], []>} : vector<64x128xbf16>, vector<128x128xbf16>, vector<64x128xf32> -> vector<64x128xf32>
    %15 = vector.shape_cast %14 : vector<64x128xf32> to vector<8x8x128xf32>
    %c0_8 = arith.constant 0 : index
    %c0_9 = arith.constant 0 : index
    %16 = vector.load %arg6[%c0_8, %c0_9] : memref<1x128xf32, #tpu.memory_space<vmem>>, vector<1x128xf32>
    %17 = vector.shape_cast %16 : vector<1x128xf32> to vector<1x1x128xf32>
    %18 = vector.broadcast %17 : vector<1x1x128xf32> to vector<8x8x128xf32>
    %19 = arith.addf %15, %18 : vector<8x8x128xf32>
    %c0_10 = arith.constant 0 : index
    %c0_11 = arith.constant 0 : index
    %c0_12 = arith.constant 0 : index
    %20 = vector.load %arg3[%c0_10, %c0_11, %c0_12] : memref<8x16x128xbf16, #tpu.memory_space<vmem>>, vector<8x16x128xbf16>
    %c0_13 = arith.constant 0 : index
    %c0_14 = arith.constant 0 : index
    %21 = vector.load %arg5[%c0_13, %c0_14] : memref<128x128xbf16, #tpu.memory_space<vmem>>, vector<128x128xbf16>
    %cst_15 = arith.constant 0.000000e+00 : f32
    %22 = vector.broadcast %cst_15 : f32 to vector<8x128xf32>
    %23 = vector.extract_strided_slice %19 {offsets = [0, 0, 0], sizes = [8, 1, 128], strides = [1, 1, 1]} : vector<8x8x128xf32> to vector<8x1x128xf32>
    %24 = vector.shape_cast %23 : vector<8x1x128xf32> to vector<8x128xf32>
    %25 = arith.truncf %22 : vector<8x128xf32> to vector<8x128xbf16>
    %cst_16 = arith.constant dense<0.000000e+00> : vector<8x128xf32>
    %26 = tpu.matmul %25, %21, %cst_16 {dimension_numbers = #tpu.dot_dimension_numbers<[1], [0], [0], [1], [0, 0, 1, 1], [], []>} : vector<8x128xbf16>, vector<128x128xbf16>, vector<8x128xf32> -> vector<8x128xf32>
    %27 = arith.addf %24, %26 : vector<8x128xf32>
    %28 = math.tanh %27 : vector<8x128xf32>
    %29 = vector.extract_strided_slice %19 {offsets = [0, 1, 0], sizes = [8, 1, 128], strides = [1, 1, 1]} : vector<8x8x128xf32> to vector<8x1x128xf32>
    %30 = vector.shape_cast %29 : vector<8x1x128xf32> to vector<8x128xf32>
    %31 = arith.truncf %28 : vector<8x128xf32> to vector<8x128xbf16>
    %cst_17 = arith.constant dense<0.000000e+00> : vector<8x128xf32>
    %32 = tpu.matmul %31, %21, %cst_17 {dimension_numbers = #tpu.dot_dimension_numbers<[1], [0], [0], [1], [0, 0, 1, 1], [], []>} : vector<8x128xbf16>, vector<128x128xbf16>, vector<8x128xf32> -> vector<8x128xf32>
    %33 = arith.addf %30, %32 : vector<8x128xf32>
    %34 = math.tanh %33 : vector<8x128xf32>
    %35 = vector.extract_strided_slice %19 {offsets = [0, 2, 0], sizes = [8, 1, 128], strides = [1, 1, 1]} : vector<8x8x128xf32> to vector<8x1x128xf32>
    %36 = vector.shape_cast %35 : vector<8x1x128xf32> to vector<8x128xf32>
    %37 = arith.truncf %34 : vector<8x128xf32> to vector<8x128xbf16>
    %cst_18 = arith.constant dense<0.000000e+00> : vector<8x128xf32>
    %38 = tpu.matmul %37, %21, %cst_18 {dimension_numbers = #tpu.dot_dimension_numbers<[1], [0], [0], [1], [0, 0, 1, 1], [], []>} : vector<8x128xbf16>, vector<128x128xbf16>, vector<8x128xf32> -> vector<8x128xf32>
    %39 = arith.addf %36, %38 : vector<8x128xf32>
    %40 = math.tanh %39 : vector<8x128xf32>
    %41 = vector.extract_strided_slice %19 {offsets = [0, 3, 0], sizes = [8, 1, 128], strides = [1, 1, 1]} : vector<8x8x128xf32> to vector<8x1x128xf32>
    %42 = vector.shape_cast %41 : vector<8x1x128xf32> to vector<8x128xf32>
    %43 = arith.truncf %40 : vector<8x128xf32> to vector<8x128xbf16>
    %cst_19 = arith.constant dense<0.000000e+00> : vector<8x128xf32>
    %44 = tpu.matmul %43, %21, %cst_19 {dimension_numbers = #tpu.dot_dimension_numbers<[1], [0], [0], [1], [0, 0, 1, 1], [], []>} : vector<8x128xbf16>, vector<128x128xbf16>, vector<8x128xf32> -> vector<8x128xf32>
    %45 = arith.addf %42, %44 : vector<8x128xf32>
    %46 = math.tanh %45 : vector<8x128xf32>
    %47 = vector.extract_strided_slice %19 {offsets = [0, 4, 0], sizes = [8, 1, 128], strides = [1, 1, 1]} : vector<8x8x128xf32> to vector<8x1x128xf32>
    %48 = vector.shape_cast %47 : vector<8x1x128xf32> to vector<8x128xf32>
    %49 = arith.truncf %46 : vector<8x128xf32> to vector<8x128xbf16>
    %cst_20 = arith.constant dense<0.000000e+00> : vector<8x128xf32>
    %50 = tpu.matmul %49, %21, %cst_20 {dimension_numbers = #tpu.dot_dimension_numbers<[1], [0], [0], [1], [0, 0, 1, 1], [], []>} : vector<8x128xbf16>, vector<128x128xbf16>, vector<8x128xf32> -> vector<8x128xf32>
    %51 = arith.addf %48, %50 : vector<8x128xf32>
    %52 = math.tanh %51 : vector<8x128xf32>
    %53 = vector.extract_strided_slice %19 {offsets = [0, 5, 0], sizes = [8, 1, 128], strides = [1, 1, 1]} : vector<8x8x128xf32> to vector<8x1x128xf32>
    %54 = vector.shape_cast %53 : vector<8x1x128xf32> to vector<8x128xf32>
    %55 = arith.truncf %52 : vector<8x128xf32> to vector<8x128xbf16>
    %cst_21 = arith.constant dense<0.000000e+00> : vector<8x128xf32>
    %56 = tpu.matmul %55, %21, %cst_21 {dimension_numbers = #tpu.dot_dimension_numbers<[1], [0], [0], [1], [0, 0, 1, 1], [], []>} : vector<8x128xbf16>, vector<128x128xbf16>, vector<8x128xf32> -> vector<8x128xf32>
    %57 = arith.addf %54, %56 : vector<8x128xf32>
    %58 = math.tanh %57 : vector<8x128xf32>
    %59 = vector.extract_strided_slice %19 {offsets = [0, 6, 0], sizes = [8, 1, 128], strides = [1, 1, 1]} : vector<8x8x128xf32> to vector<8x1x128xf32>
    %60 = vector.shape_cast %59 : vector<8x1x128xf32> to vector<8x128xf32>
    %61 = arith.truncf %58 : vector<8x128xf32> to vector<8x128xbf16>
    %cst_22 = arith.constant dense<0.000000e+00> : vector<8x128xf32>
    %62 = tpu.matmul %61, %21, %cst_22 {dimension_numbers = #tpu.dot_dimension_numbers<[1], [0], [0], [1], [0, 0, 1, 1], [], []>} : vector<8x128xbf16>, vector<128x128xbf16>, vector<8x128xf32> -> vector<8x128xf32>
    %63 = arith.addf %60, %62 : vector<8x128xf32>
    %64 = math.tanh %63 : vector<8x128xf32>
    %65 = vector.extract_strided_slice %19 {offsets = [0, 7, 0], sizes = [8, 1, 128], strides = [1, 1, 1]} : vector<8x8x128xf32> to vector<8x1x128xf32>
    %66 = vector.shape_cast %65 : vector<8x1x128xf32> to vector<8x128xf32>
    %67 = arith.truncf %64 : vector<8x128xf32> to vector<8x128xbf16>
    %cst_23 = arith.constant dense<0.000000e+00> : vector<8x128xf32>
    %68 = tpu.matmul %67, %21, %cst_23 {dimension_numbers = #tpu.dot_dimension_numbers<[1], [0], [0], [1], [0, 0, 1, 1], [], []>} : vector<8x128xbf16>, vector<128x128xbf16>, vector<8x128xf32> -> vector<8x128xf32>
    %69 = arith.addf %66, %68 : vector<8x128xf32>
    %70 = math.tanh %69 : vector<8x128xf32>
    %71 = vector.shape_cast %20 : vector<8x16x128xbf16> to vector<128x128xbf16>
    %c0_24 = arith.constant 0 : index
    %c0_25 = arith.constant 0 : index
    %72 = vector.load %arg7[%c0_24, %c0_25] : memref<128x128xbf16, #tpu.memory_space<vmem>>, vector<128x128xbf16>
    %cst_26 = arith.constant dense<0.000000e+00> : vector<128x128xf32>
    %73 = tpu.matmul %71, %72, %cst_26 {dimension_numbers = #tpu.dot_dimension_numbers<[1], [0], [0], [1], [0, 0, 1, 1], [], []>} : vector<128x128xbf16>, vector<128x128xbf16>, vector<128x128xf32> -> vector<128x128xf32>
    %74 = vector.shape_cast %73 : vector<128x128xf32> to vector<8x16x128xf32>
    %75 = arith.truncf %70 : vector<8x128xf32> to vector<8x128xbf16>
    %c0_27 = arith.constant 0 : index
    %c0_28 = arith.constant 0 : index
    %c0_29 = arith.constant 0 : index
    %76 = vector.load %arg8[%c0_27, %c0_28, %c0_29] : memref<2x128x128xbf16, #tpu.memory_space<vmem>>, vector<1x128x128xbf16>
    %77 = vector.shape_cast %76 : vector<1x128x128xbf16> to vector<128x128xbf16>
    %cst_30 = arith.constant dense<0.000000e+00> : vector<8x128xf32>
    %78 = tpu.matmul %75, %77, %cst_30 {dimension_numbers = #tpu.dot_dimension_numbers<[1], [0], [0], [1], [0, 0, 1, 1], [], []>} : vector<8x128xbf16>, vector<128x128xbf16>, vector<8x128xf32> -> vector<8x128xf32>
    %c0_31 = arith.constant 0 : index
    %c0_32 = arith.constant 0 : index
    %c0_33 = arith.constant 0 : index
    %79 = vector.load %arg9[%c0_31, %c0_32, %c0_33] : memref<2x1x128xf32, #tpu.memory_space<vmem>>, vector<1x1x128xf32>
    %80 = vector.shape_cast %79 : vector<1x1x128xf32> to vector<1x128xf32>
    %81 = vector.broadcast %80 : vector<1x128xf32> to vector<8x128xf32>
    %82 = arith.addf %78, %81 : vector<8x128xf32>
    %83 = vector.shape_cast %82 : vector<8x128xf32> to vector<8x1x128xf32>
    %84 = vector.broadcast %83 : vector<8x1x128xf32> to vector<8x16x128xf32>
    %85 = arith.addf %74, %84 : vector<8x16x128xf32>
    %86 = math.tanh %85 : vector<8x16x128xf32>
    %c0_34 = arith.constant 0 : index
    %c0_35 = arith.constant 0 : index
    %c0_36 = arith.constant 0 : index
    %87 = vector.load %arg10[%c0_34, %c0_35, %c0_36] : memref<2x1x128xf32, #tpu.memory_space<vmem>>, vector<1x1x128xf32>
    %88 = vector.shape_cast %87 : vector<1x1x128xf32> to vector<1x128xf32>
    %89 = vector.shape_cast %88 : vector<1x128xf32> to vector<1x1x128xf32>
    %90 = vector.broadcast %89 : vector<1x1x128xf32> to vector<8x16x128xf32>
    %91 = arith.mulf %86, %90 : vector<8x16x128xf32>
    %cst_37 = arith.constant dense<0.000000e+00> : vector<8x16xf32>
    %92 = vector.multi_reduction <add>, %91, %cst_37 [2] : vector<8x16x128xf32> to vector<8x16xf32>
    %c0_38 = arith.constant 0 : index
    %c0_39 = arith.constant 0 : index
    %c0_40 = arith.constant 0 : index
    %93 = vector.load %arg11[%c0_38, %c0_39, %c0_40] : memref<2x1x1xf32, #tpu.memory_space<vmem>>, vector<1x1x1xf32>
    %94 = vector.shape_cast %93 : vector<1x1x1xf32> to vector<1x1xf32>
    %95 = vector.broadcast %94 : vector<1x1xf32> to vector<8x16xf32>
    %96 = arith.addf %92, %95 : vector<8x16xf32>
    %cst_41 = arith.constant dense<0xFF800000> : vector<8xf32>
    %97 = vector.multi_reduction <maximumf>, %96, %cst_41 [1] : vector<8x16xf32> to vector<8xf32>
    %98 = vector.shape_cast %97 : vector<8xf32> to vector<8x1xf32>
    %99 = vector.broadcast %98 : vector<8x1xf32> to vector<8x16xf32>
    %100 = arith.subf %96, %99 : vector<8x16xf32>
    %101 = math.exp %100 : vector<8x16xf32>
    %cst_42 = arith.constant dense<0.000000e+00> : vector<8xf32>
    %102 = vector.multi_reduction <add>, %101, %cst_42 [1] : vector<8x16xf32> to vector<8xf32>
    %103 = vector.shape_cast %102 : vector<8xf32> to vector<8x1xf32>
    %104 = tpu.reciprocal %103 {approx = true} : vector<8x1xf32> -> vector<8x1xf32>
    %105 = vector.broadcast %104 : vector<8x1xf32> to vector<8x16xf32>
    %106 = arith.mulf %101, %105 : vector<8x16xf32>
    %107 = vector.shape_cast %106 : vector<8x16xf32> to vector<8x16x1xf32>
    %108 = vector.broadcast %107 : vector<8x16x1xf32> to vector<8x16x128xf32>
    %109 = arith.mulf %108, %74 : vector<8x16x128xf32>
    %cst_43 = arith.constant dense<0.000000e+00> : vector<8x128xf32>
    %110 = vector.multi_reduction <add>, %109, %cst_43 [1] : vector<8x16x128xf32> to vector<8x128xf32>
    %111 = arith.addf %70, %110 : vector<8x128xf32>
    %112 = arith.truncf %111 : vector<8x128xf32> to vector<8x128xbf16>
    %c1 = arith.constant 1 : index
    %c0_44 = arith.constant 0 : index
    %c0_45 = arith.constant 0 : index
    %113 = vector.load %arg8[%c1, %c0_44, %c0_45] : memref<2x128x128xbf16, #tpu.memory_space<vmem>>, vector<1x128x128xbf16>
    %114 = vector.shape_cast %113 : vector<1x128x128xbf16> to vector<128x128xbf16>
    %cst_46 = arith.constant dense<0.000000e+00> : vector<8x128xf32>
    %115 = tpu.matmul %112, %114, %cst_46 {dimension_numbers = #tpu.dot_dimension_numbers<[1], [0], [0], [1], [0, 0, 1, 1], [], []>} : vector<8x128xbf16>, vector<128x128xbf16>, vector<8x128xf32> -> vector<8x128xf32>
    %c1_47 = arith.constant 1 : index
    %c0_48 = arith.constant 0 : index
    %c0_49 = arith.constant 0 : index
    %116 = vector.load %arg9[%c1_47, %c0_48, %c0_49] : memref<2x1x128xf32, #tpu.memory_space<vmem>>, vector<1x1x128xf32>
    %117 = vector.shape_cast %116 : vector<1x1x128xf32> to vector<1x128xf32>
    %118 = vector.broadcast %117 : vector<1x128xf32> to vector<8x128xf32>
    %119 = arith.addf %115, %118 : vector<8x128xf32>
    %120 = vector.shape_cast %119 : vector<8x128xf32> to vector<8x1x128xf32>
    %121 = vector.broadcast %120 : vector<8x1x128xf32> to vector<8x16x128xf32>
    %122 = arith.addf %74, %121 : vector<8x16x128xf32>
    %123 = math.tanh %122 : vector<8x16x128xf32>
    %c1_50 = arith.constant 1 : index
    %c0_51 = arith.constant 0 : index
    %c0_52 = arith.constant 0 : index
    %124 = vector.load %arg10[%c1_50, %c0_51, %c0_52] : memref<2x1x128xf32, #tpu.memory_space<vmem>>, vector<1x1x128xf32>
    %125 = vector.shape_cast %124 : vector<1x1x128xf32> to vector<1x128xf32>
    %126 = vector.shape_cast %125 : vector<1x128xf32> to vector<1x1x128xf32>
    %127 = vector.broadcast %126 : vector<1x1x128xf32> to vector<8x16x128xf32>
    %128 = arith.mulf %123, %127 : vector<8x16x128xf32>
    %cst_53 = arith.constant dense<0.000000e+00> : vector<8x16xf32>
    %129 = vector.multi_reduction <add>, %128, %cst_53 [2] : vector<8x16x128xf32> to vector<8x16xf32>
    %c1_54 = arith.constant 1 : index
    %c0_55 = arith.constant 0 : index
    %c0_56 = arith.constant 0 : index
    %130 = vector.load %arg11[%c1_54, %c0_55, %c0_56] : memref<2x1x1xf32, #tpu.memory_space<vmem>>, vector<1x1x1xf32>
    %131 = vector.shape_cast %130 : vector<1x1x1xf32> to vector<1x1xf32>
    %132 = vector.broadcast %131 : vector<1x1xf32> to vector<8x16xf32>
    %133 = arith.addf %129, %132 : vector<8x16xf32>
    %cst_57 = arith.constant dense<0xFF800000> : vector<8xf32>
    %134 = vector.multi_reduction <maximumf>, %133, %cst_57 [1] : vector<8x16xf32> to vector<8xf32>
    %135 = vector.shape_cast %134 : vector<8xf32> to vector<8x1xf32>
    %136 = vector.broadcast %135 : vector<8x1xf32> to vector<8x16xf32>
    %137 = arith.subf %133, %136 : vector<8x16xf32>
    %138 = math.exp %137 : vector<8x16xf32>
    %cst_58 = arith.constant dense<0.000000e+00> : vector<8xf32>
    %139 = vector.multi_reduction <add>, %138, %cst_58 [1] : vector<8x16xf32> to vector<8xf32>
    %140 = vector.shape_cast %139 : vector<8xf32> to vector<8x1xf32>
    %141 = tpu.reciprocal %140 {approx = true} : vector<8x1xf32> -> vector<8x1xf32>
    %142 = vector.broadcast %141 : vector<8x1xf32> to vector<8x16xf32>
    %143 = arith.mulf %138, %142 : vector<8x16xf32>
    %144 = vector.shape_cast %143 : vector<8x16xf32> to vector<8x16x1xf32>
    %145 = vector.broadcast %144 : vector<8x16x1xf32> to vector<8x16x128xf32>
    %146 = arith.mulf %145, %74 : vector<8x16x128xf32>
    %cst_59 = arith.constant dense<0.000000e+00> : vector<8x128xf32>
    %147 = vector.multi_reduction <add>, %146, %cst_59 [1] : vector<8x16x128xf32> to vector<8x128xf32>
    %148 = arith.addf %111, %147 : vector<8x128xf32>
    %c0_60 = arith.constant 0 : index
    %c0_61 = arith.constant 0 : index
    %149 = vector.load %arg12[%c0_60, %c0_61] : memref<8x128xf32, #tpu.memory_space<vmem>>, vector<8x128xf32>
    tpu.vector_store %arg12[%c0_60, %c0_61], %148 {strides = array<i32>} : memref<8x128xf32, #tpu.memory_space<vmem>>, vector<8x128xf32>,
    return
  }
  func.func @transform_0(%arg0: i32) -> (i32, i32) {
    %c0_i32 = arith.constant 0 : i32
    %c0_i32_0 = arith.constant 0 : i32
    return %arg0, %c0_i32 : i32, i32
  }
  func.func @transform_1(%arg0: i32) -> (i32, i32) {
    %c0_i32 = arith.constant 0 : i32
    %c0_i32_0 = arith.constant 0 : i32
    %c0_i32_1 = arith.constant 0 : i32
    return %c0_i32, %c0_i32_0 : i32, i32
  }
  func.func @transform_2(%arg0: i32) -> (i32, i32, i32) {
    %c0_i32 = arith.constant 0 : i32
    %c0_i32_0 = arith.constant 0 : i32
    %c0_i32_1 = arith.constant 0 : i32
    return %arg0, %c0_i32, %c0_i32_0 : i32, i32, i32
  }
  func.func @transform_3(%arg0: i32) -> (i32, i32) {
    %c0_i32 = arith.constant 0 : i32
    %c0_i32_0 = arith.constant 0 : i32
    %c0_i32_1 = arith.constant 0 : i32
    return %c0_i32, %c0_i32_0 : i32, i32
  }
  func.func @transform_4(%arg0: i32) -> (i32, i32) {
    %c0_i32 = arith.constant 0 : i32
    %c0_i32_0 = arith.constant 0 : i32
    %c0_i32_1 = arith.constant 0 : i32
    return %c0_i32, %c0_i32_0 : i32, i32
  }
  func.func @transform_5(%arg0: i32) -> (i32, i32) {
    %c0_i32 = arith.constant 0 : i32
    %c0_i32_0 = arith.constant 0 : i32
    %c0_i32_1 = arith.constant 0 : i32
    return %c0_i32, %c0_i32_0 : i32, i32
  }
  func.func @transform_6(%arg0: i32) -> (i32, i32) {
    %c0_i32 = arith.constant 0 : i32
    %c0_i32_0 = arith.constant 0 : i32
    %c0_i32_1 = arith.constant 0 : i32
    return %c0_i32, %c0_i32_0 : i32, i32
  }
  func.func @transform_7(%arg0: i32) -> (i32, i32, i32) {
    %c0_i32 = arith.constant 0 : i32
    %c0_i32_0 = arith.constant 0 : i32
    %c0_i32_1 = arith.constant 0 : i32
    %c0_i32_2 = arith.constant 0 : i32
    return %c0_i32, %c0_i32_0, %c0_i32_1 : i32, i32, i32
  }
  func.func @transform_8(%arg0: i32) -> (i32, i32, i32) {
    %c0_i32 = arith.constant 0 : i32
    %c0_i32_0 = arith.constant 0 : i32
    %c0_i32_1 = arith.constant 0 : i32
    %c0_i32_2 = arith.constant 0 : i32
    return %c0_i32, %c0_i32_0, %c0_i32_1 : i32, i32, i32
  }
  func.func @transform_9(%arg0: i32) -> (i32, i32, i32) {
    %c0_i32 = arith.constant 0 : i32
    %c0_i32_0 = arith.constant 0 : i32
    %c0_i32_1 = arith.constant 0 : i32
    %c0_i32_2 = arith.constant 0 : i32
    return %c0_i32, %c0_i32_0, %c0_i32_1 : i32, i32, i32
  }
  func.func @transform_10(%arg0: i32) -> (i32, i32, i32) {
    %c0_i32 = arith.constant 0 : i32
    %c0_i32_0 = arith.constant 0 : i32
    %c0_i32_1 = arith.constant 0 : i32
    %c0_i32_2 = arith.constant 0 : i32
    return %c0_i32, %c0_i32_0, %c0_i32_1 : i32, i32, i32
  }
  func.func @transform_11(%arg0: i32) -> (i32, i32) {
    %c0_i32 = arith.constant 0 : i32
    %c0_i32_0 = arith.constant 0 : i32
    return %arg0, %c0_i32 : i32, i32
  }
}

</mosaic_0001>

<llo_original>
// kernel: tpu_custom_call.1
$region0: #{tpu_custom_call.1}
  #allocation0 [shape = 'u32[]', space=smem, size = 0x4, offset = 0x4, fixed_abs, tag = 'smem constant byte address 0x4 - core index']
  #allocation1 [shape = 'u32[144,128]{1,0:T(1,128)}', space=vmem, size = 0x12000, scoped, tag = 'internal scratch']
  %s0 = inlined_call_operand.vmem [shape: s32[16,8], index: 0, kind: input, shape index: {}]
  %s1 = inlined_call_operand.hbm [shape: bf16[64,128], index: 1, kind: input, shape index: {}]
  %s2 = inlined_call_operand.hbm [shape: bf16[16,16,128], index: 2, kind: input, shape index: {}]
  %s3 = inlined_call_operand.hbm [shape: bf16[128,128], index: 3, kind: input, shape index: {}]
  %s4 = inlined_call_operand.hbm [shape: bf16[128,128], index: 4, kind: input, shape index: {}]
  %s5 = inlined_call_operand.vmem [shape: f32[1,128], index: 5, kind: input, shape index: {}]
  %s6 = inlined_call_operand.hbm [shape: bf16[128,128], index: 6, kind: input, shape index: {}]
  %s7 = inlined_call_operand.hbm [shape: bf16[2,128,128], index: 7, kind: input, shape index: {}]
  %s8 = inlined_call_operand.vmem [shape: f32[2,1,128], index: 8, kind: input, shape index: {}]
  %s9 = inlined_call_operand.vmem [shape: f32[2,1,128], index: 9, kind: input, shape index: {}]
  %s10 = inlined_call_operand.vmem [shape: f32[2,1,1], index: 10, kind: input, shape index: {}]
  %s11 = inlined_call_operand.hbm [shape: f32[16,128], index: 11, kind: output, shape index: {}]
  %s12 = sld [smem:[#allocation0]]
  $region101: #{tpu_custom_call.1} parent=0
    _
  %s14 = ssub.s32 1, %s12
  %s15 = scalar_select 0, %s14, %s12
  $region1: #{tpu_custom_call.1} parent=0
    #allocation2 [shape = 'u8[16384]{0}', space=vmem, size = 0x4000, scoped, tag = 'input window, operand 1, single buffered']
    #allocation3 [shape = 's32[2]{0}', space=sflag, size = 0x8, scoped, tag = 'scoped memory for tpu_custom_call.1']
    #allocation4 [shape = 's32[2]{0}', space=sflag, size = 0x8, scoped, tag = 'scoped memory for tpu_custom_call.1']
    #allocation5 [shape = 'u8[65536]{0}', space=vmem, size = 0x10000, scoped, tag = 'input window, operand 2']
    #allocation6 [shape = 's32[2]{0}', space=sflag, size = 0x8, scoped, tag = 'scoped memory for tpu_custom_call.1']
    #allocation7 [shape = 'u8[32768]{0}', space=vmem, size = 0x8000, scoped, tag = 'input window, operand 3, single buffered']
    #allocation8 [shape = 'u8[32768]{0}', space=vmem, size = 0x8000, scoped, tag = 'input window, operand 4, single buffered']
    #allocation9 [shape = 's32[1]{0}', space=sflag, size = 0x4, scoped, tag = 'scoped memory for tpu_custom_call.1']
    #allocation10 [shape = 'u8[32768]{0}', space=vmem, size = 0x8000, scoped, tag = 'input window, operand 6, single buffered']
    #allocation11 [shape = 'u8[65536]{0}', space=vmem, size = 0x10000, scoped, tag = 'input window, operand 7, single buffered']
    #allocation12 [shape = 's32[1]{0}', space=sflag, size = 0x4, scoped, tag = 'scoped memory for tpu_custom_call.1']
    #allocation13 [shape = 'u8[8192]{0}', space=vmem, size = 0x2000, scoped, tag = 'output window, operand 0']
    %16 = vsyncpa [#allocation3], 0
    %17 = vsyncpa [#allocation6], 0
    %s18 = scalar_lea.sflag [#allocation6], 1
    %19 = vsyncpa %s18, 0
    %20 = vsyncpa [#allocation9], 0
    %21 = vsyncpa [#allocation12], 0
    %22 = vsyncpa [#allocation4], 0
    %s23 = scalar_lea.sflag [#allocation4], 1
    %24 = vsyncpa %s23, 0
    loop: start=0, step=1, limit=4
    $region2: #{tpu_custom_call.1} parent=1 // loop_pre_header
      _
    $region3: #{tpu_custom_call.1} parent=1 // loop_header
      %s26 = sphi 0, %s30
      %p27 = scmp.ge.s32.totalorder %s26, 4
      %s36 = sphi 0, %s38
      %s39 = sphi 0, %s36
      %s40 = sphi 0, %s39
      %s56 = sphi 0, %s40
      %s60 = sphi 0, %s60
      %s62 = sphi 0, %s60
      %s63 = sphi 0, %s62
      %s77 = sphi 0, %s63
      %s83 = sphi 0, %s85
      %s86 = sphi 0, %s83
      %s87 = sphi 0, %s86
      %s103 = sphi 0, %s87
      %s107 = sphi 0, %s107
      %s109 = sphi 0, %s107
      %s110 = sphi 0, %s109
      %s124 = sphi 0, %s110
      %s128 = sphi 0, %s128
      %s130 = sphi 0, %s128
      %s131 = sphi 0, %s130
      %s145 = sphi 0, %s131
      %s149 = sphi 0, %s149
      %s151 = sphi 0, %s149
      %s152 = sphi 0, %s151
      %s166 = sphi 0, %s152
      %s170 = sphi 0, %s170
      %s172 = sphi 0, %s170
      %s173 = sphi 0, %s172
      %s187 = sphi 0, %s173
      %s191 = sphi 0, %s191
      %s193 = sphi 0, %s191
      %s194 = sphi 0, %s193
      %s208 = sphi 0, %s194
      %s212 = sphi 0, %s212
      %s214 = sphi 0, %s212
      %s215 = sphi 0, %s214
      %s229 = sphi 0, %s215
      %s233 = sphi 0, %s233
      %s235 = sphi 0, %s233
      %s236 = sphi 0, %s235
      %s250 = sphi 0, %s236
      %s254 = sphi 0, %s254
      %s256 = sphi 0, %s254
      %s257 = sphi 0, %s256
      %s271 = sphi 0, %s257
      %s277 = sphi 0, %s279
      %s280 = sphi 0, %s277
      %s281 = sphi 0, %s280
      %s297 = sphi 0, %s281
    $region4: #{tpu_custom_call.1} parent=1 // loop_header_branch
      %29 = sbr.rel (%p27) target = $region8
    $region5: #{tpu_custom_call.1} parent=1 // loop_body
      %s31 = ssub.s32 %s26, 1
      %s32 = ssub.s32 %s26, 2
      %s33 = sadd.s32 %s26, 1
      %s34 = ssub.s32 %s26, %s33
      %p35 = scmp.eq.s32.totalorder %s34, 0
      %s37 = sadd.s32 %s36, 1
      %s38 = scalar_select %p35, %s36, %s37
      %p41 = pneg %p35
      %p42 = scmp.eq.s32.totalorder %s26, 1
      %p43 = por %p41, %p42
      %p44 = scmp.ne.s32.totalorder %s36, %s39
      %p45 = scmp.eq.s32.totalorder %s26, 0
      %p46 = por %p44, %p45
      %p47 = scmp.ne.s32.totalorder %s36, %s39
      %p48 = scmp.eq.s32.totalorder %s31, 1
      %p49 = por %p47, %p48
      %p50 = scmp.ne.s32.totalorder %s39, %s40
      %p51 = scmp.eq.s32.totalorder %s31, 0
      %p52 = por %p50, %p51
      %p53 = scmp.ne.s32.totalorder %s39, %s40
      %p54 = scmp.eq.s32.totalorder %s32, 1
      %p55 = por %p53, %p54
      %p57 = scmp.ne.s32.totalorder %s40, %s56
      %p58 = scmp.eq.s32.totalorder %s32, 0
      %p59 = por %p57, %p58
      %s61 = sadd.s32 %s60, 1
      %p64 = scmp.eq.s32.totalorder %s26, 1
      %p65 = scmp.ne.s32.totalorder %s60, %s62
      %p66 = scmp.eq.s32.totalorder %s26, 0
      %p67 = por %p65, %p66
      %p68 = scmp.ne.s32.totalorder %s60, %s62
      %p69 = scmp.eq.s32.totalorder %s31, 1
      %p70 = por %p68, %p69
      %p71 = scmp.ne.s32.totalorder %s62, %s63
      %p72 = scmp.eq.s32.totalorder %s31, 0
      %p73 = por %p71, %p72
      %p74 = scmp.ne.s32.totalorder %s62, %s63
      %p75 = scmp.eq.s32.totalorder %s32, 1
      %p76 = por %p74, %p75
      %p78 = scmp.ne.s32.totalorder %s63, %s77
      %p79 = scmp.eq.s32.totalorder %s32, 0
      %p80 = por %p78, %p79
      %s81 = ssub.s32 %s26, %s33
      %p82 = scmp.eq.s32.totalorder %s81, 0
      %s84 = sadd.s32 %s83, 1
      %s85 = scalar_select %p82, %s83, %s84
      %p88 = pneg %p82
      %p89 = scmp.eq.s32.totalorder %s26, 1
      %p90 = por %p88, %p89
      %p91 = scmp.ne.s32.totalorder %s83, %s86
      %p92 = scmp.eq.s32.totalorder %s26, 0
      %p93 = por %p91, %p92
      %p94 = scmp.ne.s32.totalorder %s83, %s86
      %p95 = scmp.eq.s32.totalorder %s31, 1
      %p96 = por %p94, %p95
      %p97 = scmp.ne.s32.totalorder %s86, %s87
      %p98 = scmp.eq.s32.totalorder %s31, 0
      %p99 = por %p97, %p98
      %p100 = scmp.ne.s32.totalorder %s86, %s87
      %p101 = scmp.eq.s32.totalorder %s32, 1
      %p102 = por %p100, %p101
      %p104 = scmp.ne.s32.totalorder %s87, %s103
      %p105 = scmp.eq.s32.totalorder %s32, 0
      %p106 = por %p104, %p105
      %s108 = sadd.s32 %s107, 1
      %p111 = scmp.eq.s32.totalorder %s26, 1
      %p112 = scmp.ne.s32.totalorder %s107, %s109
      %p113 = scmp.eq.s32.totalorder %s26, 0
      %p114 = por %p112, %p113
      %p115 = scmp.ne.s32.totalorder %s107, %s109
      %p116 = scmp.eq.s32.totalorder %s31, 1
      %p117 = por %p115, %p116
      %p118 = scmp.ne.s32.totalorder %s109, %s110
      %p119 = scmp.eq.s32.totalorder %s31, 0
      %p120 = por %p118, %p119
      %p121 = scmp.ne.s32.totalorder %s109, %s110
      %p122 = scmp.eq.s32.totalorder %s32, 1
      %p123 = por %p121, %p122
      %p125 = scmp.ne.s32.totalorder %s110, %s124
      %p126 = scmp.eq.s32.totalorder %s32, 0
      %p127 = por %p125, %p126
      %s129 = sadd.s32 %s128, 1
      %p132 = scmp.eq.s32.totalorder %s26, 1
      %p133 = scmp.ne.s32.totalorder %s128, %s130
      %p134 = scmp.eq.s32.totalorder %s26, 0
      %p135 = por %p133, %p134
      %p136 = scmp.ne.s32.totalorder %s128, %s130
      %p137 = scmp.eq.s32.totalorder %s31, 1
      %p138 = por %p136, %p137
      %p139 = scmp.ne.s32.totalorder %s130, %s131
      %p140 = scmp.eq.s32.totalorder %s31, 0
      %p141 = por %p139, %p140
      %p142 = scmp.ne.s32.totalorder %s130, %s131
      %p143 = scmp.eq.s32.totalorder %s32, 1
      %p144 = por %p142, %p143
      %p146 = scmp.ne.s32.totalorder %s131, %s145
      %p147 = scmp.eq.s32.totalorder %s32, 0
      %p148 = por %p146, %p147
      %s150 = sadd.s32 %s149, 1
      %p153 = scmp.eq.s32.totalorder %s26, 1
      %p154 = scmp.ne.s32.totalorder %s149, %s151
      %p155 = scmp.eq.s32.totalorder %s26, 0
      %p156 = por %p154, %p155
      %p157 = scmp.ne.s32.totalorder %s149, %s151
      %p158 = scmp.eq.s32.totalorder %s31, 1
      %p159 = por %p157, %p158
      %p160 = scmp.ne.s32.totalorder %s151, %s152
      %p161 = scmp.eq.s32.totalorder %s31, 0
      %p162 = por %p160, %p161
      %p163 = scmp.ne.s32.totalorder %s151, %s152
      %p164 = scmp.eq.s32.totalorder %s32, 1
      %p165 = por %p163, %p164
      %p167 = scmp.ne.s32.totalorder %s152, %s166
      %p168 = scmp.eq.s32.totalorder %s32, 0
      %p169 = por %p167, %p168
      %s171 = sadd.s32 %s170, 1
      %p174 = scmp.eq.s32.totalorder %s26, 1
      %p175 = scmp.ne.s32.totalorder %s170, %s172
      %p176 = scmp.eq.s32.totalorder %s26, 0
      %p177 = por %p175, %p176
      %p178 = scmp.ne.s32.totalorder %s170, %s172
      %p179 = scmp.eq.s32.totalorder %s31, 1
      %p180 = por %p178, %p179
      %p181 = scmp.ne.s32.totalorder %s172, %s173
      %p182 = scmp.eq.s32.totalorder %s31, 0
      %p183 = por %p181, %p182
      %p184 = scmp.ne.s32.totalorder %s172, %s173
      %p185 = scmp.eq.s32.totalorder %s32, 1
      %p186 = por %p184, %p185
      %p188 = scmp.ne.s32.totalorder %s173, %s187
      %p189 = scmp.eq.s32.totalorder %s32, 0
      %p190 = por %p188, %p189
      %s192 = sadd.s32 %s191, 1
      %p195 = scmp.eq.s32.totalorder %s26, 1
      %p196 = scmp.ne.s32.totalorder %s191, %s193
      %p197 = scmp.eq.s32.totalorder %s26, 0
      %p198 = por %p196, %p197
      %p199 = scmp.ne.s32.totalorder %s191, %s193
      %p200 = scmp.eq.s32.totalorder %s31, 1
      %p201 = por %p199, %p200
      %p202 = scmp.ne.s32.totalorder %s193, %s194
      %p203 = scmp.eq.s32.totalorder %s31, 0
      %p204 = por %p202, %p203
      %p205 = scmp.ne.s32.totalorder %s193, %s194
      %p206 = scmp.eq.s32.totalorder %s32, 1
      %p207 = por %p205, %p206
      %p209 = scmp.ne.s32.totalorder %s194, %s208
      %p210 = scmp.eq.s32.totalorder %s32, 0
      %p211 = por %p209, %p210
      %s213 = sadd.s32 %s212, 1
      %p216 = scmp.eq.s32.totalorder %s26, 1
      %p217 = scmp.ne.s32.totalorder %s212, %s214
      %p218 = scmp.eq.s32.totalorder %s26, 0
      %p219 = por %p217, %p218
      %p220 = scmp.ne.s32.totalorder %s212, %s214
      %p221 = scmp.eq.s32.totalorder %s31, 1
      %p222 = por %p220, %p221
      %p223 = scmp.ne.s32.totalorder %s214, %s215
      %p224 = scmp.eq.s32.totalorder %s31, 0
      %p225 = por %p223, %p224
      %p226 = scmp.ne.s32.totalorder %s214, %s215
      %p227 = scmp.eq.s32.totalorder %s32, 1
      %p228 = por %p226, %p227
      %p230 = scmp.ne.s32.totalorder %s215, %s229
      %p231 = scmp.eq.s32.totalorder %s32, 0
      %p232 = por %p230, %p231
      %s234 = sadd.s32 %s233, 1
      %p237 = scmp.eq.s32.totalorder %s26, 1
      %p238 = scmp.ne.s32.totalorder %s233, %s235
      %p239 = scmp.eq.s32.totalorder %s26, 0
      %p240 = por %p238, %p239
      %p241 = scmp.ne.s32.totalorder %s233, %s235
      %p242 = scmp.eq.s32.totalorder %s31, 1
      %p243 = por %p241, %p242
      %p244 = scmp.ne.s32.totalorder %s235, %s236
      %p245 = scmp.eq.s32.totalorder %s31, 0
      %p246 = por %p244, %p245
      %p247 = scmp.ne.s32.totalorder %s235, %s236
      %p248 = scmp.eq.s32.totalorder %s32, 1
      %p249 = por %p247, %p248
      %p251 = scmp.ne.s32.totalorder %s236, %s250
      %p252 = scmp.eq.s32.totalorder %s32, 0
      %p253 = por %p251, %p252
      %s255 = sadd.s32 %s254, 1
      %p258 = scmp.eq.s32.totalorder %s26, 1
      %p259 = scmp.ne.s32.totalorder %s254, %s256
      %p260 = scmp.eq.s32.totalorder %s26, 0
      %p261 = por %p259, %p260
      %p262 = scmp.ne.s32.totalorder %s254, %s256
      %p263 = scmp.eq.s32.totalorder %s31, 1
      %p264 = por %p262, %p263
      %p265 = scmp.ne.s32.totalorder %s256, %s257
      %p266 = scmp.eq.s32.totalorder %s31, 0
      %p267 = por %p265, %p266
      %p268 = scmp.ne.s32.totalorder %s256, %s257
      %p269 = scmp.eq.s32.totalorder %s32, 1
      %p270 = por %p268, %p269
      %p272 = scmp.ne.s32.totalorder %s257, %s271
      %p273 = scmp.eq.s32.totalorder %s32, 0
      %p274 = por %p272, %p273
      %s275 = ssub.s32 %s26, %s33
      %p276 = scmp.eq.s32.totalorder %s275, 0
      %s278 = sadd.s32 %s277, 1
      %s279 = scalar_select %p276, %s277, %s278
      %p282 = pneg %p276
      %p283 = scmp.eq.s32.totalorder %s26, 1
      %p284 = por %p282, %p283
      %p285 = scmp.ne.s32.totalorder %s277, %s280
      %p286 = scmp.eq.s32.totalorder %s26, 0
      %p287 = por %p285, %p286
      %p288 = scmp.ne.s32.totalorder %s277, %s280
      %p289 = scmp.eq.s32.totalorder %s31, 1
      %p290 = por %p288, %p289
      %p291 = scmp.ne.s32.totalorder %s280, %s281
      %p292 = scmp.eq.s32.totalorder %s31, 0
      %p293 = por %p291, %p292
      %p294 = scmp.ne.s32.totalorder %s280, %s281
      %p295 = scmp.eq.s32.totalorder %s32, 1
      %p296 = por %p294, %p295
      %p298 = scmp.ne.s32.totalorder %s281, %s297
      %p299 = scmp.eq.s32.totalorder %s32, 0
      %p300 = por %p298, %p299
      %p301 = scmp.le.s32.totalorder 1, %s26
      %p302 = scmp.lt.s32.totalorder %s26, 3
      %p303 = pnand %p301, %p302
      %p304 = pneg %p303
      // Predicated region
      $region9: #{tpu_custom_call.1} parent=5 // pred_check
        _
      $region10: #{tpu_custom_call.1} parent=5 // pred_check_branch
        %306 = sbr.rel (%p303) target = $region12
      $region11: #{tpu_custom_call.1} parent=5 // pred_region
        %s307 = ssub.s32 %s26, 1
        // Predicated region
        $region13: #{tpu_custom_call.1} parent=11 // pred_check
          %p308 = pneg %p73
        $region14: #{tpu_custom_call.1} parent=11 // pred_check_branch
          %310 = sbr.rel (%p308) target = $region16
        $region15: #{tpu_custom_call.1} parent=11 // pred_region
          %s312 = ssub.s32 512, 512
          %313 = vsyncadd [#allocation3], %s312
          %s314 = sshll.u32 [#allocation2], 4
          %s315 = int_to_ptr.vmem [resolvable:$true] %s314
          %320 = dma.hbm_to_vmem [thread:$0]  %s1, 512, %s315, [#allocation3], 64, 64, 4
        $region16: #{tpu_custom_call.1} parent=11 // pred_fallthru
          _
        // Predicated region
        $region17: #{tpu_custom_call.1} parent=11 // pred_check
          %p321 = pneg %p120
        $region18: #{tpu_custom_call.1} parent=11 // pred_check_branch
          %323 = sbr.rel (%p321) target = $region20
        $region19: #{tpu_custom_call.1} parent=11 // pred_region
          %s325 = ssub.s32 1024, 1024
          %326 = vsyncadd [#allocation6], %s325
          %s327 = sshll.u32 [#allocation7], 4
          %s328 = int_to_ptr.vmem [resolvable:$true] %s327
          %333 = dma.hbm_to_vmem [thread:$0]  %s3, 1024, %s328, [#allocation6], 64, 64, 4
        $region20: #{tpu_custom_call.1} parent=11 // pred_fallthru
          _
        // Predicated region
        $region21: #{tpu_custom_call.1} parent=11 // pred_check
          %p334 = pneg %p141
        $region22: #{tpu_custom_call.1} parent=11 // pred_check_branch
          %336 = sbr.rel (%p334) target = $region24
        $region23: #{tpu_custom_call.1} parent=11 // pred_region
          %s338 = ssub.s32 1024, 1024
          %339 = vsyncadd [#allocation9], %s338
          %s340 = sshll.u32 [#allocation8], 4
          %s341 = int_to_ptr.vmem [resolvable:$true] %s340
          %346 = dma.hbm_to_vmem [thread:$0]  %s4, 1024, %s341, [#allocation9], 64, 64, 4
        $region24: #{tpu_custom_call.1} parent=11 // pred_fallthru
          _
        // Predicated region
        $region25: #{tpu_custom_call.1} parent=11 // pred_check
          %p347 = pneg %p162
        $region26: #{tpu_custom_call.1} parent=11 // pred_check_branch
          %349 = sbr.rel (%p347) target = $region28
        $region27: #{tpu_custom_call.1} parent=11 // pred_region
          _
        $region28: #{tpu_custom_call.1} parent=11 // pred_fallthru
          _
        // Predicated region
        $region29: #{tpu_custom_call.1} parent=11 // pred_check
          %p350 = pneg %p183
        $region30: #{tpu_custom_call.1} parent=11 // pred_check_branch
          %352 = sbr.rel (%p350) target = $region32
        $region31: #{tpu_custom_call.1} parent=11 // pred_region
          %s354 = ssub.s32 1024, 1024
          %355 = vsyncadd [#allocation9], %s354
          %s356 = sshll.u32 [#allocation10], 4
          %s357 = int_to_ptr.vmem [resolvable:$true] %s356
          %362 = dma.hbm_to_vmem [thread:$0]  %s6, 1024, %s357, [#allocation9], 64, 64, 4
        $region32: #{tpu_custom_call.1} parent=11 // pred_fallthru
          _
        // Predicated region
        $region33: #{tpu_custom_call.1} parent=11 // pred_check
          %p363 = pneg %p204
        $region34: #{tpu_custom_call.1} parent=11 // pred_check_branch
          %365 = sbr.rel (%p363) target = $region36
        $region35: #{tpu_custom_call.1} parent=11 // pred_region
          %s367 = ssub.s32 2048, 2048
          %368 = vsyncadd [#allocation12], %s367
          %s369 = sshll.u32 [#allocation11], 4
          %s370 = int_to_ptr.vmem [resolvable:$true] %s369
          %375 = dma.hbm_to_vmem [thread:$0]  %s7, 2048, %s370, [#allocation12], 64, 64, 4
        $region36: #{tpu_custom_call.1} parent=11 // pred_fallthru
          _
        // Predicated region
        $region37: #{tpu_custom_call.1} parent=11 // pred_check
          %p376 = pneg %p225
        $region38: #{tpu_custom_call.1} parent=11 // pred_check_branch
          %378 = sbr.rel (%p376) target = $region40
        $region39: #{tpu_custom_call.1} parent=11 // pred_region
          _
        $region40: #{tpu_custom_call.1} parent=11 // pred_fallthru
          _
        // Predicated region
        $region41: #{tpu_custom_call.1} parent=11 // pred_check
          %p379 = pneg %p246
        $region42: #{tpu_custom_call.1} parent=11 // pred_check_branch
          %381 = sbr.rel (%p379) target = $region44
        $region43: #{tpu_custom_call.1} parent=11 // pred_region
          _
        $region44: #{tpu_custom_call.1} parent=11 // pred_fallthru
          _
        // Predicated region
        $region45: #{tpu_custom_call.1} parent=11 // pred_check
          %p382 = pneg %p267
        $region46: #{tpu_custom_call.1} parent=11 // pred_check_branch
          %384 = sbr.rel (%p382) target = $region48
        $region47: #{tpu_custom_call.1} parent=11 // pred_region
          _
        $region48: #{tpu_custom_call.1} parent=11 // pred_fallthru
          _
      $region12: #{tpu_custom_call.1} parent=5 // pred_fallthru
        _
      %p385 = scmp.lt.s32.totalorder %s26, 2
      // Predicated region
      $region49: #{tpu_custom_call.1} parent=5 // pred_check
        %p386 = pneg %p385
      $region50: #{tpu_custom_call.1} parent=5 // pred_check_branch
        %388 = sbr.rel (%p386) target = $region52
      $region51: #{tpu_custom_call.1} parent=5 // pred_region
        // Predicated region
        $region53: #{tpu_custom_call.1} parent=51 // pred_check
          %p389 = pneg %p46
        $region54: #{tpu_custom_call.1} parent=51 // pred_check_branch
          %391 = sbr.rel (%p389) target = $region56
        $region55: #{tpu_custom_call.1} parent=51 // pred_region
          %p392 = scmp.lt.s32.totalorder %s26, 1
          %s393 = scalar_select %p392, %s26, 1
          %s394 = smul.addr %s393, 8
          %s395 = scalar_lea.vmem %s0, %s394
        $region56: #{tpu_custom_call.1} parent=51 // pred_fallthru
          _
        // Predicated region
        $region57: #{tpu_custom_call.1} parent=51 // pred_check
          %p396 = pneg %p93
        $region58: #{tpu_custom_call.1} parent=51 // pred_check_branch
          %398 = sbr.rel (%p396) target = $region60
        $region59: #{tpu_custom_call.1} parent=51 // pred_region
          %s399 = sand.u32 %s26, 1
          %s400 = scalar_lea.sflag [#allocation6], %s399
          %s401 = sand.u32 %s83, 1
          %s402 = smul.addr %s401, 64
          %s403 = scalar_lea.vmem [#allocation5], %s402
          %s404 = smul.u32 8, %s26
          %s406 = ssub.s32 1024, 1024
          %407 = vsyncadd %s400, %s406
          %s408 = smul.addr %s404, 2
          %s409 = smul.addr %s408, 64
          %s410 = scalar_lea.hbm %s2, %s409
          %s411 = sshll.u32 %s403, 4
          %s412 = int_to_ptr.vmem [resolvable:$true] %s411
          %417 = dma.hbm_to_vmem [thread:$0]  %s410, 1024, %s412, %s400, 64, 64, 4
        $region60: #{tpu_custom_call.1} parent=51 // pred_fallthru
          _
      $region52: #{tpu_custom_call.1} parent=5 // pred_fallthru
        _
      %p418 = scmp.le.s32.totalorder 1, %s26
      %p419 = scmp.lt.s32.totalorder %s26, 3
      %p420 = pnand %p418, %p419
      %p421 = pneg %p420
      // Predicated region
      $region61: #{tpu_custom_call.1} parent=5 // pred_check
        _
      $region62: #{tpu_custom_call.1} parent=5 // pred_check_branch
        %423 = sbr.rel (%p420) target = $region64
      $region63: #{tpu_custom_call.1} parent=5 // pred_region
        %s424 = ssub.s32 %s26, 1
        // Predicated region
        $region65: #{tpu_custom_call.1} parent=63 // pred_check
          %p425 = pneg %p73
        $region66: #{tpu_custom_call.1} parent=63 // pred_check_branch
          %427 = sbr.rel (%p425) target = $region68
        $region67: #{tpu_custom_call.1} parent=63 // pred_region
          %428 = dma.done [#allocation3], 512
        $region68: #{tpu_custom_call.1} parent=63 // pred_fallthru
          _
        %s429 = sand.u32 %s31, 1
        %s430 = scalar_lea.sflag [#allocation6], %s429
        %s431 = sand.u32 %s86, 1
        %s432 = smul.addr %s431, 64
        %s433 = scalar_lea.vmem [#allocation5], %s432
        // Predicated region
        $region69: #{tpu_custom_call.1} parent=63 // pred_check
          %p434 = pneg %p99
        $region70: #{tpu_custom_call.1} parent=63 // pred_check_branch
          %436 = sbr.rel (%p434) target = $region72
        $region71: #{tpu_custom_call.1} parent=63 // pred_region
          %437 = dma.done %s430, 1024
        $region72: #{tpu_custom_call.1} parent=63 // pred_fallthru
          _
        // Predicated region
        $region73: #{tpu_custom_call.1} parent=63 // pred_check
          %p438 = pneg %p120
        $region74: #{tpu_custom_call.1} parent=63 // pred_check_branch
          %440 = sbr.rel (%p438) target = $region76
        $region75: #{tpu_custom_call.1} parent=63 // pred_region
          %441 = dma.done [#allocation6], 1024
        $region76: #{tpu_custom_call.1} parent=63 // pred_fallthru
          _
        // Predicated region
        $region77: #{tpu_custom_call.1} parent=63 // pred_check
          %p442 = pneg %p141
        $region78: #{tpu_custom_call.1} parent=63 // pred_check_branch
          %444 = sbr.rel (%p442) target = $region80
        $region79: #{tpu_custom_call.1} parent=63 // pred_region
          %445 = dma.done [#allocation9], 1024
        $region80: #{tpu_custom_call.1} parent=63 // pred_fallthru
          _
        // Predicated region
        $region81: #{tpu_custom_call.1} parent=63 // pred_check
          %p446 = pneg %p183
        $region82: #{tpu_custom_call.1} parent=63 // pred_check_branch
          %448 = sbr.rel (%p446) target = $region84
        $region83: #{tpu_custom_call.1} parent=63 // pred_region
          %449 = dma.done [#allocation9], 1024
        $region84: #{tpu_custom_call.1} parent=63 // pred_fallthru
          _
        // Predicated region
        $region85: #{tpu_custom_call.1} parent=63 // pred_check
          %p450 = pneg %p204
        $region86: #{tpu_custom_call.1} parent=63 // pred_check_branch
          %452 = sbr.rel (%p450) target = $region88
        $region87: #{tpu_custom_call.1} parent=63 // pred_region
          %453 = dma.done [#allocation12], 2048
        $region88: #{tpu_custom_call.1} parent=63 // pred_fallthru
          _
        %p454 = scmp.lt.s32.totalorder %s31, 1
        %s455 = scalar_select %p454, %s31, 1
        %s456 = smul.addr %s455, 8
        %s457 = scalar_lea.vmem %s0, %s456
        %p458 = pneg %p52
        %p459 = pneg %p49
        %p460 = pneg %p73
        %p461 = pneg %p70
        %s462 = sand.u32 %s31, 1
        %s463 = scalar_lea.sflag [#allocation6], %s462
        %s464 = sand.u32 %s86, 1
        %s465 = smul.addr %s464, 64
        %s466 = scalar_lea.vmem [#allocation5], %s465
        %p467 = pneg %p99
        %p468 = pneg %p96
        %p469 = pneg %p120
        %p470 = pneg %p117
        %p471 = pneg %p141
        %p472 = pneg %p138
        %p473 = pneg %p162
        %p474 = pneg %p159
        %p475 = pneg %p183
        %p476 = pneg %p180
        %p477 = pneg %p204
        %p478 = pneg %p201
        %p479 = pneg %p225
        %p480 = pneg %p222
        %p481 = pneg %p246
        %p482 = pneg %p243
        %p483 = pneg %p267
        %p484 = pneg %p264
        %p485 = pneg %p293
        %p486 = pneg %p290
        %s487 = sand.u32 %s280, 1
        %s488 = scalar_lea.sflag [#allocation4], %s487
        %s489 = sand.u32 %s280, 1
        %s490 = smul.addr %s489, 8
        %s491 = scalar_lea.vmem [#allocation13], %s490
        %p492 = scmp.lt.s32.totalorder %s31, 1
        %s493 = scalar_select %p492, %s31, 1
        %s494 = smul.addr %s493, 8
        %s495 = scalar_lea.vmem %s0, %s494
        %s496 = smul.u32 8, %s31
        %v498 = vld [vmem:[%s495] sm:$0xff]
        %v499 = vlaneseq
        %v500 = vand.u32 %v499, 127
        %v501 = vlaneseq
        %v502 = vshrl.u32 %v501, 7
        %v503 = vsub.s32 0, %v502
        %v504 = vrot.slane %v498, %v503
        %506 = vbcast.lane.b32.xlu0 %v504, 256
        %v507 = vpop.permute.xlu0 %506
        %v508 = vlaneseq
        %v509 = vshrl.u32 %v508, 7
        %v510 = vsub.s32 1, %v509
        %v511 = vrot.slane %v498, %v510
        %513 = vbcast.lane.b32.xlu0 %v511, 256
        %v514 = vpop.permute.xlu0 %513
        %v515 = vlaneseq
        %v516 = vshrl.u32 %v515, 7
        %v517 = vsub.s32 2, %v516
        %v518 = vrot.slane %v498, %v517
        %520 = vbcast.lane.b32.xlu0 %v518, 256
        %v521 = vpop.permute.xlu0 %520
        %v522 = vlaneseq
        %v523 = vshrl.u32 %v522, 7
        %v524 = vsub.s32 3, %v523
        %v525 = vrot.slane %v498, %v524
        %527 = vbcast.lane.b32.xlu0 %v525, 256
        %v528 = vpop.permute.xlu0 %527
        %v529 = vlaneseq
        %v530 = vshrl.u32 %v529, 7
        %v531 = vsub.s32 4, %v530
        %v532 = vrot.slane %v498, %v531
        %534 = vbcast.lane.b32.xlu0 %v532, 256
        %v535 = vpop.permute.xlu0 %534
        %v536 = vlaneseq
        %v537 = vshrl.u32 %v536, 7
        %v538 = vsub.s32 5, %v537
        %v539 = vrot.slane %v498, %v538
        %541 = vbcast.lane.b32.xlu0 %v539, 256
        %v542 = vpop.permute.xlu0 %541
        %v543 = vlaneseq
        %v544 = vshrl.u32 %v543, 7
        %v545 = vsub.s32 6, %v544
        %v546 = vrot.slane %v498, %v545
        %548 = vbcast.lane.b32.xlu0 %v546, 256
        %v549 = vpop.permute.xlu0 %548
        %v550 = vlaneseq
        %v551 = vshrl.u32 %v550, 7
        %v552 = vsub.s32 7, %v551
        %v553 = vrot.slane %v498, %v552
        %555 = vbcast.lane.b32.xlu0 %v553, 256
        %v556 = vpop.permute.xlu0 %555
        %vm557 = vcmp.eq.s32.totalorder %v507, %v500
        %vm558 = vcmp.eq.s32.totalorder %v514, %v500
        %vm559 = vcmp.eq.s32.totalorder %v521, %v500
        %vm560 = vcmp.eq.s32.totalorder %v528, %v500
        %vm561 = vcmp.eq.s32.totalorder %v535, %v500
        %vm562 = vcmp.eq.s32.totalorder %v542, %v500
        %vm563 = vcmp.eq.s32.totalorder %v549, %v500
        %vm564 = vcmp.eq.s32.totalorder %v556, %v500
        %v565 = vsel %vm557, 1.0, 0.0
        %v566 = vsel %vm558, 1.0, 0.0
        %v567 = vsel %vm559, 1.0, 0.0
        %v568 = vsel %vm560, 1.0, 0.0
        %v569 = vsel %vm561, 1.0, 0.0
        %v570 = vsel %vm562, 1.0, 0.0
        %v571 = vsel %vm563, 1.0, 0.0
        %v572 = vsel %vm564, 1.0, 0.0
        %v573 = vpack.c.bf16 %v565, %v565
        %v574 = vpack.c.bf16 %v566, %v566
        %v575 = vpack.c.bf16 %v567, %v567
        %v576 = vpack.c.bf16 %v568, %v568
        %v577 = vpack.c.bf16 %v569, %v569
        %v578 = vpack.c.bf16 %v570, %v570
        %v579 = vpack.c.bf16 %v571, %v571
        %v580 = vpack.c.bf16 %v572, %v572
        %v581 = vld [vmem:[#allocation2] sm:$0xf]
        %v582 = vld [vmem:[#allocation2 + $0x4] sm:$0xf]
        %v583 = vld [vmem:[#allocation2 + $0x8] sm:$0xf]
        %v584 = vld [vmem:[#allocation2 + $0xc] sm:$0xf]
        %v585 = vld [vmem:[#allocation2 + $0x10] sm:$0xf]
        %v586 = vld [vmem:[#allocation2 + $0x14] sm:$0xf]
        %v587 = vld [vmem:[#allocation2 + $0x18] sm:$0xf]
        %v588 = vld [vmem:[#allocation2 + $0x1c] sm:$0xf]
        %v597 = vunpack.c.l.b16 %v573
        %v598 = vunpack.c.l.b16 %v574
        %v599 = vunpack.c.l.b16 %v575
        %v600 = vunpack.c.l.b16 %v576
        %v601 = vunpack.c.l.b16 %v577
        %v602 = vunpack.c.l.b16 %v578
        %v603 = vunpack.c.l.b16 %v579
        %v604 = vunpack.c.l.b16 %v580
        %v605 = vpack.c.b16 %v598, %v597
        %v606 = vpack.c.b16 %v600, %v599
        %v607 = vpack.c.b16 %v602, %v601
        %v608 = vpack.c.b16 %v604, %v603
        %v617 = vunpack.c.l.b16 %v581
        %v618 = vunpack.c.l.b16 %v582
        %v619 = vunpack.c.l.b16 %v583
        %v620 = vunpack.c.l.b16 %v584
        %v621 = vunpack.c.l.b16 %v585
        %v622 = vunpack.c.l.b16 %v586
        %v623 = vunpack.c.l.b16 %v587
        %v624 = vunpack.c.l.b16 %v588
        %v625 = vpack.c.b16 %v618, %v617
        %v626 = vpack.c.b16 %v620, %v619
        %v627 = vpack.c.b16 %v622, %v621
        %v628 = vpack.c.b16 %v624, %v623
        %vm633 = vcmask 523264
        %v635 = vsel %vm633, %v605, 0
        %v638 = vsel %vm633, %v606, 0
        %v641 = vsel %vm633, %v607, 0
        %v644 = vsel %vm633, %v608, 0
        %646 = vmatprep.subr.bf16.mxu0 0
        %647 = vmatpush1.bf16.msra.mxu0 %v625
        %648 = vmatprep.subr.bf16.mxu0 0
        %649 = vmatpush1.bf16.msra.mxu0 %v626
        %650 = vmatprep.subr.bf16.mxu0 0
        %651 = vmatpush1.bf16.msra.mxu0 %v627
        %652 = vmatprep.subr.bf16.mxu0 0
        %653 = vmatpush1.bf16.msra.mxu0 %v628
        %654 = vmatprep.subr.bf16.mxu0 0
        %655 = vmatpush1.bf16.msra.mxu0 0
        %656 = vmatprep.subr.bf16.mxu0 0
        %657 = vmatpush1.bf16.msra.mxu0 0
        %658 = vmatprep.subr.bf16.mxu0 0
        %659 = vmatpush1.bf16.msra.mxu0 0
        %660 = vmatprep.subr.bf16.mxu0 0
        %661 = vmatpush1.bf16.msra.mxu0 0
        %662 = vmatprep.subr.bf16.mxu0 0
        %663 = vmatpush1.bf16.msra.mxu0 0
        %664 = vmatprep.subr.bf16.mxu0 0
        %665 = vmatpush1.bf16.msra.mxu0 0
        %666 = vmatprep.subr.bf16.mxu0 0
        %667 = vmatpush1.bf16.msra.mxu0 0
        %668 = vmatprep.subr.bf16.mxu0 0
        %669 = vmatpush1.bf16.msra.mxu0 0
        %670 = vmatprep.subr.bf16.mxu0 0
        %671 = vmatpush1.bf16.msra.mxu0 0
        %672 = vmatprep.subr.bf16.mxu0 0
        %673 = vmatpush1.bf16.msra.mxu0 0
        %674 = vmatprep.subr.bf16.mxu0 0
        %675 = vmatpush1.bf16.msra.mxu0 0
        %676 = vmatprep.subr.bf16.mxu0 0
        %677 = vmatpush1.bf16.msra.mxu0 0
        %678 = vmatprep.mubr.bf16.mxu0 0
        %679 = vmatmul.mubr.bf16.gmra.mrb[0].mxu0 %v635
        %v680 = vpop.f32.mrb[0].mxu0
        %v681 = vadd.f32 0.0, %v680
        %v682 = vpop.f32.mrb[0].mxu0
        %v683 = vpop.f32.mrb[0].mxu0
        %v684 = vadd.f32 0.0, %v683
        %v685 = vpop.f32.mrb[0].mxu0
        %686 = vmatprep.mubr.bf16.mxu0 0
        %687 = vmatmul.mubr.bf16.gmra.mrb[0].mxu0 %v638
        %v688 = vpop.f32.mrb[0].mxu0
        %v689 = vadd.f32 0.0, %v688
        %v690 = vpop.f32.mrb[0].mxu0
        %v691 = vpop.f32.mrb[0].mxu0
        %v692 = vadd.f32 0.0, %v691
        %v693 = vpop.f32.mrb[0].mxu0
        %694 = vmatprep.mubr.bf16.mxu0 0
        %695 = vmatmul.mubr.bf16.gmra.mrb[0].mxu0 %v641
        %v696 = vpop.f32.mrb[0].mxu0
        %v697 = vadd.f32 0.0, %v696
        %v698 = vpop.f32.mrb[0].mxu0
        %v699 = vpop.f32.mrb[0].mxu0
        %v700 = vadd.f32 0.0, %v699
        %v701 = vpop.f32.mrb[0].mxu0
        %702 = vmatprep.mubr.bf16.mxu0 0
        %703 = vmatmul.mubr.bf16.gmra.mrb[0].mxu0 %v644
        %v704 = vpop.f32.mrb[0].mxu0
        %v705 = vadd.f32 0.0, %v704
        %v706 = vpop.f32.mrb[0].mxu0
        %v707 = vpop.f32.mrb[0].mxu0
        %v708 = vadd.f32 0.0, %v707
        %v709 = vpop.f32.mrb[0].mxu0
        %710 = vdwg.mxu0
        %v711 = vpack.c.bf16 %v684, %v681
        %v712 = vpack.c.bf16 %v692, %v689
        %v713 = vpack.c.bf16 %v700, %v697
        %v714 = vpack.c.bf16 %v708, %v705
        %v715 = vld [vmem:[#allocation7] sm:$0xf]
        %v716 = vld [vmem:[#allocation7 + $0x4] sm:$0xf]
        %v717 = vld [vmem:[#allocation7 + $0x8] sm:$0xf]
        %v718 = vld [vmem:[#allocation7 + $0xc] sm:$0xf]
        %v719 = vld [vmem:[#allocation7 + $0x10] sm:$0xf]
        %v720 = vld [vmem:[#allocation7 + $0x14] sm:$0xf]
        %v721 = vld [vmem:[#allocation7 + $0x18] sm:$0xf]
        %v722 = vld [vmem:[#allocation7 + $0x1c] sm:$0xf]
        %v723 = vld [vmem:[#allocation7 + $0x20] sm:$0xf]
        %v724 = vld [vmem:[#allocation7 + $0x24] sm:$0xf]
        %v725 = vld [vmem:[#allocation7 + $0x28] sm:$0xf]
        %v726 = vld [vmem:[#allocation7 + $0x2c] sm:$0xf]
        %v727 = vld [vmem:[#allocation7 + $0x30] sm:$0xf]
        %v728 = vld [vmem:[#allocation7 + $0x34] sm:$0xf]
        %v729 = vld [vmem:[#allocation7 + $0x38] sm:$0xf]
        %v730 = vld [vmem:[#allocation7 + $0x3c] sm:$0xf]
        %v747 = vunpack.c.l.b16 %v715
        %v748 = vunpack.c.l.b16 %v716
        %v749 = vunpack.c.l.b16 %v717
        %v750 = vunpack.c.l.b16 %v718
        %v751 = vunpack.c.l.b16 %v719
        %v752 = vunpack.c.l.b16 %v720
        %v753 = vunpack.c.l.b16 %v721
        %v754 = vunpack.c.l.b16 %v722
        %v755 = vunpack.c.l.b16 %v723
        %v756 = vunpack.c.l.b16 %v724
        %v757 = vunpack.c.l.b16 %v725
        %v758 = vunpack.c.l.b16 %v726
        %v759 = vunpack.c.l.b16 %v727
        %v760 = vunpack.c.l.b16 %v728
        %v761 = vunpack.c.l.b16 %v729
        %v762 = vunpack.c.l.b16 %v730
        %v763 = vpack.c.b16 %v748, %v747
        %v764 = vpack.c.b16 %v750, %v749
        %v765 = vpack.c.b16 %v752, %v751
        %v766 = vpack.c.b16 %v754, %v753
        %v767 = vpack.c.b16 %v756, %v755
        %v768 = vpack.c.b16 %v758, %v757
        %v769 = vpack.c.b16 %v760, %v759
        %v770 = vpack.c.b16 %v762, %v761
        %779 = vmatprep.subr.bf16.mxu0 0
        %780 = vmatpush1.bf16.msra.mxu0 %v763
        %781 = vmatprep.subr.bf16.mxu0 0
        %782 = vmatpush1.bf16.msra.mxu0 %v764
        %783 = vmatprep.subr.bf16.mxu0 0
        %784 = vmatpush1.bf16.msra.mxu0 %v765
        %785 = vmatprep.subr.bf16.mxu0 0
        %786 = vmatpush1.bf16.msra.mxu0 %v766
        %787 = vmatprep.subr.bf16.mxu0 0
        %788 = vmatpush1.bf16.msra.mxu0 %v767
        %789 = vmatprep.subr.bf16.mxu0 0
        %790 = vmatpush1.bf16.msra.mxu0 %v768
        %791 = vmatprep.subr.bf16.mxu0 0
        %792 = vmatpush1.bf16.msra.mxu0 %v769
        %793 = vmatprep.subr.bf16.mxu0 0
        %794 = vmatpush1.bf16.msra.mxu0 %v770
        %795 = vmatprep.subr.bf16.mxu0 0
        %796 = vmatpush1.bf16.msra.mxu0 0
        %797 = vmatprep.subr.bf16.mxu0 0
        %798 = vmatpush1.bf16.msra.mxu0 0
        %799 = vmatprep.subr.bf16.mxu0 0
        %800 = vmatpush1.bf16.msra.mxu0 0
        %801 = vmatprep.subr.bf16.mxu0 0
        %802 = vmatpush1.bf16.msra.mxu0 0
        %803 = vmatprep.subr.bf16.mxu0 0
        %804 = vmatpush1.bf16.msra.mxu0 0
        %805 = vmatprep.subr.bf16.mxu0 0
        %806 = vmatpush1.bf16.msra.mxu0 0
        %807 = vmatprep.subr.bf16.mxu0 0
        %808 = vmatpush1.bf16.msra.mxu0 0
        %809 = vmatprep.subr.bf16.mxu0 0
        %810 = vmatpush1.bf16.msra.mxu0 0
        %811 = vmatprep.mubr.bf16.mxu0 0
        %812 = vmatmul.mubr.bf16.gmra.mrb[0].mxu0 %v711
        %v813 = vpop.f32.mrb[0].mxu0
        %v814 = vadd.f32 0.0, %v813
        %v815 = vpop.f32.mrb[0].mxu0
        %v816 = vpop.f32.mrb[0].mxu0
        %v817 = vadd.f32 0.0, %v816
        %v818 = vpop.f32.mrb[0].mxu0
        %819 = vmatprep.mubr.bf16.mxu0 0
        %820 = vmatmul.mubr.bf16.gmra.mrb[0].mxu0 %v712
        %v821 = vpop.f32.mrb[0].mxu0
        %v822 = vadd.f32 0.0, %v821
        %v823 = vpop.f32.mrb[0].mxu0
        %v824 = vpop.f32.mrb[0].mxu0
        %v825 = vadd.f32 0.0, %v824
        %v826 = vpop.f32.mrb[0].mxu0
        %827 = vmatprep.mubr.bf16.mxu0 0
        %828 = vmatmul.mubr.bf16.gmra.mrb[0].mxu0 %v713
        %v829 = vpop.f32.mrb[0].mxu0
        %v830 = vadd.f32 0.0, %v829
        %v831 = vpop.f32.mrb[0].mxu0
        %v832 = vpop.f32.mrb[0].mxu0
        %v833 = vadd.f32 0.0, %v832
        %v834 = vpop.f32.mrb[0].mxu0
        %835 = vmatprep.mubr.bf16.mxu0 0
        %836 = vmatmul.mubr.bf16.gmra.mrb[0].mxu0 %v714
        %v837 = vpop.f32.mrb[0].mxu0
        %v838 = vadd.f32 0.0, %v837
        %v839 = vpop.f32.mrb[0].mxu0
        %v840 = vpop.f32.mrb[0].mxu0
        %v841 = vadd.f32 0.0, %v840
        %v842 = vpop.f32.mrb[0].mxu0
        %843 = vdwg.mxu0
        %v844 = vld [vmem:[%s5] sm:$0x1]
        %v846 = vlaneseq
        %v847 = vshrl.u32 %v846, 7
        %v848 = vsub.s32 0, %v847
        %v849 = vrot.slane %v844, %v848
        %v851 = vadd.f32 %v814, %v849
        %v852 = vadd.f32 %v817, %v849
        %v853 = vadd.f32 %v822, %v849
        %v854 = vadd.f32 %v825, %v849
        %v855 = vadd.f32 %v830, %v849
        %v856 = vadd.f32 %v833, %v849
        %v857 = vadd.f32 %v838, %v849
        %v858 = vadd.f32 %v841, %v849
        %v859 = vld [vmem:[%s433] sm:$0xf]
        %v860 = vld [vmem:[%s433 + $0x4] sm:$0xf]
        %v861 = vld [vmem:[%s433 + $0x8] sm:$0xf]
        %v862 = vld [vmem:[%s433 + $0xc] sm:$0xf]
        %v863 = vld [vmem:[%s433 + $0x10] sm:$0xf]
        %v864 = vld [vmem:[%s433 + $0x14] sm:$0xf]
        %v865 = vld [vmem:[%s433 + $0x18] sm:$0xf]
        %v866 = vld [vmem:[%s433 + $0x1c] sm:$0xf]
        %v867 = vld [vmem:[%s433 + $0x20] sm:$0xf]
        %v868 = vld [vmem:[%s433 + $0x24] sm:$0xf]
        %v869 = vld [vmem:[%s433 + $0x28] sm:$0xf]
        %v870 = vld [vmem:[%s433 + $0x2c] sm:$0xf]
        %v871 = vld [vmem:[%s433 + $0x30] sm:$0xf]
        %v872 = vld [vmem:[%s433 + $0x34] sm:$0xf]
        %v873 = vld [vmem:[%s433 + $0x38] sm:$0xf]
        %v874 = vld [vmem:[%s433 + $0x3c] sm:$0xf]
        %v875 = vld [vmem:[#allocation8] sm:$0xf]
        %v876 = vld [vmem:[#allocation8 + $0x4] sm:$0xf]
        %v877 = vld [vmem:[#allocation8 + $0x8] sm:$0xf]
        %v878 = vld [vmem:[#allocation8 + $0xc] sm:$0xf]
        %v879 = vld [vmem:[#allocation8 + $0x10] sm:$0xf]
        %v880 = vld [vmem:[#allocation8 + $0x14] sm:$0xf]
        %v881 = vld [vmem:[#allocation8 + $0x18] sm:$0xf]
        %v882 = vld [vmem:[#allocation8 + $0x1c] sm:$0xf]
        %v883 = vld [vmem:[#allocation8 + $0x20] sm:$0xf]
        %v884 = vld [vmem:[#allocation8 + $0x24] sm:$0xf]
        %v885 = vld [vmem:[#allocation8 + $0x28] sm:$0xf]
        %v886 = vld [vmem:[#allocation8 + $0x2c] sm:$0xf]
        %v887 = vld [vmem:[#allocation8 + $0x30] sm:$0xf]
        %v888 = vld [vmem:[#allocation8 + $0x34] sm:$0xf]
        %v889 = vld [vmem:[#allocation8 + $0x38] sm:$0xf]
        %v890 = vld [vmem:[#allocation8 + $0x3c] sm:$0xf]
        %v907 = vunpack.c.l.b16 %v875
        %v908 = vunpack.c.l.b16 %v876
        %v909 = vunpack.c.l.b16 %v877
        %v910 = vunpack.c.l.b16 %v878
        %v911 = vunpack.c.l.b16 %v879
        %v912 = vunpack.c.l.b16 %v880
        %v913 = vunpack.c.l.b16 %v881
        %v914 = vunpack.c.l.b16 %v882
        %v915 = vunpack.c.l.b16 %v883
        %v916 = vunpack.c.l.b16 %v884
        %v917 = vunpack.c.l.b16 %v885
        %v918 = vunpack.c.l.b16 %v886
        %v919 = vunpack.c.l.b16 %v887
        %v920 = vunpack.c.l.b16 %v888
        %v921 = vunpack.c.l.b16 %v889
        %v922 = vunpack.c.l.b16 %v890
        %v923 = vpack.c.b16 %v908, %v907
        %v924 = vpack.c.b16 %v910, %v909
        %v925 = vpack.c.b16 %v912, %v911
        %v926 = vpack.c.b16 %v914, %v913
        %v927 = vpack.c.b16 %v916, %v915
        %v928 = vpack.c.b16 %v918, %v917
        %v929 = vpack.c.b16 %v920, %v919
        %v930 = vpack.c.b16 %v922, %v921
        %939 = vmatprep.subr.bf16.mxu0 0
        %940 = vmatpush1.bf16.msra.mxu0 %v923
        %941 = vmatprep.subr.bf16.mxu0 0
        %942 = vmatpush1.bf16.msra.mxu0 %v924
        %943 = vmatprep.subr.bf16.mxu0 0
        %944 = vmatpush1.bf16.msra.mxu0 %v925
        %945 = vmatprep.subr.bf16.mxu0 0
        %946 = vmatpush1.bf16.msra.mxu0 %v926
        %947 = vmatprep.subr.bf16.mxu0 0
        %948 = vmatpush1.bf16.msra.mxu0 %v927
        %949 = vmatprep.subr.bf16.mxu0 0
        %950 = vmatpush1.bf16.msra.mxu0 %v928
        %951 = vmatprep.subr.bf16.mxu0 0
        %952 = vmatpush1.bf16.msra.mxu0 %v929
        %953 = vmatprep.subr.bf16.mxu0 0
        %954 = vmatpush1.bf16.msra.mxu0 %v930
        %955 = vmatprep.subr.bf16.mxu0 0
        %956 = vmatpush1.bf16.msra.mxu0 0
        %957 = vmatprep.subr.bf16.mxu0 0
        %958 = vmatpush1.bf16.msra.mxu0 0
        %959 = vmatprep.subr.bf16.mxu0 0
        %960 = vmatpush1.bf16.msra.mxu0 0
        %961 = vmatprep.subr.bf16.mxu0 0
        %962 = vmatpush1.bf16.msra.mxu0 0
        %963 = vmatprep.subr.bf16.mxu0 0
        %964 = vmatpush1.bf16.msra.mxu0 0
        %965 = vmatprep.subr.bf16.mxu0 0
        %966 = vmatpush1.bf16.msra.mxu0 0
        %967 = vmatprep.subr.bf16.mxu0 0
        %968 = vmatpush1.bf16.msra.mxu0 0
        %969 = vmatprep.subr.bf16.mxu0 0
        %970 = vmatpush1.bf16.msra.mxu0 0
        %971 = vmatprep.mubr.bf16.mxu0 0
        %972 = vmatmul.mubr.bf16.gmra.mrb[0].mxu0 0
        %v973 = vpop.f32.mrb[0].mxu0
        %v974 = vadd.f32 0.0, %v973
        %v975 = vpop.f32.mrb[0].mxu0
        %v976 = vpop.f32.mrb[0].mxu0
        %v977 = vpop.f32.mrb[0].mxu0
        %978 = vdwg.mxu0
        %v980 = vrot.slane %v974, 1
        %v981 = vrot.slane %v974, 2
        %v982 = vrot.slane %v974, 3
        %v983 = vrot.slane %v974, 4
        %v984 = vrot.slane %v974, 5
        %v985 = vrot.slane %v974, 6
        %v986 = vrot.slane %v974, 7
        %v995 = vadd.f32 %v851, %v974
        %v996 = vadd.f32 %v852, %v980
        %v997 = vadd.f32 %v853, %v981
        %v998 = vadd.f32 %v854, %v982
        %v999 = vadd.f32 %v855, %v983
        %v1000 = vadd.f32 %v856, %v984
        %v1001 = vadd.f32 %v857, %v985
        %v1002 = vadd.f32 %v858, %v986
        %v1003 = vtanh.pop %v995
        %v1004 = vtanh.pop %v996
        %v1005 = vtanh.pop %v997
        %v1006 = vtanh.pop %v998
        %v1007 = vtanh.pop %v999
        %v1008 = vtanh.pop %v1000
        %v1009 = vtanh.pop %v1001
        %v1010 = vtanh.pop %v1002
        %v1011 = vpack.c.bf16 %v1003, %v1003
        %v1012 = vpack.c.bf16 %v1004, %v1004
        %v1013 = vpack.c.bf16 %v1005, %v1005
        %v1014 = vpack.c.bf16 %v1006, %v1006
        %v1015 = vpack.c.bf16 %v1007, %v1007
        %v1016 = vpack.c.bf16 %v1008, %v1008
        %v1017 = vpack.c.bf16 %v1009, %v1009
        %v1018 = vpack.c.bf16 %v1010, %v1010
        %v1027 = vunpack.c.l.b16 %v1011
        %v1028 = vunpack.c.l.b16 %v1012
        %v1029 = vunpack.c.l.b16 %v1013
        %v1030 = vunpack.c.l.b16 %v1014
        %v1031 = vunpack.c.l.b16 %v1015
        %v1032 = vunpack.c.l.b16 %v1016
        %v1033 = vunpack.c.l.b16 %v1017
        %v1034 = vunpack.c.l.b16 %v1018
        %v1035 = vrot.slane %v1028, 7
        %vm1036 = vcmask 1041409
        %v1037 = vsel %vm1036, %v1035, %v1027
        %v1038 = vrot.slane %v1029, 6
        %vm1039 = vcmask 1042434
        %v1040 = vsel %vm1039, %v1038, %v1037
        %v1041 = vrot.slane %v1030, 5
        %vm1042 = vcmask 1043459
        %v1043 = vsel %vm1042, %v1041, %v1040
        %v1044 = vrot.slane %v1031, 4
        %vm1045 = vcmask 1044484
        %v1046 = vsel %vm1045, %v1044, %v1043
        %v1047 = vrot.slane %v1032, 3
        %vm1048 = vcmask 1045509
        %v1049 = vsel %vm1048, %v1047, %v1046
        %v1050 = vrot.slane %v1033, 2
        %vm1051 = vcmask 1046534
        %v1052 = vsel %vm1051, %v1050, %v1049
        %v1053 = vrot.slane %v1034, 1
        %vm1054 = vcmask 1047559
        %v1055 = vsel %vm1054, %v1053, %v1052
        %v1056 = vpack.c.b16 %v1055, %v1055
        %1058 = vmatprep.subr.bf16.mxu0 0
        %1059 = vmatpush1.bf16.msra.mxu0 %v923
        %1060 = vmatprep.subr.bf16.mxu0 0
        %1061 = vmatpush1.bf16.msra.mxu0 %v924
        %1062 = vmatprep.subr.bf16.mxu0 0
        %1063 = vmatpush1.bf16.msra.mxu0 %v925
        %1064 = vmatprep.subr.bf16.mxu0 0
        %1065 = vmatpush1.bf16.msra.mxu0 %v926
        %1066 = vmatprep.subr.bf16.mxu0 0
        %1067 = vmatpush1.bf16.msra.mxu0 %v927
        %1068 = vmatprep.subr.bf16.mxu0 0
        %1069 = vmatpush1.bf16.msra.mxu0 %v928
        %1070 = vmatprep.subr.bf16.mxu0 0
        %1071 = vmatpush1.bf16.msra.mxu0 %v929
        %1072 = vmatprep.subr.bf16.mxu0 0
        %1073 = vmatpush1.bf16.msra.mxu0 %v930
        %1074 = vmatprep.subr.bf16.mxu0 0
        %1075 = vmatpush1.bf16.msra.mxu0 0
        %1076 = vmatprep.subr.bf16.mxu0 0
        %1077 = vmatpush1.bf16.msra.mxu0 0
        %1078 = vmatprep.subr.bf16.mxu0 0
        %1079 = vmatpush1.bf16.msra.mxu0 0
        %1080 = vmatprep.subr.bf16.mxu0 0
        %1081 = vmatpush1.bf16.msra.mxu0 0
        %1082 = vmatprep.subr.bf16.mxu0 0
        %1083 = vmatpush1.bf16.msra.mxu0 0
        %1084 = vmatprep.subr.bf16.mxu0 0
        %1085 = vmatpush1.bf16.msra.mxu0 0
        %1086 = vmatprep.subr.bf16.mxu0 0
        %1087 = vmatpush1.bf16.msra.mxu0 0
        %1088 = vmatprep.subr.bf16.mxu0 0
        %1089 = vmatpush1.bf16.msra.mxu0 0
        %1090 = vmatprep.mubr.bf16.mxu0 0
        %1091 = vmatmul.mubr.bf16.gmra.mrb[0].mxu0 %v1056
        %v1092 = vpop.f32.mrb[0].mxu0
        %v1093 = vadd.f32 0.0, %v1092
        %v1094 = vpop.f32.mrb[0].mxu0
        %v1095 = vpop.f32.mrb[0].mxu0
        %v1096 = vpop.f32.mrb[0].mxu0
        %1097 = vdwg.mxu0
        %v1099 = vrot.slane %v1093, 7
        %v1100 = vrot.slane %v1093, 1
        %v1101 = vrot.slane %v1093, 2
        %v1102 = vrot.slane %v1093, 3
        %v1103 = vrot.slane %v1093, 4
        %v1104 = vrot.slane %v1093, 5
        %v1105 = vrot.slane %v1093, 6
        %v1114 = vadd.f32 %v851, %v1099
        %v1115 = vadd.f32 %v852, %v1093
        %v1116 = vadd.f32 %v853, %v1100
        %v1117 = vadd.f32 %v854, %v1101
        %v1118 = vadd.f32 %v855, %v1102
        %v1119 = vadd.f32 %v856, %v1103
        %v1120 = vadd.f32 %v857, %v1104
        %v1121 = vadd.f32 %v858, %v1105
        %v1122 = vtanh.pop %v1114
        %v1123 = vtanh.pop %v1115
        %v1124 = vtanh.pop %v1116
        %v1125 = vtanh.pop %v1117
        %v1126 = vtanh.pop %v1118
        %v1127 = vtanh.pop %v1119
        %v1128 = vtanh.pop %v1120
        %v1129 = vtanh.pop %v1121
        %v1130 = vpack.c.bf16 %v1122, %v1122
        %v1131 = vpack.c.bf16 %v1123, %v1123
        %v1132 = vpack.c.bf16 %v1124, %v1124
        %v1133 = vpack.c.bf16 %v1125, %v1125
        %v1134 = vpack.c.bf16 %v1126, %v1126
        %v1135 = vpack.c.bf16 %v1127, %v1127
        %v1136 = vpack.c.bf16 %v1128, %v1128
        %v1137 = vpack.c.bf16 %v1129, %v1129
        %v1146 = vunpack.c.l.b16 %v1130
        %v1147 = vunpack.c.l.b16 %v1131
        %v1148 = vunpack.c.l.b16 %v1132
        %v1149 = vunpack.c.l.b16 %v1133
        %v1150 = vunpack.c.l.b16 %v1134
        %v1151 = vunpack.c.l.b16 %v1135
        %v1152 = vunpack.c.l.b16 %v1136
        %v1153 = vunpack.c.l.b16 %v1137
        %v1154 = vrot.slane %v1146, 1
        %v1155 = vsel %vm1036, %v1147, %v1154
        %v1156 = vrot.slane %v1148, 7
        %v1157 = vsel %vm1039, %v1156, %v1155
        %v1158 = vrot.slane %v1149, 6
        %v1159 = vsel %vm1042, %v1158, %v1157
        %v1160 = vrot.slane %v1150, 5
        %v1161 = vsel %vm1045, %v1160, %v1159
        %v1162 = vrot.slane %v1151, 4
        %v1163 = vsel %vm1048, %v1162, %v1161
        %v1164 = vrot.slane %v1152, 3
        %v1165 = vsel %vm1051, %v1164, %v1163
        %v1166 = vrot.slane %v1153, 2
        %v1167 = vsel %vm1054, %v1166, %v1165
        %v1168 = vpack.c.b16 %v1167, %v1167
        %1170 = vmatprep.subr.bf16.mxu0 0
        %1171 = vmatpush1.bf16.msra.mxu0 %v923
        %1172 = vmatprep.subr.bf16.mxu0 0
        %1173 = vmatpush1.bf16.msra.mxu0 %v924
        %1174 = vmatprep.subr.bf16.mxu0 0
        %1175 = vmatpush1.bf16.msra.mxu0 %v925
        %1176 = vmatprep.subr.bf16.mxu0 0
        %1177 = vmatpush1.bf16.msra.mxu0 %v926
        %1178 = vmatprep.subr.bf16.mxu0 0
        %1179 = vmatpush1.bf16.msra.mxu0 %v927
        %1180 = vmatprep.subr.bf16.mxu0 0
        %1181 = vmatpush1.bf16.msra.mxu0 %v928
        %1182 = vmatprep.subr.bf16.mxu0 0
        %1183 = vmatpush1.bf16.msra.mxu0 %v929
        %1184 = vmatprep.subr.bf16.mxu0 0
        %1185 = vmatpush1.bf16.msra.mxu0 %v930
        %1186 = vmatprep.subr.bf16.mxu0 0
        %1187 = vmatpush1.bf16.msra.mxu0 0
        %1188 = vmatprep.subr.bf16.mxu0 0
        %1189 = vmatpush1.bf16.msra.mxu0 0
        %1190 = vmatprep.subr.bf16.mxu0 0
        %1191 = vmatpush1.bf16.msra.mxu0 0
        %1192 = vmatprep.subr.bf16.mxu0 0
        %1193 = vmatpush1.bf16.msra.mxu0 0
        %1194 = vmatprep.subr.bf16.mxu0 0
        %1195 = vmatpush1.bf16.msra.mxu0 0
        %1196 = vmatprep.subr.bf16.mxu0 0
        %1197 = vmatpush1.bf16.msra.mxu0 0
        %1198 = vmatprep.subr.bf16.mxu0 0
        %1199 = vmatpush1.bf16.msra.mxu0 0
        %1200 = vmatprep.subr.bf16.mxu0 0
        %1201 = vmatpush1.bf16.msra.mxu0 0
        %1202 = vmatprep.mubr.bf16.mxu0 0
        %1203 = vmatmul.mubr.bf16.gmra.mrb[0].mxu0 %v1168
        %v1204 = vpop.f32.mrb[0].mxu0
        %v1205 = vadd.f32 0.0, %v1204
        %v1206 = vpop.f32.mrb[0].mxu0
        %v1207 = vpop.f32.mrb[0].mxu0
        %v1208 = vpop.f32.mrb[0].mxu0
        %1209 = vdwg.mxu0
        %v1211 = vrot.slane %v1205, 6
        %v1212 = vrot.slane %v1205, 7
        %v1213 = vrot.slane %v1205, 1
        %v1214 = vrot.slane %v1205, 2
        %v1215 = vrot.slane %v1205, 3
        %v1216 = vrot.slane %v1205, 4
        %v1217 = vrot.slane %v1205, 5
        %v1226 = vadd.f32 %v851, %v1211
        %v1227 = vadd.f32 %v852, %v1212
        %v1228 = vadd.f32 %v853, %v1205
        %v1229 = vadd.f32 %v854, %v1213
        %v1230 = vadd.f32 %v855, %v1214
        %v1231 = vadd.f32 %v856, %v1215
        %v1232 = vadd.f32 %v857, %v1216
        %v1233 = vadd.f32 %v858, %v1217
        %v1234 = vtanh.pop %v1226
        %v1235 = vtanh.pop %v1227
        %v1236 = vtanh.pop %v1228
        %v1237 = vtanh.pop %v1229
        %v1238 = vtanh.pop %v1230
        %v1239 = vtanh.pop %v1231
        %v1240 = vtanh.pop %v1232
        %v1241 = vtanh.pop %v1233
        %v1242 = vpack.c.bf16 %v1234, %v1234
        %v1243 = vpack.c.bf16 %v1235, %v1235
        %v1244 = vpack.c.bf16 %v1236, %v1236
        %v1245 = vpack.c.bf16 %v1237, %v1237
        %v1246 = vpack.c.bf16 %v1238, %v1238
        %v1247 = vpack.c.bf16 %v1239, %v1239
        %v1248 = vpack.c.bf16 %v1240, %v1240
        %v1249 = vpack.c.bf16 %v1241, %v1241
        %v1258 = vunpack.c.l.b16 %v1242
        %v1259 = vunpack.c.l.b16 %v1243
        %v1260 = vunpack.c.l.b16 %v1244
        %v1261 = vunpack.c.l.b16 %v1245
        %v1262 = vunpack.c.l.b16 %v1246
        %v1263 = vunpack.c.l.b16 %v1247
        %v1264 = vunpack.c.l.b16 %v1248
        %v1265 = vunpack.c.l.b16 %v1249
        %v1266 = vrot.slane %v1258, 2
        %v1267 = vrot.slane %v1259, 1
        %v1268 = vsel %vm1036, %v1267, %v1266
        %v1269 = vsel %vm1039, %v1260, %v1268
        %v1270 = vrot.slane %v1261, 7
        %v1271 = vsel %vm1042, %v1270, %v1269
        %v1272 = vrot.slane %v1262, 6
        %v1273 = vsel %vm1045, %v1272, %v1271
        %v1274 = vrot.slane %v1263, 5
        %v1275 = vsel %vm1048, %v1274, %v1273
        %v1276 = vrot.slane %v1264, 4
        %v1277 = vsel %vm1051, %v1276, %v1275
        %v1278 = vrot.slane %v1265, 3
        %v1279 = vsel %vm1054, %v1278, %v1277
        %v1280 = vpack.c.b16 %v1279, %v1279
        %1282 = vmatprep.subr.bf16.mxu0 0
        %1283 = vmatpush1.bf16.msra.mxu0 %v923
        %1284 = vmatprep.subr.bf16.mxu0 0
        %1285 = vmatpush1.bf16.msra.mxu0 %v924
        %1286 = vmatprep.subr.bf16.mxu0 0
        %1287 = vmatpush1.bf16.msra.mxu0 %v925
        %1288 = vmatprep.subr.bf16.mxu0 0
        %1289 = vmatpush1.bf16.msra.mxu0 %v926
        %1290 = vmatprep.subr.bf16.mxu0 0
        %1291 = vmatpush1.bf16.msra.mxu0 %v927
        %1292 = vmatprep.subr.bf16.mxu0 0
        %1293 = vmatpush1.bf16.msra.mxu0 %v928
        %1294 = vmatprep.subr.bf16.mxu0 0
        %1295 = vmatpush1.bf16.msra.mxu0 %v929
        %1296 = vmatprep.subr.bf16.mxu0 0
        %1297 = vmatpush1.bf16.msra.mxu0 %v930
        %1298 = vmatprep.subr.bf16.mxu0 0
        %1299 = vmatpush1.bf16.msra.mxu0 0
        %1300 = vmatprep.subr.bf16.mxu0 0
        %1301 = vmatpush1.bf16.msra.mxu0 0
        %1302 = vmatprep.subr.bf16.mxu0 0
        %1303 = vmatpush1.bf16.msra.mxu0 0
        %1304 = vmatprep.subr.bf16.mxu0 0
        %1305 = vmatpush1.bf16.msra.mxu0 0
        %1306 = vmatprep.subr.bf16.mxu0 0
        %1307 = vmatpush1.bf16.msra.mxu0 0
        %1308 = vmatprep.subr.bf16.mxu0 0
        %1309 = vmatpush1.bf16.msra.mxu0 0
        %1310 = vmatprep.subr.bf16.mxu0 0
        %1311 = vmatpush1.bf16.msra.mxu0 0
        %1312 = vmatprep.subr.bf16.mxu0 0
        %1313 = vmatpush1.bf16.msra.mxu0 0
        %1314 = vmatprep.mubr.bf16.mxu0 0
        %1315 = vmatmul.mubr.bf16.gmra.mrb[0].mxu0 %v1280
        %v1316 = vpop.f32.mrb[0].mxu0
        %v1317 = vadd.f32 0.0, %v1316
        %v1318 = vpop.f32.mrb[0].mxu0
        %v1319 = vpop.f32.mrb[0].mxu0
        %v1320 = vpop.f32.mrb[0].mxu0
        %1321 = vdwg.mxu0
        %v1323 = vrot.slane %v1317, 5
        %v1324 = vrot.slane %v1317, 6
        %v1325 = vrot.slane %v1317, 7
        %v1326 = vrot.slane %v1317, 1
        %v1327 = vrot.slane %v1317, 2
        %v1328 = vrot.slane %v1317, 3
        %v1329 = vrot.slane %v1317, 4
        %v1338 = vadd.f32 %v851, %v1323
        %v1339 = vadd.f32 %v852, %v1324
        %v1340 = vadd.f32 %v853, %v1325
        %v1341 = vadd.f32 %v854, %v1317
        %v1342 = vadd.f32 %v855, %v1326
        %v1343 = vadd.f32 %v856, %v1327
        %v1344 = vadd.f32 %v857, %v1328
        %v1345 = vadd.f32 %v858, %v1329
        %v1346 = vtanh.pop %v1338
        %v1347 = vtanh.pop %v1339
        %v1348 = vtanh.pop %v1340
        %v1349 = vtanh.pop %v1341
        %v1350 = vtanh.pop %v1342
        %v1351 = vtanh.pop %v1343
        %v1352 = vtanh.pop %v1344
        %v1353 = vtanh.pop %v1345
        %v1354 = vpack.c.bf16 %v1346, %v1346
        %v1355 = vpack.c.bf16 %v1347, %v1347
        %v1356 = vpack.c.bf16 %v1348, %v1348
        %v1357 = vpack.c.bf16 %v1349, %v1349
        %v1358 = vpack.c.bf16 %v1350, %v1350
        %v1359 = vpack.c.bf16 %v1351, %v1351
        %v1360 = vpack.c.bf16 %v1352, %v1352
        %v1361 = vpack.c.bf16 %v1353, %v1353
        %v1370 = vunpack.c.l.b16 %v1354
        %v1371 = vunpack.c.l.b16 %v1355
        %v1372 = vunpack.c.l.b16 %v1356
        %v1373 = vunpack.c.l.b16 %v1357
        %v1374 = vunpack.c.l.b16 %v1358
        %v1375 = vunpack.c.l.b16 %v1359
        %v1376 = vunpack.c.l.b16 %v1360
        %v1377 = vunpack.c.l.b16 %v1361
        %v1378 = vrot.slane %v1370, 3
        %v1379 = vrot.slane %v1371, 2
        %v1380 = vsel %vm1036, %v1379, %v1378
        %v1381 = vrot.slane %v1372, 1
        %v1382 = vsel %vm1039, %v1381, %v1380
        %v1383 = vsel %vm1042, %v1373, %v1382
        %v1384 = vrot.slane %v1374, 7
        %v1385 = vsel %vm1045, %v1384, %v1383
        %v1386 = vrot.slane %v1375, 6
        %v1387 = vsel %vm1048, %v1386, %v1385
        %v1388 = vrot.slane %v1376, 5
        %v1389 = vsel %vm1051, %v1388, %v1387
        %v1390 = vrot.slane %v1377, 4
        %v1391 = vsel %vm1054, %v1390, %v1389
        %v1392 = vpack.c.b16 %v1391, %v1391
        %1394 = vmatprep.subr.bf16.mxu0 0
        %1395 = vmatpush1.bf16.msra.mxu0 %v923
        %1396 = vmatprep.subr.bf16.mxu0 0
        %1397 = vmatpush1.bf16.msra.mxu0 %v924
        %1398 = vmatprep.subr.bf16.mxu0 0
        %1399 = vmatpush1.bf16.msra.mxu0 %v925
        %1400 = vmatprep.subr.bf16.mxu0 0
        %1401 = vmatpush1.bf16.msra.mxu0 %v926
        %1402 = vmatprep.subr.bf16.mxu0 0
        %1403 = vmatpush1.bf16.msra.mxu0 %v927
        %1404 = vmatprep.subr.bf16.mxu0 0
        %1405 = vmatpush1.bf16.msra.mxu0 %v928
        %1406 = vmatprep.subr.bf16.mxu0 0
        %1407 = vmatpush1.bf16.msra.mxu0 %v929
        %1408 = vmatprep.subr.bf16.mxu0 0
        %1409 = vmatpush1.bf16.msra.mxu0 %v930
        %1410 = vmatprep.subr.bf16.mxu0 0
        %1411 = vmatpush1.bf16.msra.mxu0 0
        %1412 = vmatprep.subr.bf16.mxu0 0
        %1413 = vmatpush1.bf16.msra.mxu0 0
        %1414 = vmatprep.subr.bf16.mxu0 0
        %1415 = vmatpush1.bf16.msra.mxu0 0
        %1416 = vmatprep.subr.bf16.mxu0 0
        %1417 = vmatpush1.bf16.msra.mxu0 0
        %1418 = vmatprep.subr.bf16.mxu0 0
        %1419 = vmatpush1.bf16.msra.mxu0 0
        %1420 = vmatprep.subr.bf16.mxu0 0
        %1421 = vmatpush1.bf16.msra.mxu0 0
        %1422 = vmatprep.subr.bf16.mxu0 0
        %1423 = vmatpush1.bf16.msra.mxu0 0
        %1424 = vmatprep.subr.bf16.mxu0 0
        %1425 = vmatpush1.bf16.msra.mxu0 0
        %1426 = vmatprep.mubr.bf16.mxu0 0
        %1427 = vmatmul.mubr.bf16.gmra.mrb[0].mxu0 %v1392
        %v1428 = vpop.f32.mrb[0].mxu0
        %v1429 = vadd.f32 0.0, %v1428
        %v1430 = vpop.f32.mrb[0].mxu0
        %v1431 = vpop.f32.mrb[0].mxu0
        %v1432 = vpop.f32.mrb[0].mxu0
        %1433 = vdwg.mxu0
        %v1435 = vrot.slane %v1429, 4
        %v1436 = vrot.slane %v1429, 5
        %v1437 = vrot.slane %v1429, 6
        %v1438 = vrot.slane %v1429, 7
        %v1439 = vrot.slane %v1429, 1
        %v1440 = vrot.slane %v1429, 2
        %v1441 = vrot.slane %v1429, 3
        %v1450 = vadd.f32 %v851, %v1435
        %v1451 = vadd.f32 %v852, %v1436
        %v1452 = vadd.f32 %v853, %v1437
        %v1453 = vadd.f32 %v854, %v1438
        %v1454 = vadd.f32 %v855, %v1429
        %v1455 = vadd.f32 %v856, %v1439
        %v1456 = vadd.f32 %v857, %v1440
        %v1457 = vadd.f32 %v858, %v1441
        %v1458 = vtanh.pop %v1450
        %v1459 = vtanh.pop %v1451
        %v1460 = vtanh.pop %v1452
        %v1461 = vtanh.pop %v1453
        %v1462 = vtanh.pop %v1454
        %v1463 = vtanh.pop %v1455
        %v1464 = vtanh.pop %v1456
        %v1465 = vtanh.pop %v1457
        %v1466 = vpack.c.bf16 %v1458, %v1458
        %v1467 = vpack.c.bf16 %v1459, %v1459
        %v1468 = vpack.c.bf16 %v1460, %v1460
        %v1469 = vpack.c.bf16 %v1461, %v1461
        %v1470 = vpack.c.bf16 %v1462, %v1462
        %v1471 = vpack.c.bf16 %v1463, %v1463
        %v1472 = vpack.c.bf16 %v1464, %v1464
        %v1473 = vpack.c.bf16 %v1465, %v1465
        %v1482 = vunpack.c.l.b16 %v1466
        %v1483 = vunpack.c.l.b16 %v1467
        %v1484 = vunpack.c.l.b16 %v1468
        %v1485 = vunpack.c.l.b16 %v1469
        %v1486 = vunpack.c.l.b16 %v1470
        %v1487 = vunpack.c.l.b16 %v1471
        %v1488 = vunpack.c.l.b16 %v1472
        %v1489 = vunpack.c.l.b16 %v1473
        %v1490 = vrot.slane %v1482, 4
        %v1491 = vrot.slane %v1483, 3
        %v1492 = vsel %vm1036, %v1491, %v1490
        %v1493 = vrot.slane %v1484, 2
        %v1494 = vsel %vm1039, %v1493, %v1492
        %v1495 = vrot.slane %v1485, 1
        %v1496 = vsel %vm1042, %v1495, %v1494
        %v1497 = vsel %vm1045, %v1486, %v1496
        %v1498 = vrot.slane %v1487, 7
        %v1499 = vsel %vm1048, %v1498, %v1497
        %v1500 = vrot.slane %v1488, 6
        %v1501 = vsel %vm1051, %v1500, %v1499
        %v1502 = vrot.slane %v1489, 5
        %v1503 = vsel %vm1054, %v1502, %v1501
        %v1504 = vpack.c.b16 %v1503, %v1503
        %1506 = vmatprep.subr.bf16.mxu0 0
        %1507 = vmatpush1.bf16.msra.mxu0 %v923
        %1508 = vmatprep.subr.bf16.mxu0 0
        %1509 = vmatpush1.bf16.msra.mxu0 %v924
        %1510 = vmatprep.subr.bf16.mxu0 0
        %1511 = vmatpush1.bf16.msra.mxu0 %v925
        %1512 = vmatprep.subr.bf16.mxu0 0
        %1513 = vmatpush1.bf16.msra.mxu0 %v926
        %1514 = vmatprep.subr.bf16.mxu0 0
        %1515 = vmatpush1.bf16.msra.mxu0 %v927
        %1516 = vmatprep.subr.bf16.mxu0 0
        %1517 = vmatpush1.bf16.msra.mxu0 %v928
        %1518 = vmatprep.subr.bf16.mxu0 0
        %1519 = vmatpush1.bf16.msra.mxu0 %v929
        %1520 = vmatprep.subr.bf16.mxu0 0
        %1521 = vmatpush1.bf16.msra.mxu0 %v930
        %1522 = vmatprep.subr.bf16.mxu0 0
        %1523 = vmatpush1.bf16.msra.mxu0 0
        %1524 = vmatprep.subr.bf16.mxu0 0
        %1525 = vmatpush1.bf16.msra.mxu0 0
        %1526 = vmatprep.subr.bf16.mxu0 0
        %1527 = vmatpush1.bf16.msra.mxu0 0
        %1528 = vmatprep.subr.bf16.mxu0 0
        %1529 = vmatpush1.bf16.msra.mxu0 0
        %1530 = vmatprep.subr.bf16.mxu0 0
        %1531 = vmatpush1.bf16.msra.mxu0 0
        %1532 = vmatprep.subr.bf16.mxu0 0
        %1533 = vmatpush1.bf16.msra.mxu0 0
        %1534 = vmatprep.subr.bf16.mxu0 0
        %1535 = vmatpush1.bf16.msra.mxu0 0
        %1536 = vmatprep.subr.bf16.mxu0 0
        %1537 = vmatpush1.bf16.msra.mxu0 0
        %1538 = vmatprep.mubr.bf16.mxu0 0
        %1539 = vmatmul.mubr.bf16.gmra.mrb[0].mxu0 %v1504
        %v1540 = vpop.f32.mrb[0].mxu0
        %v1541 = vadd.f32 0.0, %v1540
        %v1542 = vpop.f32.mrb[0].mxu0
        %v1543 = vpop.f32.mrb[0].mxu0
        %v1544 = vpop.f32.mrb[0].mxu0
        %1545 = vdwg.mxu0
        %v1547 = vrot.slane %v1541, 3
        %v1548 = vrot.slane %v1541, 4
        %v1549 = vrot.slane %v1541, 5
        %v1550 = vrot.slane %v1541, 6
        %v1551 = vrot.slane %v1541, 7
        %v1552 = vrot.slane %v1541, 1
        %v1553 = vrot.slane %v1541, 2
        %v1562 = vadd.f32 %v851, %v1547
        %v1563 = vadd.f32 %v852, %v1548
        %v1564 = vadd.f32 %v853, %v1549
        %v1565 = vadd.f32 %v854, %v1550
        %v1566 = vadd.f32 %v855, %v1551
        %v1567 = vadd.f32 %v856, %v1541
        %v1568 = vadd.f32 %v857, %v1552
        %v1569 = vadd.f32 %v858, %v1553
        %v1570 = vtanh.pop %v1562
        %v1571 = vtanh.pop %v1563
        %v1572 = vtanh.pop %v1564
        %v1573 = vtanh.pop %v1565
        %v1574 = vtanh.pop %v1566
        %v1575 = vtanh.pop %v1567
        %v1576 = vtanh.pop %v1568
        %v1577 = vtanh.pop %v1569
        %v1578 = vpack.c.bf16 %v1570, %v1570
        %v1579 = vpack.c.bf16 %v1571, %v1571
        %v1580 = vpack.c.bf16 %v1572, %v1572
        %v1581 = vpack.c.bf16 %v1573, %v1573
        %v1582 = vpack.c.bf16 %v1574, %v1574
        %v1583 = vpack.c.bf16 %v1575, %v1575
        %v1584 = vpack.c.bf16 %v1576, %v1576
        %v1585 = vpack.c.bf16 %v1577, %v1577
        %v1594 = vunpack.c.l.b16 %v1578
        %v1595 = vunpack.c.l.b16 %v1579
        %v1596 = vunpack.c.l.b16 %v1580
        %v1597 = vunpack.c.l.b16 %v1581
        %v1598 = vunpack.c.l.b16 %v1582
        %v1599 = vunpack.c.l.b16 %v1583
        %v1600 = vunpack.c.l.b16 %v1584
        %v1601 = vunpack.c.l.b16 %v1585
        %v1602 = vrot.slane %v1594, 5
        %v1603 = vrot.slane %v1595, 4
        %v1604 = vsel %vm1036, %v1603, %v1602
        %v1605 = vrot.slane %v1596, 3
        %v1606 = vsel %vm1039, %v1605, %v1604
        %v1607 = vrot.slane %v1597, 2
        %v1608 = vsel %vm1042, %v1607, %v1606
        %v1609 = vrot.slane %v1598, 1
        %v1610 = vsel %vm1045, %v1609, %v1608
        %v1611 = vsel %vm1048, %v1599, %v1610
        %v1612 = vrot.slane %v1600, 7
        %v1613 = vsel %vm1051, %v1612, %v1611
        %v1614 = vrot.slane %v1601, 6
        %v1615 = vsel %vm1054, %v1614, %v1613
        %v1616 = vpack.c.b16 %v1615, %v1615
        %1618 = vmatprep.subr.bf16.mxu0 0
        %1619 = vmatpush1.bf16.msra.mxu0 %v923
        %1620 = vmatprep.subr.bf16.mxu0 0
        %1621 = vmatpush1.bf16.msra.mxu0 %v924
        %1622 = vmatprep.subr.bf16.mxu0 0
        %1623 = vmatpush1.bf16.msra.mxu0 %v925
        %1624 = vmatprep.subr.bf16.mxu0 0
        %1625 = vmatpush1.bf16.msra.mxu0 %v926
        %1626 = vmatprep.subr.bf16.mxu0 0
        %1627 = vmatpush1.bf16.msra.mxu0 %v927
        %1628 = vmatprep.subr.bf16.mxu0 0
        %1629 = vmatpush1.bf16.msra.mxu0 %v928
        %1630 = vmatprep.subr.bf16.mxu0 0
        %1631 = vmatpush1.bf16.msra.mxu0 %v929
        %1632 = vmatprep.subr.bf16.mxu0 0
        %1633 = vmatpush1.bf16.msra.mxu0 %v930
        %1634 = vmatprep.subr.bf16.mxu0 0
        %1635 = vmatpush1.bf16.msra.mxu0 0
        %1636 = vmatprep.subr.bf16.mxu0 0
        %1637 = vmatpush1.bf16.msra.mxu0 0
        %1638 = vmatprep.subr.bf16.mxu0 0
        %1639 = vmatpush1.bf16.msra.mxu0 0
        %1640 = vmatprep.subr.bf16.mxu0 0
        %1641 = vmatpush1.bf16.msra.mxu0 0
        %1642 = vmatprep.subr.bf16.mxu0 0
        %1643 = vmatpush1.bf16.msra.mxu0 0
        %1644 = vmatprep.subr.bf16.mxu0 0
        %1645 = vmatpush1.bf16.msra.mxu0 0
        %1646 = vmatprep.subr.bf16.mxu0 0
        %1647 = vmatpush1.bf16.msra.mxu0 0
        %1648 = vmatprep.subr.bf16.mxu0 0
        %1649 = vmatpush1.bf16.msra.mxu0 0
        %1650 = vmatprep.mubr.bf16.mxu0 0
        %1651 = vmatmul.mubr.bf16.gmra.mrb[0].mxu0 %v1616
        %v1652 = vpop.f32.mrb[0].mxu0
        %v1653 = vadd.f32 0.0, %v1652
        %v1654 = vpop.f32.mrb[0].mxu0
        %v1655 = vpop.f32.mrb[0].mxu0
        %v1656 = vpop.f32.mrb[0].mxu0
        %1657 = vdwg.mxu0
        %v1659 = vrot.slane %v1653, 2
        %v1660 = vrot.slane %v1653, 3
        %v1661 = vrot.slane %v1653, 4
        %v1662 = vrot.slane %v1653, 5
        %v1663 = vrot.slane %v1653, 6
        %v1664 = vrot.slane %v1653, 7
        %v1665 = vrot.slane %v1653, 1
        %v1674 = vadd.f32 %v851, %v1659
        %v1675 = vadd.f32 %v852, %v1660
        %v1676 = vadd.f32 %v853, %v1661
        %v1677 = vadd.f32 %v854, %v1662
        %v1678 = vadd.f32 %v855, %v1663
        %v1679 = vadd.f32 %v856, %v1664
        %v1680 = vadd.f32 %v857, %v1653
        %v1681 = vadd.f32 %v858, %v1665
        %v1682 = vtanh.pop %v1674
        %v1683 = vtanh.pop %v1675
        %v1684 = vtanh.pop %v1676
        %v1685 = vtanh.pop %v1677
        %v1686 = vtanh.pop %v1678
        %v1687 = vtanh.pop %v1679
        %v1688 = vtanh.pop %v1680
        %v1689 = vtanh.pop %v1681
        %v1690 = vpack.c.bf16 %v1682, %v1682
        %v1691 = vpack.c.bf16 %v1683, %v1683
        %v1692 = vpack.c.bf16 %v1684, %v1684
        %v1693 = vpack.c.bf16 %v1685, %v1685
        %v1694 = vpack.c.bf16 %v1686, %v1686
        %v1695 = vpack.c.bf16 %v1687, %v1687
        %v1696 = vpack.c.bf16 %v1688, %v1688
        %v1697 = vpack.c.bf16 %v1689, %v1689
        %v1706 = vunpack.c.l.b16 %v1690
        %v1707 = vunpack.c.l.b16 %v1691
        %v1708 = vunpack.c.l.b16 %v1692
        %v1709 = vunpack.c.l.b16 %v1693
        %v1710 = vunpack.c.l.b16 %v1694
        %v1711 = vunpack.c.l.b16 %v1695
        %v1712 = vunpack.c.l.b16 %v1696
        %v1713 = vunpack.c.l.b16 %v1697
        %v1714 = vrot.slane %v1706, 6
        %v1715 = vrot.slane %v1707, 5
        %v1716 = vsel %vm1036, %v1715, %v1714
        %v1717 = vrot.slane %v1708, 4
        %v1718 = vsel %vm1039, %v1717, %v1716
        %v1719 = vrot.slane %v1709, 3
        %v1720 = vsel %vm1042, %v1719, %v1718
        %v1721 = vrot.slane %v1710, 2
        %v1722 = vsel %vm1045, %v1721, %v1720
        %v1723 = vrot.slane %v1711, 1
        %v1724 = vsel %vm1048, %v1723, %v1722
        %v1725 = vsel %vm1051, %v1712, %v1724
        %v1726 = vrot.slane %v1713, 7
        %v1727 = vsel %vm1054, %v1726, %v1725
        %v1728 = vpack.c.b16 %v1727, %v1727
        %1730 = vmatprep.subr.bf16.mxu0 0
        %1731 = vmatpush1.bf16.msra.mxu0 %v923
        %1732 = vmatprep.subr.bf16.mxu0 0
        %1733 = vmatpush1.bf16.msra.mxu0 %v924
        %1734 = vmatprep.subr.bf16.mxu0 0
        %1735 = vmatpush1.bf16.msra.mxu0 %v925
        %1736 = vmatprep.subr.bf16.mxu0 0
        %1737 = vmatpush1.bf16.msra.mxu0 %v926
        %1738 = vmatprep.subr.bf16.mxu0 0
        %1739 = vmatpush1.bf16.msra.mxu0 %v927
        %1740 = vmatprep.subr.bf16.mxu0 0
        %1741 = vmatpush1.bf16.msra.mxu0 %v928
        %1742 = vmatprep.subr.bf16.mxu0 0
        %1743 = vmatpush1.bf16.msra.mxu0 %v929
        %1744 = vmatprep.subr.bf16.mxu0 0
        %1745 = vmatpush1.bf16.msra.mxu0 %v930
        %1746 = vmatprep.subr.bf16.mxu0 0
        %1747 = vmatpush1.bf16.msra.mxu0 0
        %1748 = vmatprep.subr.bf16.mxu0 0
        %1749 = vmatpush1.bf16.msra.mxu0 0
        %1750 = vmatprep.subr.bf16.mxu0 0
        %1751 = vmatpush1.bf16.msra.mxu0 0
        %1752 = vmatprep.subr.bf16.mxu0 0
        %1753 = vmatpush1.bf16.msra.mxu0 0
        %1754 = vmatprep.subr.bf16.mxu0 0
        %1755 = vmatpush1.bf16.msra.mxu0 0
        %1756 = vmatprep.subr.bf16.mxu0 0
        %1757 = vmatpush1.bf16.msra.mxu0 0
        %1758 = vmatprep.subr.bf16.mxu0 0
        %1759 = vmatpush1.bf16.msra.mxu0 0
        %1760 = vmatprep.subr.bf16.mxu0 0
        %1761 = vmatpush1.bf16.msra.mxu0 0
        %1762 = vmatprep.mubr.bf16.mxu0 0
        %1763 = vmatmul.mubr.bf16.gmra.mrb[0].mxu0 %v1728
        %v1764 = vpop.f32.mrb[0].mxu0
        %v1765 = vadd.f32 0.0, %v1764
        %v1766 = vpop.f32.mrb[0].mxu0
        %v1767 = vpop.f32.mrb[0].mxu0
        %v1768 = vpop.f32.mrb[0].mxu0
        %1769 = vdwg.mxu0
        %v1771 = vrot.slane %v1765, 1
        %v1772 = vrot.slane %v1765, 2
        %v1773 = vrot.slane %v1765, 3
        %v1774 = vrot.slane %v1765, 4
        %v1775 = vrot.slane %v1765, 5
        %v1776 = vrot.slane %v1765, 6
        %v1777 = vrot.slane %v1765, 7
        %v1786 = vadd.f32 %v851, %v1771
        %v1787 = vadd.f32 %v852, %v1772
        %v1788 = vadd.f32 %v853, %v1773
        %v1789 = vadd.f32 %v854, %v1774
        %v1790 = vadd.f32 %v855, %v1775
        %v1791 = vadd.f32 %v856, %v1776
        %v1792 = vadd.f32 %v857, %v1777
        %v1793 = vadd.f32 %v858, %v1765
        %v1794 = vtanh.pop %v1786
        %v1795 = vtanh.pop %v1787
        %v1796 = vtanh.pop %v1788
        %v1797 = vtanh.pop %v1789
        %v1798 = vtanh.pop %v1790
        %v1799 = vtanh.pop %v1791
        %v1800 = vtanh.pop %v1792
        %v1801 = vtanh.pop %v1793
        %v1802 = vld [vmem:[#allocation10] sm:$0xf]
        %v1803 = vld [vmem:[#allocation10 + $0x4] sm:$0xf]
        %v1804 = vld [vmem:[#allocation10 + $0x8] sm:$0xf]
        %v1805 = vld [vmem:[#allocation10 + $0xc] sm:$0xf]
        %v1806 = vld [vmem:[#allocation10 + $0x10] sm:$0xf]
        %v1807 = vld [vmem:[#allocation10 + $0x14] sm:$0xf]
        %v1808 = vld [vmem:[#allocation10 + $0x18] sm:$0xf]
        %v1809 = vld [vmem:[#allocation10 + $0x1c] sm:$0xf]
        %v1810 = vld [vmem:[#allocation10 + $0x20] sm:$0xf]
        %v1811 = vld [vmem:[#allocation10 + $0x24] sm:$0xf]
        %v1812 = vld [vmem:[#allocation10 + $0x28] sm:$0xf]
        %v1813 = vld [vmem:[#allocation10 + $0x2c] sm:$0xf]
        %v1814 = vld [vmem:[#allocation10 + $0x30] sm:$0xf]
        %v1815 = vld [vmem:[#allocation10 + $0x34] sm:$0xf]
        %v1816 = vld [vmem:[#allocation10 + $0x38] sm:$0xf]
        %v1817 = vld [vmem:[#allocation10 + $0x3c] sm:$0xf]
        %v1834 = vunpack.c.l.b16 %v859
        %v1835 = vunpack.c.l.b16 %v860
        %v1836 = vunpack.c.l.b16 %v861
        %v1837 = vunpack.c.l.b16 %v862
        %v1838 = vunpack.c.l.b16 %v863
        %v1839 = vunpack.c.l.b16 %v864
        %v1840 = vunpack.c.l.b16 %v865
        %v1841 = vunpack.c.l.b16 %v866
        %v1842 = vunpack.c.l.b16 %v867
        %v1843 = vunpack.c.l.b16 %v868
        %v1844 = vunpack.c.l.b16 %v869
        %v1845 = vunpack.c.l.b16 %v870
        %v1846 = vunpack.c.l.b16 %v871
        %v1847 = vunpack.c.l.b16 %v872
        %v1848 = vunpack.c.l.b16 %v873
        %v1849 = vunpack.c.l.b16 %v874
        %v1850 = vpack.c.b16 %v1835, %v1834
        %v1851 = vpack.c.b16 %v1837, %v1836
        %v1852 = vpack.c.b16 %v1839, %v1838
        %v1853 = vpack.c.b16 %v1841, %v1840
        %v1854 = vpack.c.b16 %v1843, %v1842
        %v1855 = vpack.c.b16 %v1845, %v1844
        %v1856 = vpack.c.b16 %v1847, %v1846
        %v1857 = vpack.c.b16 %v1849, %v1848
        %v1882 = vunpack.c.l.b16 %v1802
        %v1883 = vunpack.c.l.b16 %v1803
        %v1884 = vunpack.c.l.b16 %v1804
        %v1885 = vunpack.c.l.b16 %v1805
        %v1886 = vunpack.c.l.b16 %v1806
        %v1887 = vunpack.c.l.b16 %v1807
        %v1888 = vunpack.c.l.b16 %v1808
        %v1889 = vunpack.c.l.b16 %v1809
        %v1890 = vunpack.c.l.b16 %v1810
        %v1891 = vunpack.c.l.b16 %v1811
        %v1892 = vunpack.c.l.b16 %v1812
        %v1893 = vunpack.c.l.b16 %v1813
        %v1894 = vunpack.c.l.b16 %v1814
        %v1895 = vunpack.c.l.b16 %v1815
        %v1896 = vunpack.c.l.b16 %v1816
        %v1897 = vunpack.c.l.b16 %v1817
        %v1898 = vpack.c.b16 %v1883, %v1882
        %v1899 = vpack.c.b16 %v1885, %v1884
        %v1900 = vpack.c.b16 %v1887, %v1886
        %v1901 = vpack.c.b16 %v1889, %v1888
        %v1902 = vpack.c.b16 %v1891, %v1890
        %v1903 = vpack.c.b16 %v1893, %v1892
        %v1904 = vpack.c.b16 %v1895, %v1894
        %v1905 = vpack.c.b16 %v1897, %v1896
        %1914 = vmatprep.subr.bf16.mxu0 0
        %1915 = vmatpush1.bf16.msra.mxu0 %v1898
        %1916 = vmatprep.subr.bf16.mxu0 0
        %1917 = vmatpush1.bf16.msra.mxu0 %v1899
        %1918 = vmatprep.subr.bf16.mxu0 0
        %1919 = vmatpush1.bf16.msra.mxu0 %v1900
        %1920 = vmatprep.subr.bf16.mxu0 0
        %1921 = vmatpush1.bf16.msra.mxu0 %v1901
        %1922 = vmatprep.subr.bf16.mxu0 0
        %1923 = vmatpush1.bf16.msra.mxu0 %v1902
        %1924 = vmatprep.subr.bf16.mxu0 0
        %1925 = vmatpush1.bf16.msra.mxu0 %v1903
        %1926 = vmatprep.subr.bf16.mxu0 0
        %1927 = vmatpush1.bf16.msra.mxu0 %v1904
        %1928 = vmatprep.subr.bf16.mxu0 0
        %1929 = vmatpush1.bf16.msra.mxu0 %v1905
        %1930 = vmatprep.subr.bf16.mxu0 0
        %1931 = vmatpush1.bf16.msra.mxu0 0
        %1932 = vmatprep.subr.bf16.mxu0 0
        %1933 = vmatpush1.bf16.msra.mxu0 0
        %1934 = vmatprep.subr.bf16.mxu0 0
        %1935 = vmatpush1.bf16.msra.mxu0 0
        %1936 = vmatprep.subr.bf16.mxu0 0
        %1937 = vmatpush1.bf16.msra.mxu0 0
        %1938 = vmatprep.subr.bf16.mxu0 0
        %1939 = vmatpush1.bf16.msra.mxu0 0
        %1940 = vmatprep.subr.bf16.mxu0 0
        %1941 = vmatpush1.bf16.msra.mxu0 0
        %1942 = vmatprep.subr.bf16.mxu0 0
        %1943 = vmatpush1.bf16.msra.mxu0 0
        %1944 = vmatprep.subr.bf16.mxu0 0
        %1945 = vmatpush1.bf16.msra.mxu0 0
        %1946 = vmatprep.mubr.bf16.mxu0 0
        %1947 = vmatmul.mubr.bf16.gmra.mrb[0].mxu0 %v1850
        %v1948 = vpop.f32.mrb[0].mxu0
        %v1949 = vadd.f32 0.0, %v1948
        %v1950 = vpop.f32.mrb[0].mxu0
        %v1951 = vpop.f32.mrb[0].mxu0
        %v1952 = vadd.f32 0.0, %v1951
        %v1953 = vpop.f32.mrb[0].mxu0
        %1954 = vmatprep.mubr.bf16.mxu0 0
        %1955 = vmatmul.mubr.bf16.gmra.mrb[0].mxu0 %v1851
        %v1956 = vpop.f32.mrb[0].mxu0
        %v1957 = vadd.f32 0.0, %v1956
        %v1958 = vpop.f32.mrb[0].mxu0
        %v1959 = vpop.f32.mrb[0].mxu0
        %v1960 = vadd.f32 0.0, %v1959
        %v1961 = vpop.f32.mrb[0].mxu0
        %1962 = vmatprep.mubr.bf16.mxu0 0
        %1963 = vmatmul.mubr.bf16.gmra.mrb[0].mxu0 %v1852
        %v1964 = vpop.f32.mrb[0].mxu0
        %v1965 = vadd.f32 0.0, %v1964
        %v1966 = vpop.f32.mrb[0].mxu0
        %v1967 = vpop.f32.mrb[0].mxu0
        %v1968 = vadd.f32 0.0, %v1967
        %v1969 = vpop.f32.mrb[0].mxu0
        %1970 = vmatprep.mubr.bf16.mxu0 0
        %1971 = vmatmul.mubr.bf16.gmra.mrb[0].mxu0 %v1853
        %v1972 = vpop.f32.mrb[0].mxu0
        %v1973 = vadd.f32 0.0, %v1972
        %v1974 = vpop.f32.mrb[0].mxu0
        %v1975 = vpop.f32.mrb[0].mxu0
        %v1976 = vadd.f32 0.0, %v1975
        %v1977 = vpop.f32.mrb[0].mxu0
        %1978 = vmatprep.mubr.bf16.mxu0 0
        %1979 = vmatmul.mubr.bf16.gmra.mrb[0].mxu0 %v1854
        %v1980 = vpop.f32.mrb[0].mxu0
        %v1981 = vadd.f32 0.0, %v1980
        %v1982 = vpop.f32.mrb[0].mxu0
        %v1983 = vpop.f32.mrb[0].mxu0
        %v1984 = vadd.f32 0.0, %v1983
        %v1985 = vpop.f32.mrb[0].mxu0
        %1986 = vmatprep.mubr.bf16.mxu0 0
        %1987 = vmatmul.mubr.bf16.gmra.mrb[0].mxu0 %v1855
        %v1988 = vpop.f32.mrb[0].mxu0
        %v1989 = vadd.f32 0.0, %v1988
        %v1990 = vpop.f32.mrb[0].mxu0
        %v1991 = vpop.f32.mrb[0].mxu0
        %v1992 = vadd.f32 0.0, %v1991
        %v1993 = vpop.f32.mrb[0].mxu0
        %1994 = vmatprep.mubr.bf16.mxu0 0
        %1995 = vmatmul.mubr.bf16.gmra.mrb[0].mxu0 %v1856
        %v1996 = vpop.f32.mrb[0].mxu0
        %v1997 = vadd.f32 0.0, %v1996
        %v1998 = vpop.f32.mrb[0].mxu0
        %v1999 = vpop.f32.mrb[0].mxu0
        %v2000 = vadd.f32 0.0, %v1999
        %v2001 = vpop.f32.mrb[0].mxu0
        %2002 = vmatprep.mubr.bf16.mxu0 0
        %2003 = vmatmul.mubr.bf16.gmra.mrb[0].mxu0 %v1857
        %v2004 = vpop.f32.mrb[0].mxu0
        %v2005 = vadd.f32 0.0, %v2004
        %v2006 = vpop.f32.mrb[0].mxu0
        %v2007 = vpop.f32.mrb[0].mxu0
        %v2008 = vadd.f32 0.0, %v2007
        %v2009 = vpop.f32.mrb[0].mxu0
        %2010 = vdwg.mxu0
        %v2011 = vpack.c.bf16 %v1794, %v1794
        %v2012 = vpack.c.bf16 %v1795, %v1795
        %v2013 = vpack.c.bf16 %v1796, %v1796
        %v2014 = vpack.c.bf16 %v1797, %v1797
        %v2015 = vpack.c.bf16 %v1798, %v1798
        %v2016 = vpack.c.bf16 %v1799, %v1799
        %v2017 = vpack.c.bf16 %v1800, %v1800
        %v2018 = vpack.c.bf16 %v1801, %v1801
        %v2019 = vld [vmem:[#allocation11] sm:$0xf]
        %v2020 = vld [vmem:[#allocation11 + $0x4] sm:$0xf]
        %v2021 = vld [vmem:[#allocation11 + $0x8] sm:$0xf]
        %v2022 = vld [vmem:[#allocation11 + $0xc] sm:$0xf]
        %v2023 = vld [vmem:[#allocation11 + $0x10] sm:$0xf]
        %v2024 = vld [vmem:[#allocation11 + $0x14] sm:$0xf]
        %v2025 = vld [vmem:[#allocation11 + $0x18] sm:$0xf]
        %v2026 = vld [vmem:[#allocation11 + $0x1c] sm:$0xf]
        %v2027 = vld [vmem:[#allocation11 + $0x20] sm:$0xf]
        %v2028 = vld [vmem:[#allocation11 + $0x24] sm:$0xf]
        %v2029 = vld [vmem:[#allocation11 + $0x28] sm:$0xf]
        %v2030 = vld [vmem:[#allocation11 + $0x2c] sm:$0xf]
        %v2031 = vld [vmem:[#allocation11 + $0x30] sm:$0xf]
        %v2032 = vld [vmem:[#allocation11 + $0x34] sm:$0xf]
        %v2033 = vld [vmem:[#allocation11 + $0x38] sm:$0xf]
        %v2034 = vld [vmem:[#allocation11 + $0x3c] sm:$0xf]
        %v2035 = vld [vmem:[%s8] sm:$0x1]
        %v2037 = vlaneseq
        %v2038 = vshrl.u32 %v2037, 7
        %v2039 = vsub.s32 0, %v2038
        %v2040 = vrot.slane %v2035, %v2039
        %v2050 = vunpack.c.l.b16 %v2011
        %v2051 = vunpack.c.l.b16 %v2012
        %v2052 = vunpack.c.l.b16 %v2013
        %v2053 = vunpack.c.l.b16 %v2014
        %v2054 = vunpack.c.l.b16 %v2015
        %v2055 = vunpack.c.l.b16 %v2016
        %v2056 = vunpack.c.l.b16 %v2017
        %v2057 = vunpack.c.l.b16 %v2018
        %v2058 = vrot.slane %v2050, 7
        %v2059 = vrot.slane %v2051, 6
        %v2060 = vsel %vm1036, %v2059, %v2058
        %v2061 = vrot.slane %v2052, 5
        %v2062 = vsel %vm1039, %v2061, %v2060
        %v2063 = vrot.slane %v2053, 4
        %v2064 = vsel %vm1042, %v2063, %v2062
        %v2065 = vrot.slane %v2054, 3
        %v2066 = vsel %vm1045, %v2065, %v2064
        %v2067 = vrot.slane %v2055, 2
        %v2068 = vsel %vm1048, %v2067, %v2066
        %v2069 = vrot.slane %v2056, 1
        %v2070 = vsel %vm1051, %v2069, %v2068
        %v2071 = vsel %vm1054, %v2057, %v2070
        %v2072 = vpack.c.b16 %v2071, %v2071
        %v2090 = vunpack.c.l.b16 %v2019
        %v2091 = vunpack.c.l.b16 %v2020
        %v2092 = vunpack.c.l.b16 %v2021
        %v2093 = vunpack.c.l.b16 %v2022
        %v2094 = vunpack.c.l.b16 %v2023
        %v2095 = vunpack.c.l.b16 %v2024
        %v2096 = vunpack.c.l.b16 %v2025
        %v2097 = vunpack.c.l.b16 %v2026
        %v2098 = vunpack.c.l.b16 %v2027
        %v2099 = vunpack.c.l.b16 %v2028
        %v2100 = vunpack.c.l.b16 %v2029
        %v2101 = vunpack.c.l.b16 %v2030
        %v2102 = vunpack.c.l.b16 %v2031
        %v2103 = vunpack.c.l.b16 %v2032
        %v2104 = vunpack.c.l.b16 %v2033
        %v2105 = vunpack.c.l.b16 %v2034
        %v2106 = vpack.c.b16 %v2091, %v2090
        %v2107 = vpack.c.b16 %v2093, %v2092
        %v2108 = vpack.c.b16 %v2095, %v2094
        %v2109 = vpack.c.b16 %v2097, %v2096
        %v2110 = vpack.c.b16 %v2099, %v2098
        %v2111 = vpack.c.b16 %v2101, %v2100
        %v2112 = vpack.c.b16 %v2103, %v2102
        %v2113 = vpack.c.b16 %v2105, %v2104
        %2122 = vmatprep.subr.bf16.mxu0 0
        %2123 = vmatpush1.bf16.msra.mxu0 %v2106
        %2124 = vmatprep.subr.bf16.mxu0 0
        %2125 = vmatpush1.bf16.msra.mxu0 %v2107
        %2126 = vmatprep.subr.bf16.mxu0 0
        %2127 = vmatpush1.bf16.msra.mxu0 %v2108
        %2128 = vmatprep.subr.bf16.mxu0 0
        %2129 = vmatpush1.bf16.msra.mxu0 %v2109
        %2130 = vmatprep.subr.bf16.mxu0 0
        %2131 = vmatpush1.bf16.msra.mxu0 %v2110
        %2132 = vmatprep.subr.bf16.mxu0 0
        %2133 = vmatpush1.bf16.msra.mxu0 %v2111
        %2134 = vmatprep.subr.bf16.mxu0 0
        %2135 = vmatpush1.bf16.msra.mxu0 %v2112
        %2136 = vmatprep.subr.bf16.mxu0 0
        %2137 = vmatpush1.bf16.msra.mxu0 %v2113
        %2138 = vmatprep.subr.bf16.mxu0 0
        %2139 = vmatpush1.bf16.msra.mxu0 0
        %2140 = vmatprep.subr.bf16.mxu0 0
        %2141 = vmatpush1.bf16.msra.mxu0 0
        %2142 = vmatprep.subr.bf16.mxu0 0
        %2143 = vmatpush1.bf16.msra.mxu0 0
        %2144 = vmatprep.subr.bf16.mxu0 0
        %2145 = vmatpush1.bf16.msra.mxu0 0
        %2146 = vmatprep.subr.bf16.mxu0 0
        %2147 = vmatpush1.bf16.msra.mxu0 0
        %2148 = vmatprep.subr.bf16.mxu0 0
        %2149 = vmatpush1.bf16.msra.mxu0 0
        %2150 = vmatprep.subr.bf16.mxu0 0
        %2151 = vmatpush1.bf16.msra.mxu0 0
        %2152 = vmatprep.subr.bf16.mxu0 0
        %2153 = vmatpush1.bf16.msra.mxu0 0
        %2154 = vmatprep.mubr.bf16.mxu0 0
        %2155 = vmatmul.mubr.bf16.gmra.mrb[0].mxu0 %v2072
        %v2156 = vpop.f32.mrb[0].mxu0
        %v2157 = vadd.f32 %v2040, %v2156
        %v2158 = vpop.f32.mrb[0].mxu0
        %v2159 = vpop.f32.mrb[0].mxu0
        %v2160 = vpop.f32.mrb[0].mxu0
        %2161 = vdwg.mxu0
        %v2163 = vcombine.high %v2157, %v2157
        %v2165 = vunpack.c.l.s4 1966171168
        %v2166 = vunpack.c.0.s8 %v2165
        %v2167 = vlaneseq
        %v2168 = vshrl.u32 %v2167, 7
        %v2169 = vsub.s32 %v2166, %v2168
        %v2170 = vrot.slane %v2157, %v2169
        %v2172 = vunpack.c.l.s4 1966171168
        %v2173 = vunpack.c.0.s8 %v2172
        %v2174 = vlaneseq
        %v2175 = vshrl.u32 %v2174, 7
        %v2176 = vsub.s32 %v2173, %v2175
        %v2177 = vrot.slane %v2163, %v2176
        %v2178 = vcombine.high %v2170, %v2170
        %v2179 = vcombine.high %v2177, %v2177
        %v2181 = vunpack.c.l.s4 1966171168
        %v2182 = vunpack.c.0.s8 %v2181
        %v2183 = vlaneseq
        %v2184 = vshrl.u32 %v2183, 7
        %v2185 = vsub.s32 %v2182, %v2184
        %v2186 = vrot.slane %v2170, %v2185
        %v2188 = vunpack.c.l.s4 1966171168
        %v2189 = vunpack.c.0.s8 %v2188
        %v2190 = vlaneseq
        %v2191 = vshrl.u32 %v2190, 7
        %v2192 = vsub.s32 %v2189, %v2191
        %v2193 = vrot.slane %v2177, %v2192
        %v2195 = vunpack.c.l.s4 1966171168
        %v2196 = vunpack.c.0.s8 %v2195
        %v2197 = vlaneseq
        %v2198 = vshrl.u32 %v2197, 7
        %v2199 = vsub.s32 %v2196, %v2198
        %v2200 = vrot.slane %v2178, %v2199
        %v2202 = vunpack.c.l.s4 1966171168
        %v2203 = vunpack.c.0.s8 %v2202
        %v2204 = vlaneseq
        %v2205 = vshrl.u32 %v2204, 7
        %v2206 = vsub.s32 %v2203, %v2205
        %v2207 = vrot.slane %v2179, %v2206
        %v2208 = vcombine.high %v2186, %v2186
        %v2209 = vcombine.high %v2193, %v2193
        %v2210 = vcombine.high %v2200, %v2200
        %v2211 = vcombine.high %v2207, %v2207
        %v2212 = vlaneseq
        %v2213 = vshrl.u32 %v2212, 7
        %v2214 = vsub.s32 0, %v2213
        %v2215 = vrot.slane %v2186, %v2214
        %v2216 = vlaneseq
        %v2217 = vshrl.u32 %v2216, 7
        %v2218 = vsub.s32 0, %v2217
        %v2219 = vrot.slane %v2200, %v2218
        %v2220 = vlaneseq
        %v2221 = vshrl.u32 %v2220, 7
        %v2222 = vsub.s32 0, %v2221
        %v2223 = vrot.slane %v2208, %v2222
        %v2224 = vlaneseq
        %v2225 = vshrl.u32 %v2224, 7
        %v2226 = vsub.s32 0, %v2225
        %v2227 = vrot.slane %v2210, %v2226
        %v2228 = vlaneseq
        %v2229 = vshrl.u32 %v2228, 7
        %v2230 = vsub.s32 0, %v2229
        %v2231 = vrot.slane %v2193, %v2230
        %v2232 = vlaneseq
        %v2233 = vshrl.u32 %v2232, 7
        %v2234 = vsub.s32 0, %v2233
        %v2235 = vrot.slane %v2207, %v2234
        %v2236 = vlaneseq
        %v2237 = vshrl.u32 %v2236, 7
        %v2238 = vsub.s32 0, %v2237
        %v2239 = vrot.slane %v2209, %v2238
        %v2240 = vlaneseq
        %v2241 = vshrl.u32 %v2240, 7
        %v2242 = vsub.s32 0, %v2241
        %v2243 = vrot.slane %v2211, %v2242
        %v2252 = vadd.f32 %v1949, %v2215
        %v2253 = vadd.f32 %v1952, %v2215
        %v2254 = vadd.f32 %v1957, %v2219
        %v2255 = vadd.f32 %v1960, %v2219
        %v2256 = vadd.f32 %v1965, %v2223
        %v2257 = vadd.f32 %v1968, %v2223
        %v2258 = vadd.f32 %v1973, %v2227
        %v2259 = vadd.f32 %v1976, %v2227
        %v2260 = vadd.f32 %v1981, %v2231
        %v2261 = vadd.f32 %v1984, %v2231
        %v2262 = vadd.f32 %v1989, %v2235
        %v2263 = vadd.f32 %v1992, %v2235
        %v2264 = vadd.f32 %v1997, %v2239
        %v2265 = vadd.f32 %v2000, %v2239
        %v2266 = vadd.f32 %v2005, %v2243
        %v2267 = vadd.f32 %v2008, %v2243
        %v2268 = vtanh.pop %v2252
        %v2269 = vtanh.pop %v2253
        %v2270 = vtanh.pop %v2254
        %v2271 = vtanh.pop %v2255
        %v2272 = vtanh.pop %v2256
        %v2273 = vtanh.pop %v2257
        %v2274 = vtanh.pop %v2258
        %v2275 = vtanh.pop %v2259
        %v2276 = vtanh.pop %v2260
        %v2277 = vtanh.pop %v2261
        %v2278 = vtanh.pop %v2262
        %v2279 = vtanh.pop %v2263
        %v2280 = vtanh.pop %v2264
        %v2281 = vtanh.pop %v2265
        %v2282 = vtanh.pop %v2266
        %v2283 = vtanh.pop %v2267
        %v2284 = vld [vmem:[%s9] sm:$0x1]
        %v2286 = vlaneseq
        %v2287 = vshrl.u32 %v2286, 7
        %v2288 = vsub.s32 0, %v2287
        %v2289 = vrot.slane %v2284, %v2288
        %v2291 = vmul.f32 %v2268, %v2289
        %v2292 = vmul.f32 %v2269, %v2289
        %v2293 = vmul.f32 %v2270, %v2289
        %v2294 = vmul.f32 %v2271, %v2289
        %v2295 = vmul.f32 %v2272, %v2289
        %v2296 = vmul.f32 %v2273, %v2289
        %v2297 = vmul.f32 %v2274, %v2289
        %v2298 = vmul.f32 %v2275, %v2289
        %v2299 = vmul.f32 %v2276, %v2289
        %v2300 = vmul.f32 %v2277, %v2289
        %v2301 = vmul.f32 %v2278, %v2289
        %v2302 = vmul.f32 %v2279, %v2289
        %v2303 = vmul.f32 %v2280, %v2289
        %v2304 = vmul.f32 %v2281, %v2289
        %v2305 = vmul.f32 %v2282, %v2289
        %v2306 = vmul.f32 %v2283, %v2289
        %2307 = vadd.xlane.f32.xlu0 %v2291
        %v2308 = vpop.xlane.xlu0 %2307
        %2309 = vadd.xlane.f32.xlu0 %v2292
        %v2310 = vpop.xlane.xlu0 %2309
        %2311 = vadd.xlane.f32.xlu0 %v2293
        %v2312 = vpop.xlane.xlu0 %2311
        %2313 = vadd.xlane.f32.xlu0 %v2294
        %v2314 = vpop.xlane.xlu0 %2313
        %2315 = vadd.xlane.f32.xlu0 %v2295
        %v2316 = vpop.xlane.xlu0 %2315
        %2317 = vadd.xlane.f32.xlu0 %v2296
        %v2318 = vpop.xlane.xlu0 %2317
        %2319 = vadd.xlane.f32.xlu0 %v2297
        %v2320 = vpop.xlane.xlu0 %2319
        %2321 = vadd.xlane.f32.xlu0 %v2298
        %v2322 = vpop.xlane.xlu0 %2321
        %2323 = vadd.xlane.f32.xlu0 %v2299
        %v2324 = vpop.xlane.xlu0 %2323
        %2325 = vadd.xlane.f32.xlu0 %v2300
        %v2326 = vpop.xlane.xlu0 %2325
        %2327 = vadd.xlane.f32.xlu0 %v2301
        %v2328 = vpop.xlane.xlu0 %2327
        %2329 = vadd.xlane.f32.xlu0 %v2302
        %v2330 = vpop.xlane.xlu0 %2329
        %2331 = vadd.xlane.f32.xlu0 %v2303
        %v2332 = vpop.xlane.xlu0 %2331
        %2333 = vadd.xlane.f32.xlu0 %v2304
        %v2334 = vpop.xlane.xlu0 %2333
        %2335 = vadd.xlane.f32.xlu0 %v2305
        %v2336 = vpop.xlane.xlu0 %2335
        %2337 = vadd.xlane.f32.xlu0 %v2306
        %v2338 = vpop.xlane.xlu0 %2337
        %v2339 = vld [vmem:[%s10] sm:$0x1]
        %v2341 = vlaneseq
        %v2342 = vshrl.u32 %v2341, 7
        %v2343 = vsub.s32 0, %v2342
        %v2344 = vrot.slane %v2339, %v2343
        %2345 = vset.pattern.permute.xlu0 0
        %2346 = vperm.xlu0 %2345, %v2344
        %v2347 = vpop.permute.xlu0 %2346
        %v2349 = vadd.f32 %v2308, %v2347
        %v2350 = vadd.f32 %v2310, %v2347
        %v2351 = vadd.f32 %v2312, %v2347
        %v2352 = vadd.f32 %v2314, %v2347
        %v2353 = vadd.f32 %v2316, %v2347
        %v2354 = vadd.f32 %v2318, %v2347
        %v2355 = vadd.f32 %v2320, %v2347
        %v2356 = vadd.f32 %v2322, %v2347
        %v2357 = vadd.f32 %v2324, %v2347
        %v2358 = vadd.f32 %v2326, %v2347
        %v2359 = vadd.f32 %v2328, %v2347
        %v2360 = vadd.f32 %v2330, %v2347
        %v2361 = vadd.f32 %v2332, %v2347
        %v2362 = vadd.f32 %v2334, %v2347
        %v2363 = vadd.f32 %v2336, %v2347
        %v2364 = vadd.f32 %v2338, %v2347
        %v2381 = vlaneseq
        %v2382 = vshrl.u32 %v2381, 7
        %v2383 = vsub.s32 %v500, %v2382
        %v2384 = vrot.slane %v2349, %v2383
        %v2385 = vadd.s32 %v500, 4294967288
        %v2386 = vlaneseq
        %v2387 = vshrl.u32 %v2386, 7
        %v2388 = vsub.s32 %v2385, %v2387
        %v2389 = vrot.slane %v2350, %v2388
        %vm2390 = vcmask 130112
        %v2391 = vsel %vm2390, %v2389, %v2384
        %v2392 = vlaneseq
        %v2393 = vshrl.u32 %v2392, 7
        %v2394 = vsub.s32 %v500, %v2393
        %v2395 = vrot.slane %v2351, %v2394
        %v2396 = vlaneseq
        %v2397 = vshrl.u32 %v2396, 7
        %v2398 = vsub.s32 %v2385, %v2397
        %v2399 = vrot.slane %v2352, %v2398
        %v2400 = vsel %vm2390, %v2399, %v2395
        %v2401 = vlaneseq
        %v2402 = vshrl.u32 %v2401, 7
        %v2403 = vsub.s32 %v500, %v2402
        %v2404 = vrot.slane %v2353, %v2403
        %v2405 = vlaneseq
        %v2406 = vshrl.u32 %v2405, 7
        %v2407 = vsub.s32 %v2385, %v2406
        %v2408 = vrot.slane %v2354, %v2407
        %v2409 = vsel %vm2390, %v2408, %v2404
        %v2410 = vlaneseq
        %v2411 = vshrl.u32 %v2410, 7
        %v2412 = vsub.s32 %v500, %v2411
        %v2413 = vrot.slane %v2355, %v2412
        %v2414 = vlaneseq
        %v2415 = vshrl.u32 %v2414, 7
        %v2416 = vsub.s32 %v2385, %v2415
        %v2417 = vrot.slane %v2356, %v2416
        %v2418 = vsel %vm2390, %v2417, %v2413
        %v2419 = vlaneseq
        %v2420 = vshrl.u32 %v2419, 7
        %v2421 = vsub.s32 %v500, %v2420
        %v2422 = vrot.slane %v2357, %v2421
        %v2423 = vlaneseq
        %v2424 = vshrl.u32 %v2423, 7
        %v2425 = vsub.s32 %v2385, %v2424
        %v2426 = vrot.slane %v2358, %v2425
        %v2427 = vsel %vm2390, %v2426, %v2422
        %v2428 = vlaneseq
        %v2429 = vshrl.u32 %v2428, 7
        %v2430 = vsub.s32 %v500, %v2429
        %v2431 = vrot.slane %v2359, %v2430
        %v2432 = vlaneseq
        %v2433 = vshrl.u32 %v2432, 7
        %v2434 = vsub.s32 %v2385, %v2433
        %v2435 = vrot.slane %v2360, %v2434
        %v2436 = vsel %vm2390, %v2435, %v2431
        %v2437 = vlaneseq
        %v2438 = vshrl.u32 %v2437, 7
        %v2439 = vsub.s32 %v500, %v2438
        %v2440 = vrot.slane %v2361, %v2439
        %v2441 = vlaneseq
        %v2442 = vshrl.u32 %v2441, 7
        %v2443 = vsub.s32 %v2385, %v2442
        %v2444 = vrot.slane %v2362, %v2443
        %v2445 = vsel %vm2390, %v2444, %v2440
        %v2446 = vlaneseq
        %v2447 = vshrl.u32 %v2446, 7
        %v2448 = vsub.s32 %v500, %v2447
        %v2449 = vrot.slane %v2363, %v2448
        %v2450 = vlaneseq
        %v2451 = vshrl.u32 %v2450, 7
        %v2452 = vsub.s32 %v2385, %v2451
        %v2453 = vrot.slane %v2364, %v2452
        %v2454 = vsel %vm2390, %v2453, %v2449
        %v2455 = vsel %vm1036, %v2400, %v2391
        %v2456 = vsel %vm1039, %v2409, %v2455
        %v2457 = vsel %vm1042, %v2418, %v2456
        %v2458 = vsel %vm1045, %v2427, %v2457
        %v2459 = vsel %vm1048, %v2436, %v2458
        %v2460 = vsel %vm1051, %v2445, %v2459
        %v2461 = vsel %vm1054, %v2454, %v2460
        %vm2463 = vcmask 130048
        %v2464 = vsel %vm2463, %v2461, -inf
        %2465 = vmax.xlane.f32.xlu0 %v2464
        %v2466 = vpop.xlane.xlu0 %2465
        %v2468 = vlaneseq
        %v2469 = vshrl.u32 %v2468, 7
        %v2470 = vsub.s32 0, %v2469
        %v2471 = vrot.slane %v2466, %v2470
        %v2472 = vlaneseq
        %v2473 = vshrl.u32 %v2472, 7
        %v2474 = vsub.s32 1, %v2473
        %v2475 = vrot.slane %v2466, %v2474
        %v2476 = vlaneseq
        %v2477 = vshrl.u32 %v2476, 7
        %v2478 = vsub.s32 2, %v2477
        %v2479 = vrot.slane %v2466, %v2478
        %v2480 = vlaneseq
        %v2481 = vshrl.u32 %v2480, 7
        %v2482 = vsub.s32 3, %v2481
        %v2483 = vrot.slane %v2466, %v2482
        %v2484 = vlaneseq
        %v2485 = vshrl.u32 %v2484, 7
        %v2486 = vsub.s32 4, %v2485
        %v2487 = vrot.slane %v2466, %v2486
        %v2488 = vlaneseq
        %v2489 = vshrl.u32 %v2488, 7
        %v2490 = vsub.s32 5, %v2489
        %v2491 = vrot.slane %v2466, %v2490
        %v2492 = vlaneseq
        %v2493 = vshrl.u32 %v2492, 7
        %v2494 = vsub.s32 6, %v2493
        %v2495 = vrot.slane %v2466, %v2494
        %v2496 = vlaneseq
        %v2497 = vshrl.u32 %v2496, 7
        %v2498 = vsub.s32 7, %v2497
        %v2499 = vrot.slane %v2466, %v2498
        %v2508 = vsub.f32 %v2349, %v2471
        %v2509 = vsub.f32 %v2350, %v2471
        %v2510 = vsub.f32 %v2351, %v2475
        %v2511 = vsub.f32 %v2352, %v2475
        %v2512 = vsub.f32 %v2353, %v2479
        %v2513 = vsub.f32 %v2354, %v2479
        %v2514 = vsub.f32 %v2355, %v2483
        %v2515 = vsub.f32 %v2356, %v2483
        %v2516 = vsub.f32 %v2357, %v2487
        %v2517 = vsub.f32 %v2358, %v2487
        %v2518 = vsub.f32 %v2359, %v2491
        %v2519 = vsub.f32 %v2360, %v2491
        %v2520 = vsub.f32 %v2361, %v2495
        %v2521 = vsub.f32 %v2362, %v2495
        %v2522 = vsub.f32 %v2363, %v2499
        %v2523 = vsub.f32 %v2364, %v2499
        %v2524 = vmul.f32 %v2508, 1.442695
        %v2525 = vpow.pop %v2524
        %v2526 = vmul.f32 %v2509, 1.442695
        %v2527 = vpow.pop %v2526
        %v2528 = vmul.f32 %v2510, 1.442695
        %v2529 = vpow.pop %v2528
        %v2530 = vmul.f32 %v2511, 1.442695
        %v2531 = vpow.pop %v2530
        %v2532 = vmul.f32 %v2512, 1.442695
        %v2533 = vpow.pop %v2532
        %v2534 = vmul.f32 %v2513, 1.442695
        %v2535 = vpow.pop %v2534
        %v2536 = vmul.f32 %v2514, 1.442695
        %v2537 = vpow.pop %v2536
        %v2538 = vmul.f32 %v2515, 1.442695
        %v2539 = vpow.pop %v2538
        %v2540 = vmul.f32 %v2516, 1.442695
        %v2541 = vpow.pop %v2540
        %v2542 = vmul.f32 %v2517, 1.442695
        %v2543 = vpow.pop %v2542
        %v2544 = vmul.f32 %v2518, 1.442695
        %v2545 = vpow.pop %v2544
        %v2546 = vmul.f32 %v2519, 1.442695
        %v2547 = vpow.pop %v2546
        %v2548 = vmul.f32 %v2520, 1.442695
        %v2549 = vpow.pop %v2548
        %v2550 = vmul.f32 %v2521, 1.442695
        %v2551 = vpow.pop %v2550
        %v2552 = vmul.f32 %v2522, 1.442695
        %v2553 = vpow.pop %v2552
        %v2554 = vmul.f32 %v2523, 1.442695
        %v2555 = vpow.pop %v2554
        %2572 = vset.pattern.permute.xlu0 0
        %2573 = vperm.xlu0 %2572, %v2525
        %v2574 = vpop.permute.xlu0 %2573
        %2575 = vset.pattern.permute.xlu0 0
        %2576 = vperm.xlu0 %2575, %v2527
        %v2577 = vpop.permute.xlu0 %2576
        %2578 = vset.pattern.permute.xlu0 0
        %2579 = vperm.xlu0 %2578, %v2529
        %v2580 = vpop.permute.xlu0 %2579
        %2581 = vset.pattern.permute.xlu0 0
        %2582 = vperm.xlu0 %2581, %v2531
        %v2583 = vpop.permute.xlu0 %2582
        %2584 = vset.pattern.permute.xlu0 0
        %2585 = vperm.xlu0 %2584, %v2533
        %v2586 = vpop.permute.xlu0 %2585
        %2587 = vset.pattern.permute.xlu0 0
        %2588 = vperm.xlu0 %2587, %v2535
        %v2589 = vpop.permute.xlu0 %2588
        %2590 = vset.pattern.permute.xlu0 0
        %2591 = vperm.xlu0 %2590, %v2537
        %v2592 = vpop.permute.xlu0 %2591
        %2593 = vset.pattern.permute.xlu0 0
        %2594 = vperm.xlu0 %2593, %v2539
        %v2595 = vpop.permute.xlu0 %2594
        %2596 = vset.pattern.permute.xlu0 0
        %2597 = vperm.xlu0 %2596, %v2541
        %v2598 = vpop.permute.xlu0 %2597
        %2599 = vset.pattern.permute.xlu0 0
        %2600 = vperm.xlu0 %2599, %v2543
        %v2601 = vpop.permute.xlu0 %2600
        %2602 = vset.pattern.permute.xlu0 0
        %2603 = vperm.xlu0 %2602, %v2545
        %v2604 = vpop.permute.xlu0 %2603
        %2605 = vset.pattern.permute.xlu0 0
        %2606 = vperm.xlu0 %2605, %v2547
        %v2607 = vpop.permute.xlu0 %2606
        %2608 = vset.pattern.permute.xlu0 0
        %2609 = vperm.xlu0 %2608, %v2549
        %v2610 = vpop.permute.xlu0 %2609
        %2611 = vset.pattern.permute.xlu0 0
        %2612 = vperm.xlu0 %2611, %v2551
        %v2613 = vpop.permute.xlu0 %2612
        %2614 = vset.pattern.permute.xlu0 0
        %2615 = vperm.xlu0 %2614, %v2553
        %v2616 = vpop.permute.xlu0 %2615
        %2617 = vset.pattern.permute.xlu0 0
        %2618 = vperm.xlu0 %2617, %v2555
        %v2619 = vpop.permute.xlu0 %2618
        %v2620 = vlaneseq
        %v2621 = vshrl.u32 %v2620, 7
        %v2622 = vsub.s32 %v500, %v2621
        %v2623 = vrot.slane %v2574, %v2622
        %v2624 = vlaneseq
        %v2625 = vshrl.u32 %v2624, 7
        %v2626 = vsub.s32 %v2385, %v2625
        %v2627 = vrot.slane %v2577, %v2626
        %v2628 = vsel %vm2390, %v2627, %v2623
        %v2629 = vlaneseq
        %v2630 = vshrl.u32 %v2629, 7
        %v2631 = vsub.s32 %v500, %v2630
        %v2632 = vrot.slane %v2580, %v2631
        %v2633 = vlaneseq
        %v2634 = vshrl.u32 %v2633, 7
        %v2635 = vsub.s32 %v2385, %v2634
        %v2636 = vrot.slane %v2583, %v2635
        %v2637 = vsel %vm2390, %v2636, %v2632
        %v2638 = vlaneseq
        %v2639 = vshrl.u32 %v2638, 7
        %v2640 = vsub.s32 %v500, %v2639
        %v2641 = vrot.slane %v2586, %v2640
        %v2642 = vlaneseq
        %v2643 = vshrl.u32 %v2642, 7
        %v2644 = vsub.s32 %v2385, %v2643
        %v2645 = vrot.slane %v2589, %v2644
        %v2646 = vsel %vm2390, %v2645, %v2641
        %v2647 = vlaneseq
        %v2648 = vshrl.u32 %v2647, 7
        %v2649 = vsub.s32 %v500, %v2648
        %v2650 = vrot.slane %v2592, %v2649
        %v2651 = vlaneseq
        %v2652 = vshrl.u32 %v2651, 7
        %v2653 = vsub.s32 %v2385, %v2652
        %v2654 = vrot.slane %v2595, %v2653
        %v2655 = vsel %vm2390, %v2654, %v2650
        %v2656 = vlaneseq
        %v2657 = vshrl.u32 %v2656, 7
        %v2658 = vsub.s32 %v500, %v2657
        %v2659 = vrot.slane %v2598, %v2658
        %v2660 = vlaneseq
        %v2661 = vshrl.u32 %v2660, 7
        %v2662 = vsub.s32 %v2385, %v2661
        %v2663 = vrot.slane %v2601, %v2662
        %v2664 = vsel %vm2390, %v2663, %v2659
        %v2665 = vlaneseq
        %v2666 = vshrl.u32 %v2665, 7
        %v2667 = vsub.s32 %v500, %v2666
        %v2668 = vrot.slane %v2604, %v2667
        %v2669 = vlaneseq
        %v2670 = vshrl.u32 %v2669, 7
        %v2671 = vsub.s32 %v2385, %v2670
        %v2672 = vrot.slane %v2607, %v2671
        %v2673 = vsel %vm2390, %v2672, %v2668
        %v2674 = vlaneseq
        %v2675 = vshrl.u32 %v2674, 7
        %v2676 = vsub.s32 %v500, %v2675
        %v2677 = vrot.slane %v2610, %v2676
        %v2678 = vlaneseq
        %v2679 = vshrl.u32 %v2678, 7
        %v2680 = vsub.s32 %v2385, %v2679
        %v2681 = vrot.slane %v2613, %v2680
        %v2682 = vsel %vm2390, %v2681, %v2677
        %v2683 = vlaneseq
        %v2684 = vshrl.u32 %v2683, 7
        %v2685 = vsub.s32 %v500, %v2684
        %v2686 = vrot.slane %v2616, %v2685
        %v2687 = vlaneseq
        %v2688 = vshrl.u32 %v2687, 7
        %v2689 = vsub.s32 %v2385, %v2688
        %v2690 = vrot.slane %v2619, %v2689
        %v2691 = vsel %vm2390, %v2690, %v2686
        %v2692 = vsel %vm1036, %v2637, %v2628
        %v2693 = vsel %vm1039, %v2646, %v2692
        %v2694 = vsel %vm1042, %v2655, %v2693
        %v2695 = vsel %vm1045, %v2664, %v2694
        %v2696 = vsel %vm1048, %v2673, %v2695
        %v2697 = vsel %vm1051, %v2682, %v2696
        %v2698 = vsel %vm1054, %v2691, %v2697
        %v2700 = vsel %vm2463, %v2698, 0.0
        %2701 = vadd.xlane.f32.xlu0 %v2700
        %v2702 = vpop.xlane.xlu0 %2701
        %v2703 = vrcp.pop %v2702
        %v2705 = vlaneseq
        %v2706 = vshrl.u32 %v2705, 7
        %v2707 = vsub.s32 0, %v2706
        %v2708 = vrot.slane %v2703, %v2707
        %v2709 = vlaneseq
        %v2710 = vshrl.u32 %v2709, 7
        %v2711 = vsub.s32 1, %v2710
        %v2712 = vrot.slane %v2703, %v2711
        %v2713 = vlaneseq
        %v2714 = vshrl.u32 %v2713, 7
        %v2715 = vsub.s32 2, %v2714
        %v2716 = vrot.slane %v2703, %v2715
        %v2717 = vlaneseq
        %v2718 = vshrl.u32 %v2717, 7
        %v2719 = vsub.s32 3, %v2718
        %v2720 = vrot.slane %v2703, %v2719
        %v2721 = vlaneseq
        %v2722 = vshrl.u32 %v2721, 7
        %v2723 = vsub.s32 4, %v2722
        %v2724 = vrot.slane %v2703, %v2723
        %v2725 = vlaneseq
        %v2726 = vshrl.u32 %v2725, 7
        %v2727 = vsub.s32 5, %v2726
        %v2728 = vrot.slane %v2703, %v2727
        %v2729 = vlaneseq
        %v2730 = vshrl.u32 %v2729, 7
        %v2731 = vsub.s32 6, %v2730
        %v2732 = vrot.slane %v2703, %v2731
        %v2733 = vlaneseq
        %v2734 = vshrl.u32 %v2733, 7
        %v2735 = vsub.s32 7, %v2734
        %v2736 = vrot.slane %v2703, %v2735
        %v2745 = vmul.f32 %v2525, %v2708
        %v2746 = vmul.f32 %v2527, %v2708
        %v2747 = vmul.f32 %v2529, %v2712
        %v2748 = vmul.f32 %v2531, %v2712
        %v2749 = vmul.f32 %v2533, %v2716
        %v2750 = vmul.f32 %v2535, %v2716
        %v2751 = vmul.f32 %v2537, %v2720
        %v2752 = vmul.f32 %v2539, %v2720
        %v2753 = vmul.f32 %v2541, %v2724
        %v2754 = vmul.f32 %v2543, %v2724
        %v2755 = vmul.f32 %v2545, %v2728
        %v2756 = vmul.f32 %v2547, %v2728
        %v2757 = vmul.f32 %v2549, %v2732
        %v2758 = vmul.f32 %v2551, %v2732
        %v2759 = vmul.f32 %v2553, %v2736
        %v2760 = vmul.f32 %v2555, %v2736
        %2762 = vset.pattern.permute.xlu0 0
        %2763 = vperm.xlu0 %2762, %v2745
        %v2764 = vpop.permute.xlu0 %2763
        %2767 = vset.pattern.permute.xlu0 0
        %2768 = vperm.xlu0 %2767, %v2746
        %v2769 = vpop.permute.xlu0 %2768
        %2772 = vset.pattern.permute.xlu0 0
        %2773 = vperm.xlu0 %2772, %v2747
        %v2774 = vpop.permute.xlu0 %2773
        %2777 = vset.pattern.permute.xlu0 0
        %2778 = vperm.xlu0 %2777, %v2748
        %v2779 = vpop.permute.xlu0 %2778
        %2782 = vset.pattern.permute.xlu0 0
        %2783 = vperm.xlu0 %2782, %v2749
        %v2784 = vpop.permute.xlu0 %2783
        %2787 = vset.pattern.permute.xlu0 0
        %2788 = vperm.xlu0 %2787, %v2750
        %v2789 = vpop.permute.xlu0 %2788
        %2792 = vset.pattern.permute.xlu0 0
        %2793 = vperm.xlu0 %2792, %v2751
        %v2794 = vpop.permute.xlu0 %2793
        %2797 = vset.pattern.permute.xlu0 0
        %2798 = vperm.xlu0 %2797, %v2752
        %v2799 = vpop.permute.xlu0 %2798
        %2802 = vset.pattern.permute.xlu0 0
        %2803 = vperm.xlu0 %2802, %v2753
        %v2804 = vpop.permute.xlu0 %2803
        %2807 = vset.pattern.permute.xlu0 0
        %2808 = vperm.xlu0 %2807, %v2754
        %v2809 = vpop.permute.xlu0 %2808
        %2812 = vset.pattern.permute.xlu0 0
        %2813 = vperm.xlu0 %2812, %v2755
        %v2814 = vpop.permute.xlu0 %2813
        %2817 = vset.pattern.permute.xlu0 0
        %2818 = vperm.xlu0 %2817, %v2756
        %v2819 = vpop.permute.xlu0 %2818
        %2822 = vset.pattern.permute.xlu0 0
        %2823 = vperm.xlu0 %2822, %v2757
        %v2824 = vpop.permute.xlu0 %2823
        %2827 = vset.pattern.permute.xlu0 0
        %2828 = vperm.xlu0 %2827, %v2758
        %v2829 = vpop.permute.xlu0 %2828
        %2832 = vset.pattern.permute.xlu0 0
        %2833 = vperm.xlu0 %2832, %v2759
        %v2834 = vpop.permute.xlu0 %2833
        %2837 = vset.pattern.permute.xlu0 0
        %2838 = vperm.xlu0 %2837, %v2760
        %v2839 = vpop.permute.xlu0 %2838
        %v2841 = vmul.f32 %v2764, %v1949
        %v2842 = vmul.f32 %v2769, %v1952
        %v2843 = vmul.f32 %v2774, %v1957
        %v2844 = vmul.f32 %v2779, %v1960
        %v2845 = vmul.f32 %v2784, %v1965
        %v2846 = vmul.f32 %v2789, %v1968
        %v2847 = vmul.f32 %v2794, %v1973
        %v2848 = vmul.f32 %v2799, %v1976
        %v2849 = vmul.f32 %v2804, %v1981
        %v2850 = vmul.f32 %v2809, %v1984
        %v2851 = vmul.f32 %v2814, %v1989
        %v2852 = vmul.f32 %v2819, %v1992
        %v2853 = vmul.f32 %v2824, %v1997
        %v2854 = vmul.f32 %v2829, %v2000
        %v2855 = vmul.f32 %v2834, %v2005
        %v2856 = vmul.f32 %v2839, %v2008
        %v2857 = vadd.f32 %v2841, %v2842
        %v2858 = vrot.slane %v2857, 4
        %v2859 = vadd.f32 %v2857, %v2858
        %v2860 = vrot.slane %v2859, 2
        %v2861 = vadd.f32 %v2859, %v2860
        %v2862 = vrot.slane %v2861, 1
        %v2863 = vadd.f32 %v2861, %v2862
        %v2864 = vadd.f32 %v2843, %v2844
        %v2865 = vrot.slane %v2864, 4
        %v2866 = vadd.f32 %v2864, %v2865
        %v2867 = vrot.slane %v2866, 2
        %v2868 = vadd.f32 %v2866, %v2867
        %v2869 = vrot.slane %v2868, 1
        %v2870 = vadd.f32 %v2868, %v2869
        %v2871 = vadd.f32 %v2845, %v2846
        %v2872 = vrot.slane %v2871, 4
        %v2873 = vadd.f32 %v2871, %v2872
        %v2874 = vrot.slane %v2873, 2
        %v2875 = vadd.f32 %v2873, %v2874
        %v2876 = vrot.slane %v2875, 1
        %v2877 = vadd.f32 %v2875, %v2876
        %v2878 = vadd.f32 %v2847, %v2848
        %v2879 = vrot.slane %v2878, 4
        %v2880 = vadd.f32 %v2878, %v2879
        %v2881 = vrot.slane %v2880, 2
        %v2882 = vadd.f32 %v2880, %v2881
        %v2883 = vrot.slane %v2882, 1
        %v2884 = vadd.f32 %v2882, %v2883
        %v2885 = vadd.f32 %v2849, %v2850
        %v2886 = vrot.slane %v2885, 4
        %v2887 = vadd.f32 %v2885, %v2886
        %v2888 = vrot.slane %v2887, 2
        %v2889 = vadd.f32 %v2887, %v2888
        %v2890 = vrot.slane %v2889, 1
        %v2891 = vadd.f32 %v2889, %v2890
        %v2892 = vadd.f32 %v2851, %v2852
        %v2893 = vrot.slane %v2892, 4
        %v2894 = vadd.f32 %v2892, %v2893
        %v2895 = vrot.slane %v2894, 2
        %v2896 = vadd.f32 %v2894, %v2895
        %v2897 = vrot.slane %v2896, 1
        %v2898 = vadd.f32 %v2896, %v2897
        %v2899 = vadd.f32 %v2853, %v2854
        %v2900 = vrot.slane %v2899, 4
        %v2901 = vadd.f32 %v2899, %v2900
        %v2902 = vrot.slane %v2901, 2
        %v2903 = vadd.f32 %v2901, %v2902
        %v2904 = vrot.slane %v2903, 1
        %v2905 = vadd.f32 %v2903, %v2904
        %v2906 = vadd.f32 %v2855, %v2856
        %v2907 = vrot.slane %v2906, 4
        %v2908 = vadd.f32 %v2906, %v2907
        %v2909 = vrot.slane %v2908, 2
        %v2910 = vadd.f32 %v2908, %v2909
        %v2911 = vrot.slane %v2910, 1
        %v2912 = vadd.f32 %v2910, %v2911
        %v2913 = vadd.f32 %v1794, %v2863
        %v2914 = vadd.f32 %v1795, %v2870
        %v2915 = vadd.f32 %v1796, %v2877
        %v2916 = vadd.f32 %v1797, %v2884
        %v2917 = vadd.f32 %v1798, %v2891
        %v2918 = vadd.f32 %v1799, %v2898
        %v2919 = vadd.f32 %v1800, %v2905
        %v2920 = vadd.f32 %v1801, %v2912
        %v2921 = vpack.c.bf16 %v2913, %v2913
        %v2922 = vpack.c.bf16 %v2914, %v2914
        %v2923 = vpack.c.bf16 %v2915, %v2915
        %v2924 = vpack.c.bf16 %v2916, %v2916
        %v2925 = vpack.c.bf16 %v2917, %v2917
        %v2926 = vpack.c.bf16 %v2918, %v2918
        %v2927 = vpack.c.bf16 %v2919, %v2919
        %v2928 = vpack.c.bf16 %v2920, %v2920
        %s2929 = scalar_lea.vmem [#allocation11], 64
        %v2930 = vld [vmem:[%s2929] sm:$0xf]
        %v2931 = vld [vmem:[%s2929 + $0x4] sm:$0xf]
        %v2932 = vld [vmem:[%s2929 + $0x8] sm:$0xf]
        %v2933 = vld [vmem:[%s2929 + $0xc] sm:$0xf]
        %v2934 = vld [vmem:[%s2929 + $0x10] sm:$0xf]
        %v2935 = vld [vmem:[%s2929 + $0x14] sm:$0xf]
        %v2936 = vld [vmem:[%s2929 + $0x18] sm:$0xf]
        %v2937 = vld [vmem:[%s2929 + $0x1c] sm:$0xf]
        %v2938 = vld [vmem:[%s2929 + $0x20] sm:$0xf]
        %v2939 = vld [vmem:[%s2929 + $0x24] sm:$0xf]
        %v2940 = vld [vmem:[%s2929 + $0x28] sm:$0xf]
        %v2941 = vld [vmem:[%s2929 + $0x2c] sm:$0xf]
        %v2942 = vld [vmem:[%s2929 + $0x30] sm:$0xf]
        %v2943 = vld [vmem:[%s2929 + $0x34] sm:$0xf]
        %v2944 = vld [vmem:[%s2929 + $0x38] sm:$0xf]
        %v2945 = vld [vmem:[%s2929 + $0x3c] sm:$0xf]
        %s2946 = scalar_lea.vmem %s8, 1
        %v2947 = vld [vmem:[%s2946] sm:$0x1]
        %v2949 = vlaneseq
        %v2950 = vshrl.u32 %v2949, 7
        %v2951 = vsub.s32 0, %v2950
        %v2952 = vrot.slane %v2947, %v2951
        %v2962 = vunpack.c.l.b16 %v2921
        %v2963 = vunpack.c.l.b16 %v2922
        %v2964 = vunpack.c.l.b16 %v2923
        %v2965 = vunpack.c.l.b16 %v2924
        %v2966 = vunpack.c.l.b16 %v2925
        %v2967 = vunpack.c.l.b16 %v2926
        %v2968 = vunpack.c.l.b16 %v2927
        %v2969 = vunpack.c.l.b16 %v2928
        %v2970 = vrot.slane %v2962, 7
        %v2971 = vrot.slane %v2963, 6
        %v2972 = vsel %vm1036, %v2971, %v2970
        %v2973 = vrot.slane %v2964, 5
        %v2974 = vsel %vm1039, %v2973, %v2972
        %v2975 = vrot.slane %v2965, 4
        %v2976 = vsel %vm1042, %v2975, %v2974
        %v2977 = vrot.slane %v2966, 3
        %v2978 = vsel %vm1045, %v2977, %v2976
        %v2979 = vrot.slane %v2967, 2
        %v2980 = vsel %vm1048, %v2979, %v2978
        %v2981 = vrot.slane %v2968, 1
        %v2982 = vsel %vm1051, %v2981, %v2980
        %v2983 = vsel %vm1054, %v2969, %v2982
        %v2984 = vpack.c.b16 %v2983, %v2983
        %v3002 = vunpack.c.l.b16 %v2930
        %v3003 = vunpack.c.l.b16 %v2931
        %v3004 = vunpack.c.l.b16 %v2932
        %v3005 = vunpack.c.l.b16 %v2933
        %v3006 = vunpack.c.l.b16 %v2934
        %v3007 = vunpack.c.l.b16 %v2935
        %v3008 = vunpack.c.l.b16 %v2936
        %v3009 = vunpack.c.l.b16 %v2937
        %v3010 = vunpack.c.l.b16 %v2938
        %v3011 = vunpack.c.l.b16 %v2939
        %v3012 = vunpack.c.l.b16 %v2940
        %v3013 = vunpack.c.l.b16 %v2941
        %v3014 = vunpack.c.l.b16 %v2942
        %v3015 = vunpack.c.l.b16 %v2943
        %v3016 = vunpack.c.l.b16 %v2944
        %v3017 = vunpack.c.l.b16 %v2945
        %v3018 = vpack.c.b16 %v3003, %v3002
        %v3019 = vpack.c.b16 %v3005, %v3004
        %v3020 = vpack.c.b16 %v3007, %v3006
        %v3021 = vpack.c.b16 %v3009, %v3008
        %v3022 = vpack.c.b16 %v3011, %v3010
        %v3023 = vpack.c.b16 %v3013, %v3012
        %v3024 = vpack.c.b16 %v3015, %v3014
        %v3025 = vpack.c.b16 %v3017, %v3016
        %3034 = vmatprep.subr.bf16.mxu0 0
        %3035 = vmatpush1.bf16.msra.mxu0 %v3018
        %3036 = vmatprep.subr.bf16.mxu0 0
        %3037 = vmatpush1.bf16.msra.mxu0 %v3019
        %3038 = vmatprep.subr.bf16.mxu0 0
        %3039 = vmatpush1.bf16.msra.mxu0 %v3020
        %3040 = vmatprep.subr.bf16.mxu0 0
        %3041 = vmatpush1.bf16.msra.mxu0 %v3021
        %3042 = vmatprep.subr.bf16.mxu0 0
        %3043 = vmatpush1.bf16.msra.mxu0 %v3022
        %3044 = vmatprep.subr.bf16.mxu0 0
        %3045 = vmatpush1.bf16.msra.mxu0 %v3023
        %3046 = vmatprep.subr.bf16.mxu0 0
        %3047 = vmatpush1.bf16.msra.mxu0 %v3024
        %3048 = vmatprep.subr.bf16.mxu0 0
        %3049 = vmatpush1.bf16.msra.mxu0 %v3025
        %3050 = vmatprep.subr.bf16.mxu0 0
        %3051 = vmatpush1.bf16.msra.mxu0 0
        %3052 = vmatprep.subr.bf16.mxu0 0
        %3053 = vmatpush1.bf16.msra.mxu0 0
        %3054 = vmatprep.subr.bf16.mxu0 0
        %3055 = vmatpush1.bf16.msra.mxu0 0
        %3056 = vmatprep.subr.bf16.mxu0 0
        %3057 = vmatpush1.bf16.msra.mxu0 0
        %3058 = vmatprep.subr.bf16.mxu0 0
        %3059 = vmatpush1.bf16.msra.mxu0 0
        %3060 = vmatprep.subr.bf16.mxu0 0
        %3061 = vmatpush1.bf16.msra.mxu0 0
        %3062 = vmatprep.subr.bf16.mxu0 0
        %3063 = vmatpush1.bf16.msra.mxu0 0
        %3064 = vmatprep.subr.bf16.mxu0 0
        %3065 = vmatpush1.bf16.msra.mxu0 0
        %3066 = vmatprep.mubr.bf16.mxu0 0
        %3067 = vmatmul.mubr.bf16.gmra.mrb[0].mxu0 %v2984
        %v3068 = vpop.f32.mrb[0].mxu0
        %v3069 = vadd.f32 %v2952, %v3068
        %v3070 = vpop.f32.mrb[0].mxu0
        %v3071 = vpop.f32.mrb[0].mxu0
        %v3072 = vpop.f32.mrb[0].mxu0
        %3073 = vdwg.mxu0
        %v3075 = vcombine.high %v3069, %v3069
        %v3077 = vunpack.c.l.s4 1966171168
        %v3078 = vunpack.c.0.s8 %v3077
        %v3079 = vlaneseq
        %v3080 = vshrl.u32 %v3079, 7
        %v3081 = vsub.s32 %v3078, %v3080
        %v3082 = vrot.slane %v3069, %v3081
        %v3084 = vunpack.c.l.s4 1966171168
        %v3085 = vunpack.c.0.s8 %v3084
        %v3086 = vlaneseq
        %v3087 = vshrl.u32 %v3086, 7
        %v3088 = vsub.s32 %v3085, %v3087
        %v3089 = vrot.slane %v3075, %v3088
        %v3090 = vcombine.high %v3082, %v3082
        %v3091 = vcombine.high %v3089, %v3089
        %v3093 = vunpack.c.l.s4 1966171168
        %v3094 = vunpack.c.0.s8 %v3093
        %v3095 = vlaneseq
        %v3096 = vshrl.u32 %v3095, 7
        %v3097 = vsub.s32 %v3094, %v3096
        %v3098 = vrot.slane %v3082, %v3097
        %v3100 = vunpack.c.l.s4 1966171168
        %v3101 = vunpack.c.0.s8 %v3100
        %v3102 = vlaneseq
        %v3103 = vshrl.u32 %v3102, 7
        %v3104 = vsub.s32 %v3101, %v3103
        %v3105 = vrot.slane %v3089, %v3104
        %v3107 = vunpack.c.l.s4 1966171168
        %v3108 = vunpack.c.0.s8 %v3107
        %v3109 = vlaneseq
        %v3110 = vshrl.u32 %v3109, 7
        %v3111 = vsub.s32 %v3108, %v3110
        %v3112 = vrot.slane %v3090, %v3111
        %v3114 = vunpack.c.l.s4 1966171168
        %v3115 = vunpack.c.0.s8 %v3114
        %v3116 = vlaneseq
        %v3117 = vshrl.u32 %v3116, 7
        %v3118 = vsub.s32 %v3115, %v3117
        %v3119 = vrot.slane %v3091, %v3118
        %v3120 = vcombine.high %v3098, %v3098
        %v3121 = vcombine.high %v3105, %v3105
        %v3122 = vcombine.high %v3112, %v3112
        %v3123 = vcombine.high %v3119, %v3119
        %v3124 = vlaneseq
        %v3125 = vshrl.u32 %v3124, 7
        %v3126 = vsub.s32 0, %v3125
        %v3127 = vrot.slane %v3098, %v3126
        %v3128 = vlaneseq
        %v3129 = vshrl.u32 %v3128, 7
        %v3130 = vsub.s32 0, %v3129
        %v3131 = vrot.slane %v3112, %v3130
        %v3132 = vlaneseq
        %v3133 = vshrl.u32 %v3132, 7
        %v3134 = vsub.s32 0, %v3133
        %v3135 = vrot.slane %v3120, %v3134
        %v3136 = vlaneseq
        %v3137 = vshrl.u32 %v3136, 7
        %v3138 = vsub.s32 0, %v3137
        %v3139 = vrot.slane %v3122, %v3138
        %v3140 = vlaneseq
        %v3141 = vshrl.u32 %v3140, 7
        %v3142 = vsub.s32 0, %v3141
        %v3143 = vrot.slane %v3105, %v3142
        %v3144 = vlaneseq
        %v3145 = vshrl.u32 %v3144, 7
        %v3146 = vsub.s32 0, %v3145
        %v3147 = vrot.slane %v3119, %v3146
        %v3148 = vlaneseq
        %v3149 = vshrl.u32 %v3148, 7
        %v3150 = vsub.s32 0, %v3149
        %v3151 = vrot.slane %v3121, %v3150
        %v3152 = vlaneseq
        %v3153 = vshrl.u32 %v3152, 7
        %v3154 = vsub.s32 0, %v3153
        %v3155 = vrot.slane %v3123, %v3154
        %v3164 = vadd.f32 %v1949, %v3127
        %v3165 = vadd.f32 %v1952, %v3127
        %v3166 = vadd.f32 %v1957, %v3131
        %v3167 = vadd.f32 %v1960, %v3131
        %v3168 = vadd.f32 %v1965, %v3135
        %v3169 = vadd.f32 %v1968, %v3135
        %v3170 = vadd.f32 %v1973, %v3139
        %v3171 = vadd.f32 %v1976, %v3139
        %v3172 = vadd.f32 %v1981, %v3143
        %v3173 = vadd.f32 %v1984, %v3143
        %v3174 = vadd.f32 %v1989, %v3147
        %v3175 = vadd.f32 %v1992, %v3147
        %v3176 = vadd.f32 %v1997, %v3151
        %v3177 = vadd.f32 %v2000, %v3151
        %v3178 = vadd.f32 %v2005, %v3155
        %v3179 = vadd.f32 %v2008, %v3155
        %v3180 = vtanh.pop %v3164
        %v3181 = vtanh.pop %v3165
        %v3182 = vtanh.pop %v3166
        %v3183 = vtanh.pop %v3167
        %v3184 = vtanh.pop %v3168
        %v3185 = vtanh.pop %v3169
        %v3186 = vtanh.pop %v3170
        %v3187 = vtanh.pop %v3171
        %v3188 = vtanh.pop %v3172
        %v3189 = vtanh.pop %v3173
        %v3190 = vtanh.pop %v3174
        %v3191 = vtanh.pop %v3175
        %v3192 = vtanh.pop %v3176
        %v3193 = vtanh.pop %v3177
        %v3194 = vtanh.pop %v3178
        %v3195 = vtanh.pop %v3179
        %s3196 = scalar_lea.vmem %s9, 1
        %v3197 = vld [vmem:[%s3196] sm:$0x1]
        %v3199 = vlaneseq
        %v3200 = vshrl.u32 %v3199, 7
        %v3201 = vsub.s32 0, %v3200
        %v3202 = vrot.slane %v3197, %v3201
        %v3204 = vmul.f32 %v3180, %v3202
        %v3205 = vmul.f32 %v3181, %v3202
        %v3206 = vmul.f32 %v3182, %v3202
        %v3207 = vmul.f32 %v3183, %v3202
        %v3208 = vmul.f32 %v3184, %v3202
        %v3209 = vmul.f32 %v3185, %v3202
        %v3210 = vmul.f32 %v3186, %v3202
        %v3211 = vmul.f32 %v3187, %v3202
        %v3212 = vmul.f32 %v3188, %v3202
        %v3213 = vmul.f32 %v3189, %v3202
        %v3214 = vmul.f32 %v3190, %v3202
        %v3215 = vmul.f32 %v3191, %v3202
        %v3216 = vmul.f32 %v3192, %v3202
        %v3217 = vmul.f32 %v3193, %v3202
        %v3218 = vmul.f32 %v3194, %v3202
        %v3219 = vmul.f32 %v3195, %v3202
        %3220 = vadd.xlane.f32.xlu0 %v3204
        %v3221 = vpop.xlane.xlu0 %3220
        %3222 = vadd.xlane.f32.xlu0 %v3205
        %v3223 = vpop.xlane.xlu0 %3222
        %3224 = vadd.xlane.f32.xlu0 %v3206
        %v3225 = vpop.xlane.xlu0 %3224
        %3226 = vadd.xlane.f32.xlu0 %v3207
        %v3227 = vpop.xlane.xlu0 %3226
        %3228 = vadd.xlane.f32.xlu0 %v3208
        %v3229 = vpop.xlane.xlu0 %3228
        %3230 = vadd.xlane.f32.xlu0 %v3209
        %v3231 = vpop.xlane.xlu0 %3230
        %3232 = vadd.xlane.f32.xlu0 %v3210
        %v3233 = vpop.xlane.xlu0 %3232
        %3234 = vadd.xlane.f32.xlu0 %v3211
        %v3235 = vpop.xlane.xlu0 %3234
        %3236 = vadd.xlane.f32.xlu0 %v3212
        %v3237 = vpop.xlane.xlu0 %3236
        %3238 = vadd.xlane.f32.xlu0 %v3213
        %v3239 = vpop.xlane.xlu0 %3238
        %3240 = vadd.xlane.f32.xlu0 %v3214
        %v3241 = vpop.xlane.xlu0 %3240
        %3242 = vadd.xlane.f32.xlu0 %v3215
        %v3243 = vpop.xlane.xlu0 %3242
        %3244 = vadd.xlane.f32.xlu0 %v3216
        %v3245 = vpop.xlane.xlu0 %3244
        %3246 = vadd.xlane.f32.xlu0 %v3217
        %v3247 = vpop.xlane.xlu0 %3246
        %3248 = vadd.xlane.f32.xlu0 %v3218
        %v3249 = vpop.xlane.xlu0 %3248
        %3250 = vadd.xlane.f32.xlu0 %v3219
        %v3251 = vpop.xlane.xlu0 %3250
        %s3252 = scalar_lea.vmem %s10, 1
        %v3253 = vld [vmem:[%s3252] sm:$0x1]
        %v3255 = vlaneseq
        %v3256 = vshrl.u32 %v3255, 7
        %v3257 = vsub.s32 0, %v3256
        %v3258 = vrot.slane %v3253, %v3257
        %3259 = vset.pattern.permute.xlu0 0
        %3260 = vperm.xlu0 %3259, %v3258
        %v3261 = vpop.permute.xlu0 %3260
        %v3263 = vadd.f32 %v3221, %v3261
        %v3264 = vadd.f32 %v3223, %v3261
        %v3265 = vadd.f32 %v3225, %v3261
        %v3266 = vadd.f32 %v3227, %v3261
        %v3267 = vadd.f32 %v3229, %v3261
        %v3268 = vadd.f32 %v3231, %v3261
        %v3269 = vadd.f32 %v3233, %v3261
        %v3270 = vadd.f32 %v3235, %v3261
        %v3271 = vadd.f32 %v3237, %v3261
        %v3272 = vadd.f32 %v3239, %v3261
        %v3273 = vadd.f32 %v3241, %v3261
        %v3274 = vadd.f32 %v3243, %v3261
        %v3275 = vadd.f32 %v3245, %v3261
        %v3276 = vadd.f32 %v3247, %v3261
        %v3277 = vadd.f32 %v3249, %v3261
        %v3278 = vadd.f32 %v3251, %v3261
        %v3295 = vlaneseq
        %v3296 = vshrl.u32 %v3295, 7
        %v3297 = vsub.s32 %v500, %v3296
        %v3298 = vrot.slane %v3263, %v3297
        %v3299 = vlaneseq
        %v3300 = vshrl.u32 %v3299, 7
        %v3301 = vsub.s32 %v2385, %v3300
        %v3302 = vrot.slane %v3264, %v3301
        %v3303 = vsel %vm2390, %v3302, %v3298
        %v3304 = vlaneseq
        %v3305 = vshrl.u32 %v3304, 7
        %v3306 = vsub.s32 %v500, %v3305
        %v3307 = vrot.slane %v3265, %v3306
        %v3308 = vlaneseq
        %v3309 = vshrl.u32 %v3308, 7
        %v3310 = vsub.s32 %v2385, %v3309
        %v3311 = vrot.slane %v3266, %v3310
        %v3312 = vsel %vm2390, %v3311, %v3307
        %v3313 = vlaneseq
        %v3314 = vshrl.u32 %v3313, 7
        %v3315 = vsub.s32 %v500, %v3314
        %v3316 = vrot.slane %v3267, %v3315
        %v3317 = vlaneseq
        %v3318 = vshrl.u32 %v3317, 7
        %v3319 = vsub.s32 %v2385, %v3318
        %v3320 = vrot.slane %v3268, %v3319
        %v3321 = vsel %vm2390, %v3320, %v3316
        %v3322 = vlaneseq
        %v3323 = vshrl.u32 %v3322, 7
        %v3324 = vsub.s32 %v500, %v3323
        %v3325 = vrot.slane %v3269, %v3324
        %v3326 = vlaneseq
        %v3327 = vshrl.u32 %v3326, 7
        %v3328 = vsub.s32 %v2385, %v3327
        %v3329 = vrot.slane %v3270, %v3328
        %v3330 = vsel %vm2390, %v3329, %v3325
        %v3331 = vlaneseq
        %v3332 = vshrl.u32 %v3331, 7
        %v3333 = vsub.s32 %v500, %v3332
        %v3334 = vrot.slane %v3271, %v3333
        %v3335 = vlaneseq
        %v3336 = vshrl.u32 %v3335, 7
        %v3337 = vsub.s32 %v2385, %v3336
        %v3338 = vrot.slane %v3272, %v3337
        %v3339 = vsel %vm2390, %v3338, %v3334
        %v3340 = vlaneseq
        %v3341 = vshrl.u32 %v3340, 7
        %v3342 = vsub.s32 %v500, %v3341
        %v3343 = vrot.slane %v3273, %v3342
        %v3344 = vlaneseq
        %v3345 = vshrl.u32 %v3344, 7
        %v3346 = vsub.s32 %v2385, %v3345
        %v3347 = vrot.slane %v3274, %v3346
        %v3348 = vsel %vm2390, %v3347, %v3343
        %v3349 = vlaneseq
        %v3350 = vshrl.u32 %v3349, 7
        %v3351 = vsub.s32 %v500, %v3350
        %v3352 = vrot.slane %v3275, %v3351
        %v3353 = vlaneseq
        %v3354 = vshrl.u32 %v3353, 7
        %v3355 = vsub.s32 %v2385, %v3354
        %v3356 = vrot.slane %v3276, %v3355
        %v3357 = vsel %vm2390, %v3356, %v3352
        %v3358 = vlaneseq
        %v3359 = vshrl.u32 %v3358, 7
        %v3360 = vsub.s32 %v500, %v3359
        %v3361 = vrot.slane %v3277, %v3360
        %v3362 = vlaneseq
        %v3363 = vshrl.u32 %v3362, 7
        %v3364 = vsub.s32 %v2385, %v3363
        %v3365 = vrot.slane %v3278, %v3364
        %v3366 = vsel %vm2390, %v3365, %v3361
        %v3367 = vsel %vm1036, %v3312, %v3303
        %v3368 = vsel %vm1039, %v3321, %v3367
        %v3369 = vsel %vm1042, %v3330, %v3368
        %v3370 = vsel %vm1045, %v3339, %v3369
        %v3371 = vsel %vm1048, %v3348, %v3370
        %v3372 = vsel %vm1051, %v3357, %v3371
        %v3373 = vsel %vm1054, %v3366, %v3372
        %v3375 = vsel %vm2463, %v3373, -inf
        %3376 = vmax.xlane.f32.xlu0 %v3375
        %v3377 = vpop.xlane.xlu0 %3376
        %v3379 = vlaneseq
        %v3380 = vshrl.u32 %v3379, 7
        %v3381 = vsub.s32 0, %v3380
        %v3382 = vrot.slane %v3377, %v3381
        %v3383 = vlaneseq
        %v3384 = vshrl.u32 %v3383, 7
        %v3385 = vsub.s32 1, %v3384
        %v3386 = vrot.slane %v3377, %v3385
        %v3387 = vlaneseq
        %v3388 = vshrl.u32 %v3387, 7
        %v3389 = vsub.s32 2, %v3388
        %v3390 = vrot.slane %v3377, %v3389
        %v3391 = vlaneseq
        %v3392 = vshrl.u32 %v3391, 7
        %v3393 = vsub.s32 3, %v3392
        %v3394 = vrot.slane %v3377, %v3393
        %v3395 = vlaneseq
        %v3396 = vshrl.u32 %v3395, 7
        %v3397 = vsub.s32 4, %v3396
        %v3398 = vrot.slane %v3377, %v3397
        %v3399 = vlaneseq
        %v3400 = vshrl.u32 %v3399, 7
        %v3401 = vsub.s32 5, %v3400
        %v3402 = vrot.slane %v3377, %v3401
        %v3403 = vlaneseq
        %v3404 = vshrl.u32 %v3403, 7
        %v3405 = vsub.s32 6, %v3404
        %v3406 = vrot.slane %v3377, %v3405
        %v3407 = vlaneseq
        %v3408 = vshrl.u32 %v3407, 7
        %v3409 = vsub.s32 7, %v3408
        %v3410 = vrot.slane %v3377, %v3409
        %v3419 = vsub.f32 %v3263, %v3382
        %v3420 = vsub.f32 %v3264, %v3382
        %v3421 = vsub.f32 %v3265, %v3386
        %v3422 = vsub.f32 %v3266, %v3386
        %v3423 = vsub.f32 %v3267, %v3390
        %v3424 = vsub.f32 %v3268, %v3390
        %v3425 = vsub.f32 %v3269, %v3394
        %v3426 = vsub.f32 %v3270, %v3394
        %v3427 = vsub.f32 %v3271, %v3398
        %v3428 = vsub.f32 %v3272, %v3398
        %v3429 = vsub.f32 %v3273, %v3402
        %v3430 = vsub.f32 %v3274, %v3402
        %v3431 = vsub.f32 %v3275, %v3406
        %v3432 = vsub.f32 %v3276, %v3406
        %v3433 = vsub.f32 %v3277, %v3410
        %v3434 = vsub.f32 %v3278, %v3410
        %v3435 = vmul.f32 %v3419, 1.442695
        %v3436 = vpow.pop %v3435
        %v3437 = vmul.f32 %v3420, 1.442695
        %v3438 = vpow.pop %v3437
        %v3439 = vmul.f32 %v3421, 1.442695
        %v3440 = vpow.pop %v3439
        %v3441 = vmul.f32 %v3422, 1.442695
        %v3442 = vpow.pop %v3441
        %v3443 = vmul.f32 %v3423, 1.442695
        %v3444 = vpow.pop %v3443
        %v3445 = vmul.f32 %v3424, 1.442695
        %v3446 = vpow.pop %v3445
        %v3447 = vmul.f32 %v3425, 1.442695
        %v3448 = vpow.pop %v3447
        %v3449 = vmul.f32 %v3426, 1.442695
        %v3450 = vpow.pop %v3449
        %v3451 = vmul.f32 %v3427, 1.442695
        %v3452 = vpow.pop %v3451
        %v3453 = vmul.f32 %v3428, 1.442695
        %v3454 = vpow.pop %v3453
        %v3455 = vmul.f32 %v3429, 1.442695
        %v3456 = vpow.pop %v3455
        %v3457 = vmul.f32 %v3430, 1.442695
        %v3458 = vpow.pop %v3457
        %v3459 = vmul.f32 %v3431, 1.442695
        %v3460 = vpow.pop %v3459
        %v3461 = vmul.f32 %v3432, 1.442695
        %v3462 = vpow.pop %v3461
        %v3463 = vmul.f32 %v3433, 1.442695
        %v3464 = vpow.pop %v3463
        %v3465 = vmul.f32 %v3434, 1.442695
        %v3466 = vpow.pop %v3465
        %3483 = vset.pattern.permute.xlu0 0
        %3484 = vperm.xlu0 %3483, %v3436
        %v3485 = vpop.permute.xlu0 %3484
        %3486 = vset.pattern.permute.xlu0 0
        %3487 = vperm.xlu0 %3486, %v3438
        %v3488 = vpop.permute.xlu0 %3487
        %3489 = vset.pattern.permute.xlu0 0
        %3490 = vperm.xlu0 %3489, %v3440
        %v3491 = vpop.permute.xlu0 %3490
        %3492 = vset.pattern.permute.xlu0 0
        %3493 = vperm.xlu0 %3492, %v3442
        %v3494 = vpop.permute.xlu0 %3493
        %3495 = vset.pattern.permute.xlu0 0
        %3496 = vperm.xlu0 %3495, %v3444
        %v3497 = vpop.permute.xlu0 %3496
        %3498 = vset.pattern.permute.xlu0 0
        %3499 = vperm.xlu0 %3498, %v3446
        %v3500 = vpop.permute.xlu0 %3499
        %3501 = vset.pattern.permute.xlu0 0
        %3502 = vperm.xlu0 %3501, %v3448
        %v3503 = vpop.permute.xlu0 %3502
        %3504 = vset.pattern.permute.xlu0 0
        %3505 = vperm.xlu0 %3504, %v3450
        %v3506 = vpop.permute.xlu0 %3505
        %3507 = vset.pattern.permute.xlu0 0
        %3508 = vperm.xlu0 %3507, %v3452
        %v3509 = vpop.permute.xlu0 %3508
        %3510 = vset.pattern.permute.xlu0 0
        %3511 = vperm.xlu0 %3510, %v3454
        %v3512 = vpop.permute.xlu0 %3511
        %3513 = vset.pattern.permute.xlu0 0
        %3514 = vperm.xlu0 %3513, %v3456
        %v3515 = vpop.permute.xlu0 %3514
        %3516 = vset.pattern.permute.xlu0 0
        %3517 = vperm.xlu0 %3516, %v3458
        %v3518 = vpop.permute.xlu0 %3517
        %3519 = vset.pattern.permute.xlu0 0
        %3520 = vperm.xlu0 %3519, %v3460
        %v3521 = vpop.permute.xlu0 %3520
        %3522 = vset.pattern.permute.xlu0 0
        %3523 = vperm.xlu0 %3522, %v3462
        %v3524 = vpop.permute.xlu0 %3523
        %3525 = vset.pattern.permute.xlu0 0
        %3526 = vperm.xlu0 %3525, %v3464
        %v3527 = vpop.permute.xlu0 %3526
        %3528 = vset.pattern.permute.xlu0 0
        %3529 = vperm.xlu0 %3528, %v3466
        %v3530 = vpop.permute.xlu0 %3529
        %v3531 = vlaneseq
        %v3532 = vshrl.u32 %v3531, 7
        %v3533 = vsub.s32 %v500, %v3532
        %v3534 = vrot.slane %v3485, %v3533
        %v3535 = vlaneseq
        %v3536 = vshrl.u32 %v3535, 7
        %v3537 = vsub.s32 %v2385, %v3536
        %v3538 = vrot.slane %v3488, %v3537
        %v3539 = vsel %vm2390, %v3538, %v3534
        %v3540 = vlaneseq
        %v3541 = vshrl.u32 %v3540, 7
        %v3542 = vsub.s32 %v500, %v3541
        %v3543 = vrot.slane %v3491, %v3542
        %v3544 = vlaneseq
        %v3545 = vshrl.u32 %v3544, 7
        %v3546 = vsub.s32 %v2385, %v3545
        %v3547 = vrot.slane %v3494, %v3546
        %v3548 = vsel %vm2390, %v3547, %v3543
        %v3549 = vlaneseq
        %v3550 = vshrl.u32 %v3549, 7
        %v3551 = vsub.s32 %v500, %v3550
        %v3552 = vrot.slane %v3497, %v3551
        %v3553 = vlaneseq
        %v3554 = vshrl.u32 %v3553, 7
        %v3555 = vsub.s32 %v2385, %v3554
        %v3556 = vrot.slane %v3500, %v3555
        %v3557 = vsel %vm2390, %v3556, %v3552
        %v3558 = vlaneseq
        %v3559 = vshrl.u32 %v3558, 7
        %v3560 = vsub.s32 %v500, %v3559
        %v3561 = vrot.slane %v3503, %v3560
        %v3562 = vlaneseq
        %v3563 = vshrl.u32 %v3562, 7
        %v3564 = vsub.s32 %v2385, %v3563
        %v3565 = vrot.slane %v3506, %v3564
        %v3566 = vsel %vm2390, %v3565, %v3561
        %v3567 = vlaneseq
        %v3568 = vshrl.u32 %v3567, 7
        %v3569 = vsub.s32 %v500, %v3568
        %v3570 = vrot.slane %v3509, %v3569
        %v3571 = vlaneseq
        %v3572 = vshrl.u32 %v3571, 7
        %v3573 = vsub.s32 %v2385, %v3572
        %v3574 = vrot.slane %v3512, %v3573
        %v3575 = vsel %vm2390, %v3574, %v3570
        %v3576 = vlaneseq
        %v3577 = vshrl.u32 %v3576, 7
        %v3578 = vsub.s32 %v500, %v3577
        %v3579 = vrot.slane %v3515, %v3578
        %v3580 = vlaneseq
        %v3581 = vshrl.u32 %v3580, 7
        %v3582 = vsub.s32 %v2385, %v3581
        %v3583 = vrot.slane %v3518, %v3582
        %v3584 = vsel %vm2390, %v3583, %v3579
        %v3585 = vlaneseq
        %v3586 = vshrl.u32 %v3585, 7
        %v3587 = vsub.s32 %v500, %v3586
        %v3588 = vrot.slane %v3521, %v3587
        %v3589 = vlaneseq
        %v3590 = vshrl.u32 %v3589, 7
        %v3591 = vsub.s32 %v2385, %v3590
        %v3592 = vrot.slane %v3524, %v3591
        %v3593 = vsel %vm2390, %v3592, %v3588
        %v3594 = vlaneseq
        %v3595 = vshrl.u32 %v3594, 7
        %v3596 = vsub.s32 %v500, %v3595
        %v3597 = vrot.slane %v3527, %v3596
        %v3598 = vlaneseq
        %v3599 = vshrl.u32 %v3598, 7
        %v3600 = vsub.s32 %v2385, %v3599
        %v3601 = vrot.slane %v3530, %v3600
        %v3602 = vsel %vm2390, %v3601, %v3597
        %v3603 = vsel %vm1036, %v3548, %v3539
        %v3604 = vsel %vm1039, %v3557, %v3603
        %v3605 = vsel %vm1042, %v3566, %v3604
        %v3606 = vsel %vm1045, %v3575, %v3605
        %v3607 = vsel %vm1048, %v3584, %v3606
        %v3608 = vsel %vm1051, %v3593, %v3607
        %v3609 = vsel %vm1054, %v3602, %v3608
        %v3611 = vsel %vm2463, %v3609, 0.0
        %3612 = vadd.xlane.f32.xlu0 %v3611
        %v3613 = vpop.xlane.xlu0 %3612
        %v3614 = vrcp.pop %v3613
        %v3616 = vlaneseq
        %v3617 = vshrl.u32 %v3616, 7
        %v3618 = vsub.s32 0, %v3617
        %v3619 = vrot.slane %v3614, %v3618
        %v3620 = vlaneseq
        %v3621 = vshrl.u32 %v3620, 7
        %v3622 = vsub.s32 1, %v3621
        %v3623 = vrot.slane %v3614, %v3622
        %v3624 = vlaneseq
        %v3625 = vshrl.u32 %v3624, 7
        %v3626 = vsub.s32 2, %v3625
        %v3627 = vrot.slane %v3614, %v3626
        %v3628 = vlaneseq
        %v3629 = vshrl.u32 %v3628, 7
        %v3630 = vsub.s32 3, %v3629
        %v3631 = vrot.slane %v3614, %v3630
        %v3632 = vlaneseq
        %v3633 = vshrl.u32 %v3632, 7
        %v3634 = vsub.s32 4, %v3633
        %v3635 = vrot.slane %v3614, %v3634
        %v3636 = vlaneseq
        %v3637 = vshrl.u32 %v3636, 7
        %v3638 = vsub.s32 5, %v3637
        %v3639 = vrot.slane %v3614, %v3638
        %v3640 = vlaneseq
        %v3641 = vshrl.u32 %v3640, 7
        %v3642 = vsub.s32 6, %v3641
        %v3643 = vrot.slane %v3614, %v3642
        %v3644 = vlaneseq
        %v3645 = vshrl.u32 %v3644, 7
        %v3646 = vsub.s32 7, %v3645
        %v3647 = vrot.slane %v3614, %v3646
        %v3656 = vmul.f32 %v3436, %v3619
        %v3657 = vmul.f32 %v3438, %v3619
        %v3658 = vmul.f32 %v3440, %v3623
        %v3659 = vmul.f32 %v3442, %v3623
        %v3660 = vmul.f32 %v3444, %v3627
        %v3661 = vmul.f32 %v3446, %v3627
        %v3662 = vmul.f32 %v3448, %v3631
        %v3663 = vmul.f32 %v3450, %v3631
        %v3664 = vmul.f32 %v3452, %v3635
        %v3665 = vmul.f32 %v3454, %v3635
        %v3666 = vmul.f32 %v3456, %v3639
        %v3667 = vmul.f32 %v3458, %v3639
        %v3668 = vmul.f32 %v3460, %v3643
        %v3669 = vmul.f32 %v3462, %v3643
        %v3670 = vmul.f32 %v3464, %v3647
        %v3671 = vmul.f32 %v3466, %v3647
        %3673 = vset.pattern.permute.xlu0 0
        %3674 = vperm.xlu0 %3673, %v3656
        %v3675 = vpop.permute.xlu0 %3674
        %3678 = vset.pattern.permute.xlu0 0
        %3679 = vperm.xlu0 %3678, %v3657
        %v3680 = vpop.permute.xlu0 %3679
        %3683 = vset.pattern.permute.xlu0 0
        %3684 = vperm.xlu0 %3683, %v3658
        %v3685 = vpop.permute.xlu0 %3684
        %3688 = vset.pattern.permute.xlu0 0
        %3689 = vperm.xlu0 %3688, %v3659
        %v3690 = vpop.permute.xlu0 %3689
        %3693 = vset.pattern.permute.xlu0 0
        %3694 = vperm.xlu0 %3693, %v3660
        %v3695 = vpop.permute.xlu0 %3694
        %3698 = vset.pattern.permute.xlu0 0
        %3699 = vperm.xlu0 %3698, %v3661
        %v3700 = vpop.permute.xlu0 %3699
        %3703 = vset.pattern.permute.xlu0 0
        %3704 = vperm.xlu0 %3703, %v3662
        %v3705 = vpop.permute.xlu0 %3704
        %3708 = vset.pattern.permute.xlu0 0
        %3709 = vperm.xlu0 %3708, %v3663
        %v3710 = vpop.permute.xlu0 %3709
        %3713 = vset.pattern.permute.xlu0 0
        %3714 = vperm.xlu0 %3713, %v3664
        %v3715 = vpop.permute.xlu0 %3714
        %3718 = vset.pattern.permute.xlu0 0
        %3719 = vperm.xlu0 %3718, %v3665
        %v3720 = vpop.permute.xlu0 %3719
        %3723 = vset.pattern.permute.xlu0 0
        %3724 = vperm.xlu0 %3723, %v3666
        %v3725 = vpop.permute.xlu0 %3724
        %3728 = vset.pattern.permute.xlu0 0
        %3729 = vperm.xlu0 %3728, %v3667
        %v3730 = vpop.permute.xlu0 %3729
        %3733 = vset.pattern.permute.xlu0 0
        %3734 = vperm.xlu0 %3733, %v3668
        %v3735 = vpop.permute.xlu0 %3734
        %3738 = vset.pattern.permute.xlu0 0
        %3739 = vperm.xlu0 %3738, %v3669
        %v3740 = vpop.permute.xlu0 %3739
        %3743 = vset.pattern.permute.xlu0 0
        %3744 = vperm.xlu0 %3743, %v3670
        %v3745 = vpop.permute.xlu0 %3744
        %3748 = vset.pattern.permute.xlu0 0
        %3749 = vperm.xlu0 %3748, %v3671
        %v3750 = vpop.permute.xlu0 %3749
        %v3752 = vmul.f32 %v3675, %v1949
        %v3753 = vmul.f32 %v3680, %v1952
        %v3754 = vmul.f32 %v3685, %v1957
        %v3755 = vmul.f32 %v3690, %v1960
        %v3756 = vmul.f32 %v3695, %v1965
        %v3757 = vmul.f32 %v3700, %v1968
        %v3758 = vmul.f32 %v3705, %v1973
        %v3759 = vmul.f32 %v3710, %v1976
        %v3760 = vmul.f32 %v3715, %v1981
        %v3761 = vmul.f32 %v3720, %v1984
        %v3762 = vmul.f32 %v3725, %v1989
        %v3763 = vmul.f32 %v3730, %v1992
        %v3764 = vmul.f32 %v3735, %v1997
        %v3765 = vmul.f32 %v3740, %v2000
        %v3766 = vmul.f32 %v3745, %v2005
        %v3767 = vmul.f32 %v3750, %v2008
        %v3768 = vadd.f32 %v3752, %v3753
        %v3769 = vrot.slane %v3768, 4
        %v3770 = vadd.f32 %v3768, %v3769
        %v3771 = vrot.slane %v3770, 2
        %v3772 = vadd.f32 %v3770, %v3771
        %v3773 = vrot.slane %v3772, 1
        %v3774 = vadd.f32 %v3772, %v3773
        %v3775 = vadd.f32 %v3754, %v3755
        %v3776 = vrot.slane %v3775, 4
        %v3777 = vadd.f32 %v3775, %v3776
        %v3778 = vrot.slane %v3777, 2
        %v3779 = vadd.f32 %v3777, %v3778
        %v3780 = vrot.slane %v3779, 1
        %v3781 = vadd.f32 %v3779, %v3780
        %v3782 = vadd.f32 %v3756, %v3757
        %v3783 = vrot.slane %v3782, 4
        %v3784 = vadd.f32 %v3782, %v3783
        %v3785 = vrot.slane %v3784, 2
        %v3786 = vadd.f32 %v3784, %v3785
        %v3787 = vrot.slane %v3786, 1
        %v3788 = vadd.f32 %v3786, %v3787
        %v3789 = vadd.f32 %v3758, %v3759
        %v3790 = vrot.slane %v3789, 4
        %v3791 = vadd.f32 %v3789, %v3790
        %v3792 = vrot.slane %v3791, 2
        %v3793 = vadd.f32 %v3791, %v3792
        %v3794 = vrot.slane %v3793, 1
        %v3795 = vadd.f32 %v3793, %v3794
        %v3796 = vadd.f32 %v3760, %v3761
        %v3797 = vrot.slane %v3796, 4
        %v3798 = vadd.f32 %v3796, %v3797
        %v3799 = vrot.slane %v3798, 2
        %v3800 = vadd.f32 %v3798, %v3799
        %v3801 = vrot.slane %v3800, 1
        %v3802 = vadd.f32 %v3800, %v3801
        %v3803 = vadd.f32 %v3762, %v3763
        %v3804 = vrot.slane %v3803, 4
        %v3805 = vadd.f32 %v3803, %v3804
        %v3806 = vrot.slane %v3805, 2
        %v3807 = vadd.f32 %v3805, %v3806
        %v3808 = vrot.slane %v3807, 1
        %v3809 = vadd.f32 %v3807, %v3808
        %v3810 = vadd.f32 %v3764, %v3765
        %v3811 = vrot.slane %v3810, 4
        %v3812 = vadd.f32 %v3810, %v3811
        %v3813 = vrot.slane %v3812, 2
        %v3814 = vadd.f32 %v3812, %v3813
        %v3815 = vrot.slane %v3814, 1
        %v3816 = vadd.f32 %v3814, %v3815
        %v3817 = vadd.f32 %v3766, %v3767
        %v3818 = vrot.slane %v3817, 4
        %v3819 = vadd.f32 %v3817, %v3818
        %v3820 = vrot.slane %v3819, 2
        %v3821 = vadd.f32 %v3819, %v3820
        %v3822 = vrot.slane %v3821, 1
        %v3823 = vadd.f32 %v3821, %v3822
        %v3824 = vadd.f32 %v2913, %v3774
        %v3825 = vadd.f32 %v2914, %v3781
        %v3826 = vadd.f32 %v2915, %v3788
        %v3827 = vadd.f32 %v2916, %v3795
        %v3828 = vadd.f32 %v2917, %v3802
        %v3829 = vadd.f32 %v2918, %v3809
        %v3830 = vadd.f32 %v2919, %v3816
        %v3831 = vadd.f32 %v2920, %v3823
        %v3840 = vrot.slane %v3825, 7
        %v3841 = vrot.slane %v3826, 6
        %v3842 = vsel %vm1036, %v3841, %v3840
        %v3843 = vrot.slane %v3827, 5
        %v3844 = vsel %vm1039, %v3843, %v3842
        %v3845 = vrot.slane %v3828, 4
        %v3846 = vsel %vm1042, %v3845, %v3844
        %v3847 = vrot.slane %v3829, 3
        %v3848 = vsel %vm1045, %v3847, %v3846
        %v3849 = vrot.slane %v3830, 2
        %v3850 = vsel %vm1048, %v3849, %v3848
        %v3851 = vrot.slane %v3831, 1
        %v3852 = vsel %vm1051, %v3851, %v3850
        %3855 = vst [vmem:[%s491 - $0x7] sm:$0x80] %v3824
        %3856 = vst [vmem:[%s491 + $0x1] sm:$0x7f] %v3852
        %s3857 = sand.u32 %s280, 1
        %s3858 = scalar_lea.sflag [#allocation4], %s3857
        %s3859 = sand.u32 %s280, 1
        %s3860 = smul.addr %s3859, 8
        %s3861 = scalar_lea.vmem [#allocation13], %s3860
        // Predicated region
        $region89: #{tpu_custom_call.1} parent=63 // pred_check
          %p3862 = pneg %p290
        $region90: #{tpu_custom_call.1} parent=63 // pred_check_branch
          %3864 = sbr.rel (%p3862) target = $region92
        $region91: #{tpu_custom_call.1} parent=63 // pred_region
          %s3866 = ssub.s32 128, 128
          %3867 = vsyncadd %s3858, %s3866
          %s3868 = smul.addr %s31, 128
          %s3869 = scalar_lea.hbm %s11, %s3868
          %s3871 = sshll.u32 %s3861, 4
          %s3872 = int_to_ptr.vmem [resolvable:$true] %s3871
          %3874 = dma.vmem_to_hbm [thread:$0]  %s3872, 128, %s3869, %s3858
        $region92: #{tpu_custom_call.1} parent=63 // pred_fallthru
          _
      $region64: #{tpu_custom_call.1} parent=5 // pred_fallthru
        _
      %p3875 = scmp.le.s32.totalorder 2, %s26
      // Predicated region
      $region93: #{tpu_custom_call.1} parent=5 // pred_check
        %p3876 = pneg %p3875
      $region94: #{tpu_custom_call.1} parent=5 // pred_check_branch
        %3878 = sbr.rel (%p3876) target = $region96
      $region95: #{tpu_custom_call.1} parent=5 // pred_region
        %s3879 = ssub.s32 %s26, 2
        // Predicated region
        $region97: #{tpu_custom_call.1} parent=95 // pred_check
          %p3880 = pneg %p296
        $region98: #{tpu_custom_call.1} parent=95 // pred_check_branch
          %3882 = sbr.rel (%p3880) target = $region100
        $region99: #{tpu_custom_call.1} parent=95 // pred_region
          %s3883 = sand.u32 %s281, 1
          %s3884 = scalar_lea.sflag [#allocation4], %s3883
          %s3885 = sand.u32 %s281, 1
          %s3886 = smul.addr %s3885, 8
          %s3887 = scalar_lea.vmem [#allocation13], %s3886
          %3888 = dma.done %s3884, 128
        $region100: #{tpu_custom_call.1} parent=95 // pred_fallthru
          _
      $region96: #{tpu_custom_call.1} parent=5 // pred_fallthru
        _
    $region6: #{tpu_custom_call.1} parent=1 // loop_footer
      %s30 = sadd.s32 1, %s26
    $region7: #{tpu_custom_call.1} parent=1 // loop_footer_branch
      %25 = sbr.rel target = $region3
    $region8: #{tpu_custom_call.1} parent=1 // loop_exit
      _
    %3889 = vsyncpa [#allocation3], 1
    %s3890 = scalar_lea.sflag [#allocation3], 1
    %3891 = vsyncpa %s3890, 1
    %3892 = vsyncpa [#allocation6], 1
    %s3893 = scalar_lea.sflag [#allocation6], 1
    %3894 = vsyncpa %s3893, 1
    %3895 = vsyncpa [#allocation9], 1
    %3896 = vsyncpa [#allocation12], 1
    %3897 = vsyncpa [#allocation4], 1
    %s3898 = scalar_lea.sflag [#allocation4], 1
    %3899 = vsyncpa %s3898, 1

</llo_original>
